<compile_context>
chip_gen: v5e
topology: v5e:2x2
jax: 0.10.0
libtpu: 0.0.40
codegen_flags: <defaults>
</compile_context>

<pallas_src>
import functools

import numpy as np
import jax
import jax.numpy as jnp
from jax.experimental import pallas as pl
from jax.experimental.pallas import tpu as pltpu

_C1, _C2, _C3 = 64, 128, 256   # conv output channels per stage
_C1P = 128                     # conv1 Cout padded for lane density (exact)


# ----------------------------- in-kernel helpers ----------------------------

def _conv3x3_relu(y, w_ref, b_ref, H, W):
    """3x3 'same' conv + bias + ReLU on a single image.

    y:     (M, Cin) f32, rows in (h, w) row-major order, M = H*W
    w_ref: (9, Cin, Cout) bf16, tap t = kh*3 + kw
    b_ref: (1, Cout) f32
    returns (M, Cout) f32
    """
    M = H * W
    Cout = w_ref.shape[-1]
    lg_w = W.bit_length() - 1                      # W is a power of two
    r = jax.lax.broadcasted_iota(jnp.int32, (M, 1), 0)
    hh = r >> lg_w
    ww = r & (W - 1)
    acc = jnp.zeros((M, Cout), jnp.float32)
    for t in range(9):
        dh, dw = t // 3 - 1, t % 3 - 1
        d = dh * W + dw
        # shifted[r] = y[r + d] (cyclic; wrap/border rows are masked below).
        shifted = y if d == 0 else pltpu.roll(y, shift=(-d) % M, axis=0)
        if dh == 0 and dw == 0:
            xs = shifted
        else:
            valid = ((hh + dh >= 0) & (hh + dh < H) &
                     (ww + dw >= 0) & (ww + dw < W))
            xs = jnp.where(valid, shifted, 0.0)
        acc = acc + jnp.dot(xs.astype(jnp.bfloat16), w_ref[t],
                            preferred_element_type=jnp.float32)
    return jnp.maximum(acc + b_ref[...], 0.0)


def _maxpool2x2(y, g, W):
    """2x2 / stride-2 maxpool on a single image.

    y: (M, C) f32 post-ReLU; g: (M/4, M) bf16 0/1 gather of (even h, even w) rows.
    returns (M/4, C) f32 (values exactly bf16-representable).
    """
    M = y.shape[0]
    m = jnp.maximum(y, pltpu.roll(y, shift=M - 1, axis=0))   # max with (h, w+1)
    m = jnp.maximum(m, pltpu.roll(m, shift=M - W, axis=0))   # ... and with h+1 row
    return jnp.dot(g, m.astype(jnp.bfloat16), preferred_element_type=jnp.float32)


# --------------------------------- kernel -----------------------------------

def _vgg_fused_kernel(xi_ref, w1_ref, b1_ref, g1_ref,
                      w2_ref, b2_ref, g2_ref,
                      w3_ref, b3_ref, g3_ref,
                      l1_ref, lb1_ref, l2_ref, lb2_ref, l3_ref, lb3_ref,
                      o_ref, *, H, W):
    """Whole VGGLight_256 forward for one batch element (grid axis = batch)."""
    # TODO(synk): training-mode Dropout (RNG masking) intentionally omitted.

    # ---- stage 1: im2col'd 3x3 conv (single K=32 matmul) + bias + ReLU + pool
    x = xi_ref[0]                                                  # (HW, 32) bf16
    y = jnp.dot(x, w1_ref[...], preferred_element_type=jnp.float32)
    y = jnp.maximum(y + b1_ref[...], 0.0)                          # (HW, 128) f32
    y = _maxpool2x2(y, g1_ref[...], W)
    h, w = H // 2, W // 2

    # ---- stage 2: 9-tap conv via rolls + border mask
    y = _conv3x3_relu(y, w2_ref, b2_ref, h, w)
    y = _maxpool2x2(y, g2_ref[...], w)
    h, w = h // 2, w // 2

    # ---- stage 3
    y = _conv3x3_relu(y, w3_ref, b3_ref, h, w)
    y = _maxpool2x2(y, g3_ref[...], w)                             # (h*w/4, 256)

    # ---- head: AdaptiveAvgPool2d((1,1)) + Linear/ReLU x2 + Linear
    feat = jnp.mean(y, axis=0, keepdims=True).astype(jnp.bfloat16)  # (1, 256)
    z = jnp.dot(feat, l1_ref[...], preferred_element_type=jnp.float32) + lb1_ref[...]
    z = jnp.maximum(z, 0.0).astype(jnp.bfloat16)
    z = jnp.dot(z, l2_ref[...], preferred_element_type=jnp.float32) + lb2_ref[...]
    z = jnp.maximum(z, 0.0).astype(jnp.bfloat16)
    out = jnp.dot(z, l3_ref[...], preferred_element_type=jnp.float32) + lb3_ref[...]
    o_ref[...] = out.reshape(o_ref.shape)


# ------------------------------ wrapper / specs -----------------------------

def _pool_gather_matrix(H, W):
    """Constant 0/1 bf16 matrix selecting rows with even h and even w."""
    Hh, Wh = H // 2, W // 2
    Mo, M = Hh * Wh, H * W
    g = np.zeros((Mo, M), np.float32)
    j = np.arange(Mo)
    src = (2 * (j // Wh)) * W + 2 * (j % Wh)
    g[j, src] = 1.0
    return jnp.asarray(g, dtype=jnp.bfloat16)


def _const_spec(shape):
    return pl.BlockSpec(shape, lambda n: (0,) * len(shape))


def _cost(N, H, W, k1, nc, args):
    HW = H * W
    f = 2 * HW * k1 * _C1P                       # stage-1 conv
    f += 2 * (HW // 4) * HW * _C1P               # pool-1 gather
    f += 9 * 2 * (HW // 4) * _C1P * _C2          # stage-2 conv
    f += 2 * (HW // 16) * (HW // 4) * _C2        # pool-2 gather
    f += 9 * 2 * (HW // 16) * _C2 * _C3          # stage-3 conv
    f += 2 * (HW // 64) * (HW // 16) * _C3       # pool-3 gather
    f += 2 * (_C3 * _C3 * 2 + _C3 * nc)          # head linears
    in_bytes = sum(int(a.size) * a.dtype.itemsize for a in args)
    return int(N * f), int(in_bytes + N * nc * 4)


def vgg_light_256_forward(params, x_nchw):
    N, Cin, H, W = x_nchw.shape
    HW = H * W
    nc = params["l3"].shape[-1]
    k1 = params["w1"].shape[0]

    # Kernel row-decode (shift/mask) needs the pooled widths to be powers of 2.
    assert H % 4 == 0 and W % 4 == 0, "need three 2x2 pools"
    for s in (W // 2, W // 4):
        assert s > 0 and (s & (s - 1)) == 0, "pooled widths must be powers of two"

    # One-time input prep (tiny): NCHW->NHWC + 3x3 im2col so stage 1 becomes a
    # single lane-dense (HW, 32) @ (32, 128) matmul inside the kernel.
    x = jnp.transpose(x_nchw, (0, 2, 3, 1))                       # (N, H, W, Cin)
    xp = jnp.pad(x, ((0, 0), (1, 1), (1, 1), (0, 0)))
    cols = [xp[:, kh:kh + H, kw:kw + W, :] for kh in range(3) for kw in range(3)]
    xi = jnp.concatenate(cols, axis=-1)                           # (N, H, W, 9*Cin)
    xi = jnp.pad(xi, ((0, 0), (0, 0), (0, 0), (0, k1 - 9 * Cin)))
    xi = xi.reshape(N, HW, k1).astype(jnp.bfloat16)

    # Constant pool-gather matrices (baked bf16 constants).
    g1 = _pool_gather_matrix(H, W)
    g2 = _pool_gather_matrix(H // 2, W // 2)
    g3 = _pool_gather_matrix(H // 4, W // 4)

    args = (xi, params["w1"], params["b1"], g1,
            params["w2"], params["b2"], g2,
            params["w3"], params["b3"], g3,
            params["l1"], params["lb1"], params["l2"], params["lb2"],
            params["l3"], params["lb3"])

    in_specs = [pl.BlockSpec((1, HW, k1), lambda n: (n, 0, 0))]
    in_specs += [_const_spec(a.shape) for a in args[1:]]

    flops, bytes_accessed = _cost(N, H, W, k1, nc, args)

    out = pl.pallas_call(
        functools.partial(_vgg_fused_kernel, H=H, W=W),
        grid=(N,),
        out_shape=jax.ShapeDtypeStruct((N, 1, nc), jnp.float32),
        in_specs=in_specs,
        out_specs=pl.BlockSpec((1, 1, nc), lambda n: (n, 0, 0)),
        compiler_params=pltpu.CompilerParams(
            dimension_semantics=("parallel",)),
        cost_estimate=pl.CostEstimate(flops=flops, transcendentals=0,
                                      bytes_accessed=bytes_accessed),
    )(*args)
    return out.reshape(N, nc)


# ------------------------------- params / init ------------------------------

def init_params(key, num_classes=10, in_channels=3):
    """Mirrors the PyTorch init; returns (kernel-layout params, raw f32 params)."""
    keys = jax.random.split(key, 9)

    def conv_init(k, cout, cin):
        n = 3 * 3 * cout                      # as in the PyTorch module
        w = jax.random.normal(k, (cout, cin, 3, 3), jnp.float32) * np.sqrt(2.0 / n)
        return w, jnp.zeros((cout,), jnp.float32)

    def linear_init(kw, kb, dout, din):
        bound = 1.0 / np.sqrt(din)            # PyTorch default Linear init
        w = jax.random.uniform(kw, (dout, din), jnp.float32, -bound, bound)
        b = jax.random.uniform(kb, (dout,), jnp.float32, -bound, bound)
        return w, b

    c1 = conv_init(keys[0], _C1, in_channels)
    c2 = conv_init(keys[1], _C2, _C1)
    c3 = conv_init(keys[2], _C3, _C2)
    fc1 = linear_init(keys[3], keys[4], _C3, _C3)
    fc2 = linear_init(keys[5], keys[6], _C3, _C3)
    fc3 = linear_init(keys[7], keys[8], num_classes, _C3)

    def tapify(w):                            # (cout,cin,3,3) -> (9,cin,cout)
        cout, cin = w.shape[0], w.shape[1]
        return jnp.transpose(w, (2, 3, 1, 0)).reshape(9, cin, cout)

    # Stage 1: im2col row layout (t*Cin + ci), rows padded 27->32, Cout 64->128.
    k1 = -(-9 * in_channels // 8) * 8
    w1 = tapify(c1[0]).reshape(9 * in_channels, _C1)
    w1 = jnp.pad(w1, ((0, k1 - 9 * in_channels), (0, _C1P - _C1)))
    b1 = jnp.pad(c1[1], (0, _C1P - _C1)).reshape(1, _C1P)
    # Stage 2/3: per-tap (9, Cin, Cout); conv2 Cin padded 64->128 (zeros).
    w2 = jnp.pad(tapify(c2[0]), ((0, 0), (0, _C1P - _C1), (0, 0)))
    w3 = tapify(c3[0])

    params = {
        "w1": w1.astype(jnp.bfloat16), "b1": b1,
        "w2": w2.astype(jnp.bfloat16), "b2": c2[1].reshape(1, _C2),
        "w3": w3.astype(jnp.bfloat16), "b3": c3[1].reshape(1, _C3),
        "l1": fc1[0].T.astype(jnp.bfloat16), "lb1": fc1[1].reshape(1, -1),
        "l2": fc2[0].T.astype(jnp.bfloat16), "lb2": fc2[1].reshape(1, -1),
        "l3": fc3[0].T.astype(jnp.bfloat16), "lb3": fc3[1].reshape(1, -1),
    }
    raw = {"convs": [c1, c2, c3], "linears": [fc1, fc2, fc3]}
    return params, raw


# ------------------------------ pure-JAX reference --------------------------

def reference_forward(raw, x):
    y = x
    for w, b in raw["convs"]:
        y = jax.lax.conv_general_dilated(
            y, w, window_strides=(1, 1), padding=((1, 1), (1, 1)),
            dimension_numbers=("NCHW", "OIHW", "NCHW"))
        y = jnp.maximum(y + b.reshape(1, -1, 1, 1), 0.0)
        y = jax.lax.reduce_window(y, -jnp.inf, jax.lax.max,
                                  (1, 1, 2, 2), (1, 1, 2, 2), "VALID")
    feat = jnp.mean(y, axis=(2, 3))
    for i, (w, b) in enumerate(raw["linears"]):
        feat = feat @ w.T + b
        if i < 2:
            feat = jnp.maximum(feat, 0.0)
    return feat


if __name__ == "__main__":
    key = jax.random.PRNGKey(0)
    kp, kx = jax.random.split(key)
    params, raw = init_params(kp, num_classes=10, in_channels=3)
    x = jax.random.normal(kx, (2, 3, 16, 16), jnp.float32)   # NCHW, as in PyTorch

    fwd = jax.jit(vgg_light_256_forward)
    out = jax.block_until_ready(fwd(params, x))
    assert out.shape == (2, 10) and out.dtype == jnp.float32

    ref = jax.block_until_ready(jax.jit(reference_forward)(raw, x))
    np.testing.assert_allclose(np.asarray(out), np.asarray(ref),
                               rtol=5e-2, atol=5e-2)
    print("KERNEL_OK")
</pallas_src>

<mosaic_0001>
module attributes {stable_mosaic.version = 11 : i64} {
  func.func @_vgg_fused_kernel(%arg0: i32, %arg1: memref<1x256x32xbf16, #tpu.memory_space<vmem>>, %arg2: memref<32x128xbf16, #tpu.memory_space<vmem>>, %arg3: memref<1x128xf32, #tpu.memory_space<vmem>>, %arg4: memref<64x256xbf16, #tpu.memory_space<vmem>>, %arg5: memref<9x128x128xbf16, #tpu.memory_space<vmem>>, %arg6: memref<1x128xf32, #tpu.memory_space<vmem>>, %arg7: memref<16x64xbf16, #tpu.memory_space<vmem>>, %arg8: memref<9x128x256xbf16, #tpu.memory_space<vmem>>, %arg9: memref<1x256xf32, #tpu.memory_space<vmem>>, %arg10: memref<4x16xbf16, #tpu.memory_space<vmem>>, %arg11: memref<256x256xbf16, #tpu.memory_space<vmem>>, %arg12: memref<1x256xf32, #tpu.memory_space<vmem>>, %arg13: memref<256x256xbf16, #tpu.memory_space<vmem>>, %arg14: memref<1x256xf32, #tpu.memory_space<vmem>>, %arg15: memref<256x10xbf16, #tpu.memory_space<vmem>>, %arg16: memref<1x10xf32, #tpu.memory_space<vmem>>, %arg17: memref<1x1x10xf32, #tpu.memory_space<vmem>>) attributes {dimension_semantics = [#tpu.dimension_semantics<parallel>], iteration_bounds = array<i64: 2>, scalar_prefetch = 0 : i64, scratch_operands = 0 : i64, tpu.core_type = #tpu.core_type<tc>, window_params = [{transform_indices = @transform_0, window_bounds = array<i64: 1, 256, 32>}, {pipeline_mode = #tpu.pipeline_mode<synchronous>, transform_indices = @transform_1, window_bounds = array<i64: 32, 128>}, {pipeline_mode = #tpu.pipeline_mode<synchronous>, transform_indices = @transform_2, window_bounds = array<i64: 1, 128>}, {pipeline_mode = #tpu.pipeline_mode<synchronous>, transform_indices = @transform_3, window_bounds = array<i64: 64, 256>}, {pipeline_mode = #tpu.pipeline_mode<synchronous>, transform_indices = @transform_4, window_bounds = array<i64: 9, 128, 128>}, {pipeline_mode = #tpu.pipeline_mode<synchronous>, transform_indices = @transform_5, window_bounds = array<i64: 1, 128>}, {pipeline_mode = #tpu.pipeline_mode<synchronous>, transform_indices = @transform_6, window_bounds = array<i64: 16, 64>}, {pipeline_mode = #tpu.pipeline_mode<synchronous>, transform_indices = @transform_7, window_bounds = array<i64: 9, 128, 256>}, {pipeline_mode = #tpu.pipeline_mode<synchronous>, transform_indices = @transform_8, window_bounds = array<i64: 1, 256>}, {pipeline_mode = #tpu.pipeline_mode<synchronous>, transform_indices = @transform_9, window_bounds = array<i64: 4, 16>}, {pipeline_mode = #tpu.pipeline_mode<synchronous>, transform_indices = @transform_10, window_bounds = array<i64: 256, 256>}, {pipeline_mode = #tpu.pipeline_mode<synchronous>, transform_indices = @transform_11, window_bounds = array<i64: 1, 256>}, {pipeline_mode = #tpu.pipeline_mode<synchronous>, transform_indices = @transform_12, window_bounds = array<i64: 256, 256>}, {pipeline_mode = #tpu.pipeline_mode<synchronous>, transform_indices = @transform_13, window_bounds = array<i64: 1, 256>}, {pipeline_mode = #tpu.pipeline_mode<synchronous>, transform_indices = @transform_14, window_bounds = array<i64: 256, 10>}, {pipeline_mode = #tpu.pipeline_mode<synchronous>, transform_indices = @transform_15, window_bounds = array<i64: 1, 10>}, {transform_indices = @transform_16, window_bounds = array<i64: 1, 1, 10>}]} {
    %c0 = arith.constant 0 : index
    %c0_0 = arith.constant 0 : index
    %c0_1 = arith.constant 0 : index
    %0 = vector.load %arg1[%c0, %c0_0, %c0_1] : memref<1x256x32xbf16, #tpu.memory_space<vmem>>, vector<1x256x32xbf16>
    %1 = vector.shape_cast %0 : vector<1x256x32xbf16> to vector<256x32xbf16>
    %c0_2 = arith.constant 0 : index
    %c0_3 = arith.constant 0 : index
    %2 = vector.load %arg2[%c0_2, %c0_3] : memref<32x128xbf16, #tpu.memory_space<vmem>>, vector<32x128xbf16>
    %cst = arith.constant dense<0.000000e+00> : vector<256x128xf32>
    %3 = tpu.matmul %1, %2, %cst {dimension_numbers = #tpu.dot_dimension_numbers<[1], [0], [0], [1], [0, 0, 1, 1], [], []>} : vector<256x32xbf16>, vector<32x128xbf16>, vector<256x128xf32> -> vector<256x128xf32>
    %c0_4 = arith.constant 0 : index
    %c0_5 = arith.constant 0 : index
    %4 = vector.load %arg3[%c0_4, %c0_5] : memref<1x128xf32, #tpu.memory_space<vmem>>, vector<1x128xf32>
    %5 = vector.broadcast %4 : vector<1x128xf32> to vector<256x128xf32>
    %6 = arith.addf %3, %5 : vector<256x128xf32>
    %cst_6 = arith.constant 0.000000e+00 : f32
    %7 = vector.broadcast %cst_6 : f32 to vector<256x128xf32>
    %8 = arith.maximumf %6, %7 : vector<256x128xf32>
    %c0_7 = arith.constant 0 : index
    %c0_8 = arith.constant 0 : index
    %9 = vector.load %arg4[%c0_7, %c0_8] : memref<64x256xbf16, #tpu.memory_space<vmem>>, vector<64x256xbf16>
    %c255_i32 = arith.constant 255 : i32
    %10 = tpu.dynamic_rotate %8 by %c255_i32 dim 0 : vector<256x128xf32>, i32 -> vector<256x128xf32>
    %11 = arith.maximumf %8, %10 : vector<256x128xf32>
    %c240_i32 = arith.constant 240 : i32
    %12 = tpu.dynamic_rotate %11 by %c240_i32 dim 0 : vector<256x128xf32>, i32 -> vector<256x128xf32>
    %13 = arith.maximumf %11, %12 : vector<256x128xf32>
    %14 = arith.truncf %13 : vector<256x128xf32> to vector<256x128xbf16>
    %cst_9 = arith.constant dense<0.000000e+00> : vector<64x128xf32>
    %15 = tpu.matmul %9, %14, %cst_9 {dimension_numbers = #tpu.dot_dimension_numbers<[1], [0], [0], [1], [0, 0, 1, 1], [], []>} : vector<64x256xbf16>, vector<256x128xbf16>, vector<64x128xf32> -> vector<64x128xf32>
    %16 = tpu.iota {dimensions = array<i32: 0>} : vector<64x1xi32>
    %c3_i32 = arith.constant 3 : i32
    %17 = vector.broadcast %c3_i32 : i32 to vector<64x1xi32>
    %18 = arith.shrsi %16, %17 : vector<64x1xi32>
    %c7_i32 = arith.constant 7 : i32
    %19 = vector.broadcast %c7_i32 : i32 to vector<64x1xi32>
    %20 = arith.andi %16, %19 : vector<64x1xi32>
    %cst_10 = arith.constant 0.000000e+00 : f32
    %21 = vector.broadcast %cst_10 : f32 to vector<64x128xf32>
    %c9_i32 = arith.constant 9 : i32
    %22 = tpu.dynamic_rotate %15 by %c9_i32 dim 0 : vector<64x128xf32>, i32 -> vector<64x128xf32>
    %c-1_i32 = arith.constant -1 : i32
    %23 = vector.broadcast %c-1_i32 : i32 to vector<64x1xi32>
    %24 = arith.addi %18, %23 : vector<64x1xi32>
    %c0_i32 = arith.constant 0 : i32
    %25 = vector.broadcast %c0_i32 : i32 to vector<64x1xi32>
    %26 = arith.cmpi sge, %24, %25 : vector<64x1xi32>
    %c-1_i32_11 = arith.constant -1 : i32
    %27 = vector.broadcast %c-1_i32_11 : i32 to vector<64x1xi32>
    %28 = arith.addi %18, %27 : vector<64x1xi32>
    %c8_i32 = arith.constant 8 : i32
    %29 = vector.broadcast %c8_i32 : i32 to vector<64x1xi32>
    %30 = arith.cmpi slt, %28, %29 : vector<64x1xi32>
    %31 = arith.andi %26, %30 : vector<64x1xi1>
    %c-1_i32_12 = arith.constant -1 : i32
    %32 = vector.broadcast %c-1_i32_12 : i32 to vector<64x1xi32>
    %33 = arith.addi %20, %32 : vector<64x1xi32>
    %c0_i32_13 = arith.constant 0 : i32
    %34 = vector.broadcast %c0_i32_13 : i32 to vector<64x1xi32>
    %35 = arith.cmpi sge, %33, %34 : vector<64x1xi32>
    %36 = arith.andi %31, %35 : vector<64x1xi1>
    %c-1_i32_14 = arith.constant -1 : i32
    %37 = vector.broadcast %c-1_i32_14 : i32 to vector<64x1xi32>
    %38 = arith.addi %20, %37 : vector<64x1xi32>
    %c8_i32_15 = arith.constant 8 : i32
    %39 = vector.broadcast %c8_i32_15 : i32 to vector<64x1xi32>
    %40 = arith.cmpi slt, %38, %39 : vector<64x1xi32>
    %41 = arith.andi %36, %40 : vector<64x1xi1>
    %cst_16 = arith.constant 0.000000e+00 : f32
    %42 = vector.shape_cast %41 : vector<64x1xi1> to vector<64x1xi1>
    %43 = vector.broadcast %42 : vector<64x1xi1> to vector<64x128xi1>
    %44 = vector.broadcast %cst_16 : f32 to vector<64x128xf32>
    %45 = arith.select %43, %22, %44 : vector<64x128xi1>, vector<64x128xf32>
    %46 = arith.truncf %45 : vector<64x128xf32> to vector<64x128xbf16>
    %c0_17 = arith.constant 0 : index
    %c0_18 = arith.constant 0 : index
    %c0_19 = arith.constant 0 : index
    %47 = vector.load %arg5[%c0_17, %c0_18, %c0_19] : memref<9x128x128xbf16, #tpu.memory_space<vmem>>, vector<1x128x128xbf16>
    %48 = vector.shape_cast %47 : vector<1x128x128xbf16> to vector<128x128xbf16>
    %cst_20 = arith.constant dense<0.000000e+00> : vector<64x128xf32>
    %49 = tpu.matmul %46, %48, %cst_20 {dimension_numbers = #tpu.dot_dimension_numbers<[1], [0], [0], [1], [0, 0, 1, 1], [], []>} : vector<64x128xbf16>, vector<128x128xbf16>, vector<64x128xf32> -> vector<64x128xf32>
    %50 = arith.addf %21, %49 : vector<64x128xf32>
    %c8_i32_21 = arith.constant 8 : i32
    %51 = tpu.dynamic_rotate %15 by %c8_i32_21 dim 0 : vector<64x128xf32>, i32 -> vector<64x128xf32>
    %c-1_i32_22 = arith.constant -1 : i32
    %52 = vector.broadcast %c-1_i32_22 : i32 to vector<64x1xi32>
    %53 = arith.addi %18, %52 : vector<64x1xi32>
    %c0_i32_23 = arith.constant 0 : i32
    %54 = vector.broadcast %c0_i32_23 : i32 to vector<64x1xi32>
    %55 = arith.cmpi sge, %53, %54 : vector<64x1xi32>
    %c-1_i32_24 = arith.constant -1 : i32
    %56 = vector.broadcast %c-1_i32_24 : i32 to vector<64x1xi32>
    %57 = arith.addi %18, %56 : vector<64x1xi32>
    %c8_i32_25 = arith.constant 8 : i32
    %58 = vector.broadcast %c8_i32_25 : i32 to vector<64x1xi32>
    %59 = arith.cmpi slt, %57, %58 : vector<64x1xi32>
    %60 = arith.andi %55, %59 : vector<64x1xi1>
    %c0_i32_26 = arith.constant 0 : i32
    %61 = vector.broadcast %c0_i32_26 : i32 to vector<64x1xi32>
    %62 = arith.addi %20, %61 : vector<64x1xi32>
    %c0_i32_27 = arith.constant 0 : i32
    %63 = vector.broadcast %c0_i32_27 : i32 to vector<64x1xi32>
    %64 = arith.cmpi sge, %62, %63 : vector<64x1xi32>
    %65 = arith.andi %60, %64 : vector<64x1xi1>
    %c0_i32_28 = arith.constant 0 : i32
    %66 = vector.broadcast %c0_i32_28 : i32 to vector<64x1xi32>
    %67 = arith.addi %20, %66 : vector<64x1xi32>
    %c8_i32_29 = arith.constant 8 : i32
    %68 = vector.broadcast %c8_i32_29 : i32 to vector<64x1xi32>
    %69 = arith.cmpi slt, %67, %68 : vector<64x1xi32>
    %70 = arith.andi %65, %69 : vector<64x1xi1>
    %cst_30 = arith.constant 0.000000e+00 : f32
    %71 = vector.shape_cast %70 : vector<64x1xi1> to vector<64x1xi1>
    %72 = vector.broadcast %71 : vector<64x1xi1> to vector<64x128xi1>
    %73 = vector.broadcast %cst_30 : f32 to vector<64x128xf32>
    %74 = arith.select %72, %51, %73 : vector<64x128xi1>, vector<64x128xf32>
    %75 = arith.truncf %74 : vector<64x128xf32> to vector<64x128xbf16>
    %c1 = arith.constant 1 : index
    %c0_31 = arith.constant 0 : index
    %c0_32 = arith.constant 0 : index
    %76 = vector.load %arg5[%c1, %c0_31, %c0_32] : memref<9x128x128xbf16, #tpu.memory_space<vmem>>, vector<1x128x128xbf16>
    %77 = vector.shape_cast %76 : vector<1x128x128xbf16> to vector<128x128xbf16>
    %cst_33 = arith.constant dense<0.000000e+00> : vector<64x128xf32>
    %78 = tpu.matmul %75, %77, %cst_33 {dimension_numbers = #tpu.dot_dimension_numbers<[1], [0], [0], [1], [0, 0, 1, 1], [], []>} : vector<64x128xbf16>, vector<128x128xbf16>, vector<64x128xf32> -> vector<64x128xf32>
    %79 = arith.addf %50, %78 : vector<64x128xf32>
    %c7_i32_34 = arith.constant 7 : i32
    %80 = tpu.dynamic_rotate %15 by %c7_i32_34 dim 0 : vector<64x128xf32>, i32 -> vector<64x128xf32>
    %c-1_i32_35 = arith.constant -1 : i32
    %81 = vector.broadcast %c-1_i32_35 : i32 to vector<64x1xi32>
    %82 = arith.addi %18, %81 : vector<64x1xi32>
    %c0_i32_36 = arith.constant 0 : i32
    %83 = vector.broadcast %c0_i32_36 : i32 to vector<64x1xi32>
    %84 = arith.cmpi sge, %82, %83 : vector<64x1xi32>
    %c-1_i32_37 = arith.constant -1 : i32
    %85 = vector.broadcast %c-1_i32_37 : i32 to vector<64x1xi32>
    %86 = arith.addi %18, %85 : vector<64x1xi32>
    %c8_i32_38 = arith.constant 8 : i32
    %87 = vector.broadcast %c8_i32_38 : i32 to vector<64x1xi32>
    %88 = arith.cmpi slt, %86, %87 : vector<64x1xi32>
    %89 = arith.andi %84, %88 : vector<64x1xi1>
    %c1_i32 = arith.constant 1 : i32
    %90 = vector.broadcast %c1_i32 : i32 to vector<64x1xi32>
    %91 = arith.addi %20, %90 : vector<64x1xi32>
    %c0_i32_39 = arith.constant 0 : i32
    %92 = vector.broadcast %c0_i32_39 : i32 to vector<64x1xi32>
    %93 = arith.cmpi sge, %91, %92 : vector<64x1xi32>
    %94 = arith.andi %89, %93 : vector<64x1xi1>
    %c1_i32_40 = arith.constant 1 : i32
    %95 = vector.broadcast %c1_i32_40 : i32 to vector<64x1xi32>
    %96 = arith.addi %20, %95 : vector<64x1xi32>
    %c8_i32_41 = arith.constant 8 : i32
    %97 = vector.broadcast %c8_i32_41 : i32 to vector<64x1xi32>
    %98 = arith.cmpi slt, %96, %97 : vector<64x1xi32>
    %99 = arith.andi %94, %98 : vector<64x1xi1>
    %cst_42 = arith.constant 0.000000e+00 : f32
    %100 = vector.shape_cast %99 : vector<64x1xi1> to vector<64x1xi1>
    %101 = vector.broadcast %100 : vector<64x1xi1> to vector<64x128xi1>
    %102 = vector.broadcast %cst_42 : f32 to vector<64x128xf32>
    %103 = arith.select %101, %80, %102 : vector<64x128xi1>, vector<64x128xf32>
    %104 = arith.truncf %103 : vector<64x128xf32> to vector<64x128xbf16>
    %c2 = arith.constant 2 : index
    %c0_43 = arith.constant 0 : index
    %c0_44 = arith.constant 0 : index
    %105 = vector.load %arg5[%c2, %c0_43, %c0_44] : memref<9x128x128xbf16, #tpu.memory_space<vmem>>, vector<1x128x128xbf16>
    %106 = vector.shape_cast %105 : vector<1x128x128xbf16> to vector<128x128xbf16>
    %cst_45 = arith.constant dense<0.000000e+00> : vector<64x128xf32>
    %107 = tpu.matmul %104, %106, %cst_45 {dimension_numbers = #tpu.dot_dimension_numbers<[1], [0], [0], [1], [0, 0, 1, 1], [], []>} : vector<64x128xbf16>, vector<128x128xbf16>, vector<64x128xf32> -> vector<64x128xf32>
    %108 = arith.addf %79, %107 : vector<64x128xf32>
    %c1_i32_46 = arith.constant 1 : i32
    %109 = tpu.dynamic_rotate %15 by %c1_i32_46 dim 0 : vector<64x128xf32>, i32 -> vector<64x128xf32>
    %c0_i32_47 = arith.constant 0 : i32
    %110 = vector.broadcast %c0_i32_47 : i32 to vector<64x1xi32>
    %111 = arith.addi %18, %110 : vector<64x1xi32>
    %c0_i32_48 = arith.constant 0 : i32
    %112 = vector.broadcast %c0_i32_48 : i32 to vector<64x1xi32>
    %113 = arith.cmpi sge, %111, %112 : vector<64x1xi32>
    %c0_i32_49 = arith.constant 0 : i32
    %114 = vector.broadcast %c0_i32_49 : i32 to vector<64x1xi32>
    %115 = arith.addi %18, %114 : vector<64x1xi32>
    %c8_i32_50 = arith.constant 8 : i32
    %116 = vector.broadcast %c8_i32_50 : i32 to vector<64x1xi32>
    %117 = arith.cmpi slt, %115, %116 : vector<64x1xi32>
    %118 = arith.andi %113, %117 : vector<64x1xi1>
    %c-1_i32_51 = arith.constant -1 : i32
    %119 = vector.broadcast %c-1_i32_51 : i32 to vector<64x1xi32>
    %120 = arith.addi %20, %119 : vector<64x1xi32>
    %c0_i32_52 = arith.constant 0 : i32
    %121 = vector.broadcast %c0_i32_52 : i32 to vector<64x1xi32>
    %122 = arith.cmpi sge, %120, %121 : vector<64x1xi32>
    %123 = arith.andi %118, %122 : vector<64x1xi1>
    %c-1_i32_53 = arith.constant -1 : i32
    %124 = vector.broadcast %c-1_i32_53 : i32 to vector<64x1xi32>
    %125 = arith.addi %20, %124 : vector<64x1xi32>
    %c8_i32_54 = arith.constant 8 : i32
    %126 = vector.broadcast %c8_i32_54 : i32 to vector<64x1xi32>
    %127 = arith.cmpi slt, %125, %126 : vector<64x1xi32>
    %128 = arith.andi %123, %127 : vector<64x1xi1>
    %cst_55 = arith.constant 0.000000e+00 : f32
    %129 = vector.shape_cast %128 : vector<64x1xi1> to vector<64x1xi1>
    %130 = vector.broadcast %129 : vector<64x1xi1> to vector<64x128xi1>
    %131 = vector.broadcast %cst_55 : f32 to vector<64x128xf32>
    %132 = arith.select %130, %109, %131 : vector<64x128xi1>, vector<64x128xf32>
    %133 = arith.truncf %132 : vector<64x128xf32> to vector<64x128xbf16>
    %c3 = arith.constant 3 : index
    %c0_56 = arith.constant 0 : index
    %c0_57 = arith.constant 0 : index
    %134 = vector.load %arg5[%c3, %c0_56, %c0_57] : memref<9x128x128xbf16, #tpu.memory_space<vmem>>, vector<1x128x128xbf16>
    %135 = vector.shape_cast %134 : vector<1x128x128xbf16> to vector<128x128xbf16>
    %cst_58 = arith.constant dense<0.000000e+00> : vector<64x128xf32>
    %136 = tpu.matmul %133, %135, %cst_58 {dimension_numbers = #tpu.dot_dimension_numbers<[1], [0], [0], [1], [0, 0, 1, 1], [], []>} : vector<64x128xbf16>, vector<128x128xbf16>, vector<64x128xf32> -> vector<64x128xf32>
    %137 = arith.addf %108, %136 : vector<64x128xf32>
    %138 = arith.truncf %15 : vector<64x128xf32> to vector<64x128xbf16>
    %c4 = arith.constant 4 : index
    %c0_59 = arith.constant 0 : index
    %c0_60 = arith.constant 0 : index
    %139 = vector.load %arg5[%c4, %c0_59, %c0_60] : memref<9x128x128xbf16, #tpu.memory_space<vmem>>, vector<1x128x128xbf16>
    %140 = vector.shape_cast %139 : vector<1x128x128xbf16> to vector<128x128xbf16>
    %cst_61 = arith.constant dense<0.000000e+00> : vector<64x128xf32>
    %141 = tpu.matmul %138, %140, %cst_61 {dimension_numbers = #tpu.dot_dimension_numbers<[1], [0], [0], [1], [0, 0, 1, 1], [], []>} : vector<64x128xbf16>, vector<128x128xbf16>, vector<64x128xf32> -> vector<64x128xf32>
    %142 = arith.addf %137, %141 : vector<64x128xf32>
    %c63_i32 = arith.constant 63 : i32
    %143 = tpu.dynamic_rotate %15 by %c63_i32 dim 0 : vector<64x128xf32>, i32 -> vector<64x128xf32>
    %c0_i32_62 = arith.constant 0 : i32
    %144 = vector.broadcast %c0_i32_62 : i32 to vector<64x1xi32>
    %145 = arith.addi %18, %144 : vector<64x1xi32>
    %c0_i32_63 = arith.constant 0 : i32
    %146 = vector.broadcast %c0_i32_63 : i32 to vector<64x1xi32>
    %147 = arith.cmpi sge, %145, %146 : vector<64x1xi32>
    %c0_i32_64 = arith.constant 0 : i32
    %148 = vector.broadcast %c0_i32_64 : i32 to vector<64x1xi32>
    %149 = arith.addi %18, %148 : vector<64x1xi32>
    %c8_i32_65 = arith.constant 8 : i32
    %150 = vector.broadcast %c8_i32_65 : i32 to vector<64x1xi32>
    %151 = arith.cmpi slt, %149, %150 : vector<64x1xi32>
    %152 = arith.andi %147, %151 : vector<64x1xi1>
    %c1_i32_66 = arith.constant 1 : i32
    %153 = vector.broadcast %c1_i32_66 : i32 to vector<64x1xi32>
    %154 = arith.addi %20, %153 : vector<64x1xi32>
    %c0_i32_67 = arith.constant 0 : i32
    %155 = vector.broadcast %c0_i32_67 : i32 to vector<64x1xi32>
    %156 = arith.cmpi sge, %154, %155 : vector<64x1xi32>
    %157 = arith.andi %152, %156 : vector<64x1xi1>
    %c1_i32_68 = arith.constant 1 : i32
    %158 = vector.broadcast %c1_i32_68 : i32 to vector<64x1xi32>
    %159 = arith.addi %20, %158 : vector<64x1xi32>
    %c8_i32_69 = arith.constant 8 : i32
    %160 = vector.broadcast %c8_i32_69 : i32 to vector<64x1xi32>
    %161 = arith.cmpi slt, %159, %160 : vector<64x1xi32>
    %162 = arith.andi %157, %161 : vector<64x1xi1>
    %cst_70 = arith.constant 0.000000e+00 : f32
    %163 = vector.shape_cast %162 : vector<64x1xi1> to vector<64x1xi1>
    %164 = vector.broadcast %163 : vector<64x1xi1> to vector<64x128xi1>
    %165 = vector.broadcast %cst_70 : f32 to vector<64x128xf32>
    %166 = arith.select %164, %143, %165 : vector<64x128xi1>, vector<64x128xf32>
    %167 = arith.truncf %166 : vector<64x128xf32> to vector<64x128xbf16>
    %c5 = arith.constant 5 : index
    %c0_71 = arith.constant 0 : index
    %c0_72 = arith.constant 0 : index
    %168 = vector.load %arg5[%c5, %c0_71, %c0_72] : memref<9x128x128xbf16, #tpu.memory_space<vmem>>, vector<1x128x128xbf16>
    %169 = vector.shape_cast %168 : vector<1x128x128xbf16> to vector<128x128xbf16>
    %cst_73 = arith.constant dense<0.000000e+00> : vector<64x128xf32>
    %170 = tpu.matmul %167, %169, %cst_73 {dimension_numbers = #tpu.dot_dimension_numbers<[1], [0], [0], [1], [0, 0, 1, 1], [], []>} : vector<64x128xbf16>, vector<128x128xbf16>, vector<64x128xf32> -> vector<64x128xf32>
    %171 = arith.addf %142, %170 : vector<64x128xf32>
    %c57_i32 = arith.constant 57 : i32
    %172 = tpu.dynamic_rotate %15 by %c57_i32 dim 0 : vector<64x128xf32>, i32 -> vector<64x128xf32>
    %c1_i32_74 = arith.constant 1 : i32
    %173 = vector.broadcast %c1_i32_74 : i32 to vector<64x1xi32>
    %174 = arith.addi %18, %173 : vector<64x1xi32>
    %c0_i32_75 = arith.constant 0 : i32
    %175 = vector.broadcast %c0_i32_75 : i32 to vector<64x1xi32>
    %176 = arith.cmpi sge, %174, %175 : vector<64x1xi32>
    %c1_i32_76 = arith.constant 1 : i32
    %177 = vector.broadcast %c1_i32_76 : i32 to vector<64x1xi32>
    %178 = arith.addi %18, %177 : vector<64x1xi32>
    %c8_i32_77 = arith.constant 8 : i32
    %179 = vector.broadcast %c8_i32_77 : i32 to vector<64x1xi32>
    %180 = arith.cmpi slt, %178, %179 : vector<64x1xi32>
    %181 = arith.andi %176, %180 : vector<64x1xi1>
    %c-1_i32_78 = arith.constant -1 : i32
    %182 = vector.broadcast %c-1_i32_78 : i32 to vector<64x1xi32>
    %183 = arith.addi %20, %182 : vector<64x1xi32>
    %c0_i32_79 = arith.constant 0 : i32
    %184 = vector.broadcast %c0_i32_79 : i32 to vector<64x1xi32>
    %185 = arith.cmpi sge, %183, %184 : vector<64x1xi32>
    %186 = arith.andi %181, %185 : vector<64x1xi1>
    %c-1_i32_80 = arith.constant -1 : i32
    %187 = vector.broadcast %c-1_i32_80 : i32 to vector<64x1xi32>
    %188 = arith.addi %20, %187 : vector<64x1xi32>
    %c8_i32_81 = arith.constant 8 : i32
    %189 = vector.broadcast %c8_i32_81 : i32 to vector<64x1xi32>
    %190 = arith.cmpi slt, %188, %189 : vector<64x1xi32>
    %191 = arith.andi %186, %190 : vector<64x1xi1>
    %cst_82 = arith.constant 0.000000e+00 : f32
    %192 = vector.shape_cast %191 : vector<64x1xi1> to vector<64x1xi1>
    %193 = vector.broadcast %192 : vector<64x1xi1> to vector<64x128xi1>
    %194 = vector.broadcast %cst_82 : f32 to vector<64x128xf32>
    %195 = arith.select %193, %172, %194 : vector<64x128xi1>, vector<64x128xf32>
    %196 = arith.truncf %195 : vector<64x128xf32> to vector<64x128xbf16>
    %c6 = arith.constant 6 : index
    %c0_83 = arith.constant 0 : index
    %c0_84 = arith.constant 0 : index
    %197 = vector.load %arg5[%c6, %c0_83, %c0_84] : memref<9x128x128xbf16, #tpu.memory_space<vmem>>, vector<1x128x128xbf16>
    %198 = vector.shape_cast %197 : vector<1x128x128xbf16> to vector<128x128xbf16>
    %cst_85 = arith.constant dense<0.000000e+00> : vector<64x128xf32>
    %199 = tpu.matmul %196, %198, %cst_85 {dimension_numbers = #tpu.dot_dimension_numbers<[1], [0], [0], [1], [0, 0, 1, 1], [], []>} : vector<64x128xbf16>, vector<128x128xbf16>, vector<64x128xf32> -> vector<64x128xf32>
    %200 = arith.addf %171, %199 : vector<64x128xf32>
    %c56_i32 = arith.constant 56 : i32
    %201 = tpu.dynamic_rotate %15 by %c56_i32 dim 0 : vector<64x128xf32>, i32 -> vector<64x128xf32>
    %c1_i32_86 = arith.constant 1 : i32
    %202 = vector.broadcast %c1_i32_86 : i32 to vector<64x1xi32>
    %203 = arith.addi %18, %202 : vector<64x1xi32>
    %c0_i32_87 = arith.constant 0 : i32
    %204 = vector.broadcast %c0_i32_87 : i32 to vector<64x1xi32>
    %205 = arith.cmpi sge, %203, %204 : vector<64x1xi32>
    %c1_i32_88 = arith.constant 1 : i32
    %206 = vector.broadcast %c1_i32_88 : i32 to vector<64x1xi32>
    %207 = arith.addi %18, %206 : vector<64x1xi32>
    %c8_i32_89 = arith.constant 8 : i32
    %208 = vector.broadcast %c8_i32_89 : i32 to vector<64x1xi32>
    %209 = arith.cmpi slt, %207, %208 : vector<64x1xi32>
    %210 = arith.andi %205, %209 : vector<64x1xi1>
    %c0_i32_90 = arith.constant 0 : i32
    %211 = vector.broadcast %c0_i32_90 : i32 to vector<64x1xi32>
    %212 = arith.addi %20, %211 : vector<64x1xi32>
    %c0_i32_91 = arith.constant 0 : i32
    %213 = vector.broadcast %c0_i32_91 : i32 to vector<64x1xi32>
    %214 = arith.cmpi sge, %212, %213 : vector<64x1xi32>
    %215 = arith.andi %210, %214 : vector<64x1xi1>
    %c0_i32_92 = arith.constant 0 : i32
    %216 = vector.broadcast %c0_i32_92 : i32 to vector<64x1xi32>
    %217 = arith.addi %20, %216 : vector<64x1xi32>
    %c8_i32_93 = arith.constant 8 : i32
    %218 = vector.broadcast %c8_i32_93 : i32 to vector<64x1xi32>
    %219 = arith.cmpi slt, %217, %218 : vector<64x1xi32>
    %220 = arith.andi %215, %219 : vector<64x1xi1>
    %cst_94 = arith.constant 0.000000e+00 : f32
    %221 = vector.shape_cast %220 : vector<64x1xi1> to vector<64x1xi1>
    %222 = vector.broadcast %221 : vector<64x1xi1> to vector<64x128xi1>
    %223 = vector.broadcast %cst_94 : f32 to vector<64x128xf32>
    %224 = arith.select %222, %201, %223 : vector<64x128xi1>, vector<64x128xf32>
    %225 = arith.truncf %224 : vector<64x128xf32> to vector<64x128xbf16>
    %c7 = arith.constant 7 : index
    %c0_95 = arith.constant 0 : index
    %c0_96 = arith.constant 0 : index
    %226 = vector.load %arg5[%c7, %c0_95, %c0_96] : memref<9x128x128xbf16, #tpu.memory_space<vmem>>, vector<1x128x128xbf16>
    %227 = vector.shape_cast %226 : vector<1x128x128xbf16> to vector<128x128xbf16>
    %cst_97 = arith.constant dense<0.000000e+00> : vector<64x128xf32>
    %228 = tpu.matmul %225, %227, %cst_97 {dimension_numbers = #tpu.dot_dimension_numbers<[1], [0], [0], [1], [0, 0, 1, 1], [], []>} : vector<64x128xbf16>, vector<128x128xbf16>, vector<64x128xf32> -> vector<64x128xf32>
    %229 = arith.addf %200, %228 : vector<64x128xf32>
    %c55_i32 = arith.constant 55 : i32
    %230 = tpu.dynamic_rotate %15 by %c55_i32 dim 0 : vector<64x128xf32>, i32 -> vector<64x128xf32>
    %c1_i32_98 = arith.constant 1 : i32
    %231 = vector.broadcast %c1_i32_98 : i32 to vector<64x1xi32>
    %232 = arith.addi %18, %231 : vector<64x1xi32>
    %c0_i32_99 = arith.constant 0 : i32
    %233 = vector.broadcast %c0_i32_99 : i32 to vector<64x1xi32>
    %234 = arith.cmpi sge, %232, %233 : vector<64x1xi32>
    %c1_i32_100 = arith.constant 1 : i32
    %235 = vector.broadcast %c1_i32_100 : i32 to vector<64x1xi32>
    %236 = arith.addi %18, %235 : vector<64x1xi32>
    %c8_i32_101 = arith.constant 8 : i32
    %237 = vector.broadcast %c8_i32_101 : i32 to vector<64x1xi32>
    %238 = arith.cmpi slt, %236, %237 : vector<64x1xi32>
    %239 = arith.andi %234, %238 : vector<64x1xi1>
    %c1_i32_102 = arith.constant 1 : i32
    %240 = vector.broadcast %c1_i32_102 : i32 to vector<64x1xi32>
    %241 = arith.addi %20, %240 : vector<64x1xi32>
    %c0_i32_103 = arith.constant 0 : i32
    %242 = vector.broadcast %c0_i32_103 : i32 to vector<64x1xi32>
    %243 = arith.cmpi sge, %241, %242 : vector<64x1xi32>
    %244 = arith.andi %239, %243 : vector<64x1xi1>
    %c1_i32_104 = arith.constant 1 : i32
    %245 = vector.broadcast %c1_i32_104 : i32 to vector<64x1xi32>
    %246 = arith.addi %20, %245 : vector<64x1xi32>
    %c8_i32_105 = arith.constant 8 : i32
    %247 = vector.broadcast %c8_i32_105 : i32 to vector<64x1xi32>
    %248 = arith.cmpi slt, %246, %247 : vector<64x1xi32>
    %249 = arith.andi %244, %248 : vector<64x1xi1>
    %cst_106 = arith.constant 0.000000e+00 : f32
    %250 = vector.shape_cast %249 : vector<64x1xi1> to vector<64x1xi1>
    %251 = vector.broadcast %250 : vector<64x1xi1> to vector<64x128xi1>
    %252 = vector.broadcast %cst_106 : f32 to vector<64x128xf32>
    %253 = arith.select %251, %230, %252 : vector<64x128xi1>, vector<64x128xf32>
    %254 = arith.truncf %253 : vector<64x128xf32> to vector<64x128xbf16>
    %c8 = arith.constant 8 : index
    %c0_107 = arith.constant 0 : index
    %c0_108 = arith.constant 0 : index
    %255 = vector.load %arg5[%c8, %c0_107, %c0_108] : memref<9x128x128xbf16, #tpu.memory_space<vmem>>, vector<1x128x128xbf16>
    %256 = vector.shape_cast %255 : vector<1x128x128xbf16> to vector<128x128xbf16>
    %cst_109 = arith.constant dense<0.000000e+00> : vector<64x128xf32>
    %257 = tpu.matmul %254, %256, %cst_109 {dimension_numbers = #tpu.dot_dimension_numbers<[1], [0], [0], [1], [0, 0, 1, 1], [], []>} : vector<64x128xbf16>, vector<128x128xbf16>, vector<64x128xf32> -> vector<64x128xf32>
    %258 = arith.addf %229, %257 : vector<64x128xf32>
    %c0_110 = arith.constant 0 : index
    %c0_111 = arith.constant 0 : index
    %259 = vector.load %arg6[%c0_110, %c0_111] : memref<1x128xf32, #tpu.memory_space<vmem>>, vector<1x128xf32>
    %260 = vector.broadcast %259 : vector<1x128xf32> to vector<64x128xf32>
    %261 = arith.addf %258, %260 : vector<64x128xf32>
    %cst_112 = arith.constant 0.000000e+00 : f32
    %262 = vector.broadcast %cst_112 : f32 to vector<64x128xf32>
    %263 = arith.maximumf %261, %262 : vector<64x128xf32>
    %c0_113 = arith.constant 0 : index
    %c0_114 = arith.constant 0 : index
    %264 = vector.load %arg7[%c0_113, %c0_114] : memref<16x64xbf16, #tpu.memory_space<vmem>>, vector<16x64xbf16>
    %c63_i32_115 = arith.constant 63 : i32
    %265 = tpu.dynamic_rotate %263 by %c63_i32_115 dim 0 : vector<64x128xf32>, i32 -> vector<64x128xf32>
    %266 = arith.maximumf %263, %265 : vector<64x128xf32>
    %c56_i32_116 = arith.constant 56 : i32
    %267 = tpu.dynamic_rotate %266 by %c56_i32_116 dim 0 : vector<64x128xf32>, i32 -> vector<64x128xf32>
    %268 = arith.maximumf %266, %267 : vector<64x128xf32>
    %269 = arith.truncf %268 : vector<64x128xf32> to vector<64x128xbf16>
    %cst_117 = arith.constant dense<0.000000e+00> : vector<16x128xf32>
    %270 = tpu.matmul %264, %269, %cst_117 {dimension_numbers = #tpu.dot_dimension_numbers<[1], [0], [0], [1], [0, 0, 1, 1], [], []>} : vector<16x64xbf16>, vector<64x128xbf16>, vector<16x128xf32> -> vector<16x128xf32>
    %271 = tpu.iota {dimensions = array<i32: 0>} : vector<16x1xi32>
    %c2_i32 = arith.constant 2 : i32
    %272 = vector.broadcast %c2_i32 : i32 to vector<16x1xi32>
    %273 = arith.shrsi %271, %272 : vector<16x1xi32>
    %c3_i32_118 = arith.constant 3 : i32
    %274 = vector.broadcast %c3_i32_118 : i32 to vector<16x1xi32>
    %275 = arith.andi %271, %274 : vector<16x1xi32>
    %cst_119 = arith.constant 0.000000e+00 : f32
    %276 = vector.broadcast %cst_119 : f32 to vector<16x256xf32>
    %c5_i32 = arith.constant 5 : i32
    %277 = tpu.dynamic_rotate %270 by %c5_i32 dim 0 : vector<16x128xf32>, i32 -> vector<16x128xf32>
    %c-1_i32_120 = arith.constant -1 : i32
    %278 = vector.broadcast %c-1_i32_120 : i32 to vector<16x1xi32>
    %279 = arith.addi %273, %278 : vector<16x1xi32>
    %c0_i32_121 = arith.constant 0 : i32
    %280 = vector.broadcast %c0_i32_121 : i32 to vector<16x1xi32>
    %281 = arith.cmpi sge, %279, %280 : vector<16x1xi32>
    %c-1_i32_122 = arith.constant -1 : i32
    %282 = vector.broadcast %c-1_i32_122 : i32 to vector<16x1xi32>
    %283 = arith.addi %273, %282 : vector<16x1xi32>
    %c4_i32 = arith.constant 4 : i32
    %284 = vector.broadcast %c4_i32 : i32 to vector<16x1xi32>
    %285 = arith.cmpi slt, %283, %284 : vector<16x1xi32>
    %286 = arith.andi %281, %285 : vector<16x1xi1>
    %c-1_i32_123 = arith.constant -1 : i32
    %287 = vector.broadcast %c-1_i32_123 : i32 to vector<16x1xi32>
    %288 = arith.addi %275, %287 : vector<16x1xi32>
    %c0_i32_124 = arith.constant 0 : i32
    %289 = vector.broadcast %c0_i32_124 : i32 to vector<16x1xi32>
    %290 = arith.cmpi sge, %288, %289 : vector<16x1xi32>
    %291 = arith.andi %286, %290 : vector<16x1xi1>
    %c-1_i32_125 = arith.constant -1 : i32
    %292 = vector.broadcast %c-1_i32_125 : i32 to vector<16x1xi32>
    %293 = arith.addi %275, %292 : vector<16x1xi32>
    %c4_i32_126 = arith.constant 4 : i32
    %294 = vector.broadcast %c4_i32_126 : i32 to vector<16x1xi32>
    %295 = arith.cmpi slt, %293, %294 : vector<16x1xi32>
    %296 = arith.andi %291, %295 : vector<16x1xi1>
    %cst_127 = arith.constant 0.000000e+00 : f32
    %297 = vector.shape_cast %296 : vector<16x1xi1> to vector<16x1xi1>
    %298 = vector.broadcast %297 : vector<16x1xi1> to vector<16x128xi1>
    %299 = vector.broadcast %cst_127 : f32 to vector<16x128xf32>
    %300 = arith.select %298, %277, %299 : vector<16x128xi1>, vector<16x128xf32>
    %301 = arith.truncf %300 : vector<16x128xf32> to vector<16x128xbf16>
    %c0_128 = arith.constant 0 : index
    %c0_129 = arith.constant 0 : index
    %c0_130 = arith.constant 0 : index
    %302 = vector.load %arg8[%c0_128, %c0_129, %c0_130] : memref<9x128x256xbf16, #tpu.memory_space<vmem>>, vector<1x128x256xbf16>
    %303 = vector.shape_cast %302 : vector<1x128x256xbf16> to vector<128x256xbf16>
    %cst_131 = arith.constant dense<0.000000e+00> : vector<16x256xf32>
    %304 = tpu.matmul %301, %303, %cst_131 {dimension_numbers = #tpu.dot_dimension_numbers<[1], [0], [0], [1], [0, 0, 1, 1], [], []>} : vector<16x128xbf16>, vector<128x256xbf16>, vector<16x256xf32> -> vector<16x256xf32>
    %305 = arith.addf %276, %304 : vector<16x256xf32>
    %c4_i32_132 = arith.constant 4 : i32
    %306 = tpu.dynamic_rotate %270 by %c4_i32_132 dim 0 : vector<16x128xf32>, i32 -> vector<16x128xf32>
    %c-1_i32_133 = arith.constant -1 : i32
    %307 = vector.broadcast %c-1_i32_133 : i32 to vector<16x1xi32>
    %308 = arith.addi %273, %307 : vector<16x1xi32>
    %c0_i32_134 = arith.constant 0 : i32
    %309 = vector.broadcast %c0_i32_134 : i32 to vector<16x1xi32>
    %310 = arith.cmpi sge, %308, %309 : vector<16x1xi32>
    %c-1_i32_135 = arith.constant -1 : i32
    %311 = vector.broadcast %c-1_i32_135 : i32 to vector<16x1xi32>
    %312 = arith.addi %273, %311 : vector<16x1xi32>
    %c4_i32_136 = arith.constant 4 : i32
    %313 = vector.broadcast %c4_i32_136 : i32 to vector<16x1xi32>
    %314 = arith.cmpi slt, %312, %313 : vector<16x1xi32>
    %315 = arith.andi %310, %314 : vector<16x1xi1>
    %c0_i32_137 = arith.constant 0 : i32
    %316 = vector.broadcast %c0_i32_137 : i32 to vector<16x1xi32>
    %317 = arith.addi %275, %316 : vector<16x1xi32>
    %c0_i32_138 = arith.constant 0 : i32
    %318 = vector.broadcast %c0_i32_138 : i32 to vector<16x1xi32>
    %319 = arith.cmpi sge, %317, %318 : vector<16x1xi32>
    %320 = arith.andi %315, %319 : vector<16x1xi1>
    %c0_i32_139 = arith.constant 0 : i32
    %321 = vector.broadcast %c0_i32_139 : i32 to vector<16x1xi32>
    %322 = arith.addi %275, %321 : vector<16x1xi32>
    %c4_i32_140 = arith.constant 4 : i32
    %323 = vector.broadcast %c4_i32_140 : i32 to vector<16x1xi32>
    %324 = arith.cmpi slt, %322, %323 : vector<16x1xi32>
    %325 = arith.andi %320, %324 : vector<16x1xi1>
    %cst_141 = arith.constant 0.000000e+00 : f32
    %326 = vector.shape_cast %325 : vector<16x1xi1> to vector<16x1xi1>
    %327 = vector.broadcast %326 : vector<16x1xi1> to vector<16x128xi1>
    %328 = vector.broadcast %cst_141 : f32 to vector<16x128xf32>
    %329 = arith.select %327, %306, %328 : vector<16x128xi1>, vector<16x128xf32>
    %330 = arith.truncf %329 : vector<16x128xf32> to vector<16x128xbf16>
    %c1_142 = arith.constant 1 : index
    %c0_143 = arith.constant 0 : index
    %c0_144 = arith.constant 0 : index
    %331 = vector.load %arg8[%c1_142, %c0_143, %c0_144] : memref<9x128x256xbf16, #tpu.memory_space<vmem>>, vector<1x128x256xbf16>
    %332 = vector.shape_cast %331 : vector<1x128x256xbf16> to vector<128x256xbf16>
    %cst_145 = arith.constant dense<0.000000e+00> : vector<16x256xf32>
    %333 = tpu.matmul %330, %332, %cst_145 {dimension_numbers = #tpu.dot_dimension_numbers<[1], [0], [0], [1], [0, 0, 1, 1], [], []>} : vector<16x128xbf16>, vector<128x256xbf16>, vector<16x256xf32> -> vector<16x256xf32>
    %334 = arith.addf %305, %333 : vector<16x256xf32>
    %c3_i32_146 = arith.constant 3 : i32
    %335 = tpu.dynamic_rotate %270 by %c3_i32_146 dim 0 : vector<16x128xf32>, i32 -> vector<16x128xf32>
    %c-1_i32_147 = arith.constant -1 : i32
    %336 = vector.broadcast %c-1_i32_147 : i32 to vector<16x1xi32>
    %337 = arith.addi %273, %336 : vector<16x1xi32>
    %c0_i32_148 = arith.constant 0 : i32
    %338 = vector.broadcast %c0_i32_148 : i32 to vector<16x1xi32>
    %339 = arith.cmpi sge, %337, %338 : vector<16x1xi32>
    %c-1_i32_149 = arith.constant -1 : i32
    %340 = vector.broadcast %c-1_i32_149 : i32 to vector<16x1xi32>
    %341 = arith.addi %273, %340 : vector<16x1xi32>
    %c4_i32_150 = arith.constant 4 : i32
    %342 = vector.broadcast %c4_i32_150 : i32 to vector<16x1xi32>
    %343 = arith.cmpi slt, %341, %342 : vector<16x1xi32>
    %344 = arith.andi %339, %343 : vector<16x1xi1>
    %c1_i32_151 = arith.constant 1 : i32
    %345 = vector.broadcast %c1_i32_151 : i32 to vector<16x1xi32>
    %346 = arith.addi %275, %345 : vector<16x1xi32>
    %c0_i32_152 = arith.constant 0 : i32
    %347 = vector.broadcast %c0_i32_152 : i32 to vector<16x1xi32>
    %348 = arith.cmpi sge, %346, %347 : vector<16x1xi32>
    %349 = arith.andi %344, %348 : vector<16x1xi1>
    %c1_i32_153 = arith.constant 1 : i32
    %350 = vector.broadcast %c1_i32_153 : i32 to vector<16x1xi32>
    %351 = arith.addi %275, %350 : vector<16x1xi32>
    %c4_i32_154 = arith.constant 4 : i32
    %352 = vector.broadcast %c4_i32_154 : i32 to vector<16x1xi32>
    %353 = arith.cmpi slt, %351, %352 : vector<16x1xi32>
    %354 = arith.andi %349, %353 : vector<16x1xi1>
    %cst_155 = arith.constant 0.000000e+00 : f32
    %355 = vector.shape_cast %354 : vector<16x1xi1> to vector<16x1xi1>
    %356 = vector.broadcast %355 : vector<16x1xi1> to vector<16x128xi1>
    %357 = vector.broadcast %cst_155 : f32 to vector<16x128xf32>
    %358 = arith.select %356, %335, %357 : vector<16x128xi1>, vector<16x128xf32>
    %359 = arith.truncf %358 : vector<16x128xf32> to vector<16x128xbf16>
    %c2_156 = arith.constant 2 : index
    %c0_157 = arith.constant 0 : index
    %c0_158 = arith.constant 0 : index
    %360 = vector.load %arg8[%c2_156, %c0_157, %c0_158] : memref<9x128x256xbf16, #tpu.memory_space<vmem>>, vector<1x128x256xbf16>
    %361 = vector.shape_cast %360 : vector<1x128x256xbf16> to vector<128x256xbf16>
    %cst_159 = arith.constant dense<0.000000e+00> : vector<16x256xf32>
    %362 = tpu.matmul %359, %361, %cst_159 {dimension_numbers = #tpu.dot_dimension_numbers<[1], [0], [0], [1], [0, 0, 1, 1], [], []>} : vector<16x128xbf16>, vector<128x256xbf16>, vector<16x256xf32> -> vector<16x256xf32>
    %363 = arith.addf %334, %362 : vector<16x256xf32>
    %c1_i32_160 = arith.constant 1 : i32
    %364 = tpu.dynamic_rotate %270 by %c1_i32_160 dim 0 : vector<16x128xf32>, i32 -> vector<16x128xf32>
    %c0_i32_161 = arith.constant 0 : i32
    %365 = vector.broadcast %c0_i32_161 : i32 to vector<16x1xi32>
    %366 = arith.addi %273, %365 : vector<16x1xi32>
    %c0_i32_162 = arith.constant 0 : i32
    %367 = vector.broadcast %c0_i32_162 : i32 to vector<16x1xi32>
    %368 = arith.cmpi sge, %366, %367 : vector<16x1xi32>
    %c0_i32_163 = arith.constant 0 : i32
    %369 = vector.broadcast %c0_i32_163 : i32 to vector<16x1xi32>
    %370 = arith.addi %273, %369 : vector<16x1xi32>
    %c4_i32_164 = arith.constant 4 : i32
    %371 = vector.broadcast %c4_i32_164 : i32 to vector<16x1xi32>
    %372 = arith.cmpi slt, %370, %371 : vector<16x1xi32>
    %373 = arith.andi %368, %372 : vector<16x1xi1>
    %c-1_i32_165 = arith.constant -1 : i32
    %374 = vector.broadcast %c-1_i32_165 : i32 to vector<16x1xi32>
    %375 = arith.addi %275, %374 : vector<16x1xi32>
    %c0_i32_166 = arith.constant 0 : i32
    %376 = vector.broadcast %c0_i32_166 : i32 to vector<16x1xi32>
    %377 = arith.cmpi sge, %375, %376 : vector<16x1xi32>
    %378 = arith.andi %373, %377 : vector<16x1xi1>
    %c-1_i32_167 = arith.constant -1 : i32
    %379 = vector.broadcast %c-1_i32_167 : i32 to vector<16x1xi32>
    %380 = arith.addi %275, %379 : vector<16x1xi32>
    %c4_i32_168 = arith.constant 4 : i32
    %381 = vector.broadcast %c4_i32_168 : i32 to vector<16x1xi32>
    %382 = arith.cmpi slt, %380, %381 : vector<16x1xi32>
    %383 = arith.andi %378, %382 : vector<16x1xi1>
    %cst_169 = arith.constant 0.000000e+00 : f32
    %384 = vector.shape_cast %383 : vector<16x1xi1> to vector<16x1xi1>
    %385 = vector.broadcast %384 : vector<16x1xi1> to vector<16x128xi1>
    %386 = vector.broadcast %cst_169 : f32 to vector<16x128xf32>
    %387 = arith.select %385, %364, %386 : vector<16x128xi1>, vector<16x128xf32>
    %388 = arith.truncf %387 : vector<16x128xf32> to vector<16x128xbf16>
    %c3_170 = arith.constant 3 : index
    %c0_171 = arith.constant 0 : index
    %c0_172 = arith.constant 0 : index
    %389 = vector.load %arg8[%c3_170, %c0_171, %c0_172] : memref<9x128x256xbf16, #tpu.memory_space<vmem>>, vector<1x128x256xbf16>
    %390 = vector.shape_cast %389 : vector<1x128x256xbf16> to vector<128x256xbf16>
    %cst_173 = arith.constant dense<0.000000e+00> : vector<16x256xf32>
    %391 = tpu.matmul %388, %390, %cst_173 {dimension_numbers = #tpu.dot_dimension_numbers<[1], [0], [0], [1], [0, 0, 1, 1], [], []>} : vector<16x128xbf16>, vector<128x256xbf16>, vector<16x256xf32> -> vector<16x256xf32>
    %392 = arith.addf %363, %391 : vector<16x256xf32>
    %393 = arith.truncf %270 : vector<16x128xf32> to vector<16x128xbf16>
    %c4_174 = arith.constant 4 : index
    %c0_175 = arith.constant 0 : index
    %c0_176 = arith.constant 0 : index
    %394 = vector.load %arg8[%c4_174, %c0_175, %c0_176] : memref<9x128x256xbf16, #tpu.memory_space<vmem>>, vector<1x128x256xbf16>
    %395 = vector.shape_cast %394 : vector<1x128x256xbf16> to vector<128x256xbf16>
    %cst_177 = arith.constant dense<0.000000e+00> : vector<16x256xf32>
    %396 = tpu.matmul %393, %395, %cst_177 {dimension_numbers = #tpu.dot_dimension_numbers<[1], [0], [0], [1], [0, 0, 1, 1], [], []>} : vector<16x128xbf16>, vector<128x256xbf16>, vector<16x256xf32> -> vector<16x256xf32>
    %397 = arith.addf %392, %396 : vector<16x256xf32>
    %c15_i32 = arith.constant 15 : i32
    %398 = tpu.dynamic_rotate %270 by %c15_i32 dim 0 : vector<16x128xf32>, i32 -> vector<16x128xf32>
    %c0_i32_178 = arith.constant 0 : i32
    %399 = vector.broadcast %c0_i32_178 : i32 to vector<16x1xi32>
    %400 = arith.addi %273, %399 : vector<16x1xi32>
    %c0_i32_179 = arith.constant 0 : i32
    %401 = vector.broadcast %c0_i32_179 : i32 to vector<16x1xi32>
    %402 = arith.cmpi sge, %400, %401 : vector<16x1xi32>
    %c0_i32_180 = arith.constant 0 : i32
    %403 = vector.broadcast %c0_i32_180 : i32 to vector<16x1xi32>
    %404 = arith.addi %273, %403 : vector<16x1xi32>
    %c4_i32_181 = arith.constant 4 : i32
    %405 = vector.broadcast %c4_i32_181 : i32 to vector<16x1xi32>
    %406 = arith.cmpi slt, %404, %405 : vector<16x1xi32>
    %407 = arith.andi %402, %406 : vector<16x1xi1>
    %c1_i32_182 = arith.constant 1 : i32
    %408 = vector.broadcast %c1_i32_182 : i32 to vector<16x1xi32>
    %409 = arith.addi %275, %408 : vector<16x1xi32>
    %c0_i32_183 = arith.constant 0 : i32
    %410 = vector.broadcast %c0_i32_183 : i32 to vector<16x1xi32>
    %411 = arith.cmpi sge, %409, %410 : vector<16x1xi32>
    %412 = arith.andi %407, %411 : vector<16x1xi1>
    %c1_i32_184 = arith.constant 1 : i32
    %413 = vector.broadcast %c1_i32_184 : i32 to vector<16x1xi32>
    %414 = arith.addi %275, %413 : vector<16x1xi32>
    %c4_i32_185 = arith.constant 4 : i32
    %415 = vector.broadcast %c4_i32_185 : i32 to vector<16x1xi32>
    %416 = arith.cmpi slt, %414, %415 : vector<16x1xi32>
    %417 = arith.andi %412, %416 : vector<16x1xi1>
    %cst_186 = arith.constant 0.000000e+00 : f32
    %418 = vector.shape_cast %417 : vector<16x1xi1> to vector<16x1xi1>
    %419 = vector.broadcast %418 : vector<16x1xi1> to vector<16x128xi1>
    %420 = vector.broadcast %cst_186 : f32 to vector<16x128xf32>
    %421 = arith.select %419, %398, %420 : vector<16x128xi1>, vector<16x128xf32>
    %422 = arith.truncf %421 : vector<16x128xf32> to vector<16x128xbf16>
    %c5_187 = arith.constant 5 : index
    %c0_188 = arith.constant 0 : index
    %c0_189 = arith.constant 0 : index
    %423 = vector.load %arg8[%c5_187, %c0_188, %c0_189] : memref<9x128x256xbf16, #tpu.memory_space<vmem>>, vector<1x128x256xbf16>
    %424 = vector.shape_cast %423 : vector<1x128x256xbf16> to vector<128x256xbf16>
    %cst_190 = arith.constant dense<0.000000e+00> : vector<16x256xf32>
    %425 = tpu.matmul %422, %424, %cst_190 {dimension_numbers = #tpu.dot_dimension_numbers<[1], [0], [0], [1], [0, 0, 1, 1], [], []>} : vector<16x128xbf16>, vector<128x256xbf16>, vector<16x256xf32> -> vector<16x256xf32>
    %426 = arith.addf %397, %425 : vector<16x256xf32>
    %c13_i32 = arith.constant 13 : i32
    %427 = tpu.dynamic_rotate %270 by %c13_i32 dim 0 : vector<16x128xf32>, i32 -> vector<16x128xf32>
    %c1_i32_191 = arith.constant 1 : i32
    %428 = vector.broadcast %c1_i32_191 : i32 to vector<16x1xi32>
    %429 = arith.addi %273, %428 : vector<16x1xi32>
    %c0_i32_192 = arith.constant 0 : i32
    %430 = vector.broadcast %c0_i32_192 : i32 to vector<16x1xi32>
    %431 = arith.cmpi sge, %429, %430 : vector<16x1xi32>
    %c1_i32_193 = arith.constant 1 : i32
    %432 = vector.broadcast %c1_i32_193 : i32 to vector<16x1xi32>
    %433 = arith.addi %273, %432 : vector<16x1xi32>
    %c4_i32_194 = arith.constant 4 : i32
    %434 = vector.broadcast %c4_i32_194 : i32 to vector<16x1xi32>
    %435 = arith.cmpi slt, %433, %434 : vector<16x1xi32>
    %436 = arith.andi %431, %435 : vector<16x1xi1>
    %c-1_i32_195 = arith.constant -1 : i32
    %437 = vector.broadcast %c-1_i32_195 : i32 to vector<16x1xi32>
    %438 = arith.addi %275, %437 : vector<16x1xi32>
    %c0_i32_196 = arith.constant 0 : i32
    %439 = vector.broadcast %c0_i32_196 : i32 to vector<16x1xi32>
    %440 = arith.cmpi sge, %438, %439 : vector<16x1xi32>
    %441 = arith.andi %436, %440 : vector<16x1xi1>
    %c-1_i32_197 = arith.constant -1 : i32
    %442 = vector.broadcast %c-1_i32_197 : i32 to vector<16x1xi32>
    %443 = arith.addi %275, %442 : vector<16x1xi32>
    %c4_i32_198 = arith.constant 4 : i32
    %444 = vector.broadcast %c4_i32_198 : i32 to vector<16x1xi32>
    %445 = arith.cmpi slt, %443, %444 : vector<16x1xi32>
    %446 = arith.andi %441, %445 : vector<16x1xi1>
    %cst_199 = arith.constant 0.000000e+00 : f32
    %447 = vector.shape_cast %446 : vector<16x1xi1> to vector<16x1xi1>
    %448 = vector.broadcast %447 : vector<16x1xi1> to vector<16x128xi1>
    %449 = vector.broadcast %cst_199 : f32 to vector<16x128xf32>
    %450 = arith.select %448, %427, %449 : vector<16x128xi1>, vector<16x128xf32>
    %451 = arith.truncf %450 : vector<16x128xf32> to vector<16x128xbf16>
    %c6_200 = arith.constant 6 : index
    %c0_201 = arith.constant 0 : index
    %c0_202 = arith.constant 0 : index
    %452 = vector.load %arg8[%c6_200, %c0_201, %c0_202] : memref<9x128x256xbf16, #tpu.memory_space<vmem>>, vector<1x128x256xbf16>
    %453 = vector.shape_cast %452 : vector<1x128x256xbf16> to vector<128x256xbf16>
    %cst_203 = arith.constant dense<0.000000e+00> : vector<16x256xf32>
    %454 = tpu.matmul %451, %453, %cst_203 {dimension_numbers = #tpu.dot_dimension_numbers<[1], [0], [0], [1], [0, 0, 1, 1], [], []>} : vector<16x128xbf16>, vector<128x256xbf16>, vector<16x256xf32> -> vector<16x256xf32>
    %455 = arith.addf %426, %454 : vector<16x256xf32>
    %c12_i32 = arith.constant 12 : i32
    %456 = tpu.dynamic_rotate %270 by %c12_i32 dim 0 : vector<16x128xf32>, i32 -> vector<16x128xf32>
    %c1_i32_204 = arith.constant 1 : i32
    %457 = vector.broadcast %c1_i32_204 : i32 to vector<16x1xi32>
    %458 = arith.addi %273, %457 : vector<16x1xi32>
    %c0_i32_205 = arith.constant 0 : i32
    %459 = vector.broadcast %c0_i32_205 : i32 to vector<16x1xi32>
    %460 = arith.cmpi sge, %458, %459 : vector<16x1xi32>
    %c1_i32_206 = arith.constant 1 : i32
    %461 = vector.broadcast %c1_i32_206 : i32 to vector<16x1xi32>
    %462 = arith.addi %273, %461 : vector<16x1xi32>
    %c4_i32_207 = arith.constant 4 : i32
    %463 = vector.broadcast %c4_i32_207 : i32 to vector<16x1xi32>
    %464 = arith.cmpi slt, %462, %463 : vector<16x1xi32>
    %465 = arith.andi %460, %464 : vector<16x1xi1>
    %c0_i32_208 = arith.constant 0 : i32
    %466 = vector.broadcast %c0_i32_208 : i32 to vector<16x1xi32>
    %467 = arith.addi %275, %466 : vector<16x1xi32>
    %c0_i32_209 = arith.constant 0 : i32
    %468 = vector.broadcast %c0_i32_209 : i32 to vector<16x1xi32>
    %469 = arith.cmpi sge, %467, %468 : vector<16x1xi32>
    %470 = arith.andi %465, %469 : vector<16x1xi1>
    %c0_i32_210 = arith.constant 0 : i32
    %471 = vector.broadcast %c0_i32_210 : i32 to vector<16x1xi32>
    %472 = arith.addi %275, %471 : vector<16x1xi32>
    %c4_i32_211 = arith.constant 4 : i32
    %473 = vector.broadcast %c4_i32_211 : i32 to vector<16x1xi32>
    %474 = arith.cmpi slt, %472, %473 : vector<16x1xi32>
    %475 = arith.andi %470, %474 : vector<16x1xi1>
    %cst_212 = arith.constant 0.000000e+00 : f32
    %476 = vector.shape_cast %475 : vector<16x1xi1> to vector<16x1xi1>
    %477 = vector.broadcast %476 : vector<16x1xi1> to vector<16x128xi1>
    %478 = vector.broadcast %cst_212 : f32 to vector<16x128xf32>
    %479 = arith.select %477, %456, %478 : vector<16x128xi1>, vector<16x128xf32>
    %480 = arith.truncf %479 : vector<16x128xf32> to vector<16x128xbf16>
    %c7_213 = arith.constant 7 : index
    %c0_214 = arith.constant 0 : index
    %c0_215 = arith.constant 0 : index
    %481 = vector.load %arg8[%c7_213, %c0_214, %c0_215] : memref<9x128x256xbf16, #tpu.memory_space<vmem>>, vector<1x128x256xbf16>
    %482 = vector.shape_cast %481 : vector<1x128x256xbf16> to vector<128x256xbf16>
    %cst_216 = arith.constant dense<0.000000e+00> : vector<16x256xf32>
    %483 = tpu.matmul %480, %482, %cst_216 {dimension_numbers = #tpu.dot_dimension_numbers<[1], [0], [0], [1], [0, 0, 1, 1], [], []>} : vector<16x128xbf16>, vector<128x256xbf16>, vector<16x256xf32> -> vector<16x256xf32>
    %484 = arith.addf %455, %483 : vector<16x256xf32>
    %c11_i32 = arith.constant 11 : i32
    %485 = tpu.dynamic_rotate %270 by %c11_i32 dim 0 : vector<16x128xf32>, i32 -> vector<16x128xf32>
    %c1_i32_217 = arith.constant 1 : i32
    %486 = vector.broadcast %c1_i32_217 : i32 to vector<16x1xi32>
    %487 = arith.addi %273, %486 : vector<16x1xi32>
    %c0_i32_218 = arith.constant 0 : i32
    %488 = vector.broadcast %c0_i32_218 : i32 to vector<16x1xi32>
    %489 = arith.cmpi sge, %487, %488 : vector<16x1xi32>
    %c1_i32_219 = arith.constant 1 : i32
    %490 = vector.broadcast %c1_i32_219 : i32 to vector<16x1xi32>
    %491 = arith.addi %273, %490 : vector<16x1xi32>
    %c4_i32_220 = arith.constant 4 : i32
    %492 = vector.broadcast %c4_i32_220 : i32 to vector<16x1xi32>
    %493 = arith.cmpi slt, %491, %492 : vector<16x1xi32>
    %494 = arith.andi %489, %493 : vector<16x1xi1>
    %c1_i32_221 = arith.constant 1 : i32
    %495 = vector.broadcast %c1_i32_221 : i32 to vector<16x1xi32>
    %496 = arith.addi %275, %495 : vector<16x1xi32>
    %c0_i32_222 = arith.constant 0 : i32
    %497 = vector.broadcast %c0_i32_222 : i32 to vector<16x1xi32>
    %498 = arith.cmpi sge, %496, %497 : vector<16x1xi32>
    %499 = arith.andi %494, %498 : vector<16x1xi1>
    %c1_i32_223 = arith.constant 1 : i32
    %500 = vector.broadcast %c1_i32_223 : i32 to vector<16x1xi32>
    %501 = arith.addi %275, %500 : vector<16x1xi32>
    %c4_i32_224 = arith.constant 4 : i32
    %502 = vector.broadcast %c4_i32_224 : i32 to vector<16x1xi32>
    %503 = arith.cmpi slt, %501, %502 : vector<16x1xi32>
    %504 = arith.andi %499, %503 : vector<16x1xi1>
    %cst_225 = arith.constant 0.000000e+00 : f32
    %505 = vector.shape_cast %504 : vector<16x1xi1> to vector<16x1xi1>
    %506 = vector.broadcast %505 : vector<16x1xi1> to vector<16x128xi1>
    %507 = vector.broadcast %cst_225 : f32 to vector<16x128xf32>
    %508 = arith.select %506, %485, %507 : vector<16x128xi1>, vector<16x128xf32>
    %509 = arith.truncf %508 : vector<16x128xf32> to vector<16x128xbf16>
    %c8_226 = arith.constant 8 : index
    %c0_227 = arith.constant 0 : index
    %c0_228 = arith.constant 0 : index
    %510 = vector.load %arg8[%c8_226, %c0_227, %c0_228] : memref<9x128x256xbf16, #tpu.memory_space<vmem>>, vector<1x128x256xbf16>
    %511 = vector.shape_cast %510 : vector<1x128x256xbf16> to vector<128x256xbf16>
    %cst_229 = arith.constant dense<0.000000e+00> : vector<16x256xf32>
    %512 = tpu.matmul %509, %511, %cst_229 {dimension_numbers = #tpu.dot_dimension_numbers<[1], [0], [0], [1], [0, 0, 1, 1], [], []>} : vector<16x128xbf16>, vector<128x256xbf16>, vector<16x256xf32> -> vector<16x256xf32>
    %513 = arith.addf %484, %512 : vector<16x256xf32>
    %c0_230 = arith.constant 0 : index
    %c0_231 = arith.constant 0 : index
    %514 = vector.load %arg9[%c0_230, %c0_231] : memref<1x256xf32, #tpu.memory_space<vmem>>, vector<1x256xf32>
    %515 = vector.broadcast %514 : vector<1x256xf32> to vector<16x256xf32>
    %516 = arith.addf %513, %515 : vector<16x256xf32>
    %cst_232 = arith.constant 0.000000e+00 : f32
    %517 = vector.broadcast %cst_232 : f32 to vector<16x256xf32>
    %518 = arith.maximumf %516, %517 : vector<16x256xf32>
    %c0_233 = arith.constant 0 : index
    %c0_234 = arith.constant 0 : index
    %519 = vector.load %arg10[%c0_233, %c0_234] : memref<4x16xbf16, #tpu.memory_space<vmem>>, vector<4x16xbf16>
    %c15_i32_235 = arith.constant 15 : i32
    %520 = tpu.dynamic_rotate %518 by %c15_i32_235 dim 0 : vector<16x256xf32>, i32 -> vector<16x256xf32>
    %521 = arith.maximumf %518, %520 : vector<16x256xf32>
    %c12_i32_236 = arith.constant 12 : i32
    %522 = tpu.dynamic_rotate %521 by %c12_i32_236 dim 0 : vector<16x256xf32>, i32 -> vector<16x256xf32>
    %523 = arith.maximumf %521, %522 : vector<16x256xf32>
    %524 = arith.truncf %523 : vector<16x256xf32> to vector<16x256xbf16>
    %cst_237 = arith.constant dense<0.000000e+00> : vector<4x256xf32>
    %525 = tpu.matmul %519, %524, %cst_237 {dimension_numbers = #tpu.dot_dimension_numbers<[1], [0], [0], [1], [0, 0, 1, 1], [], []>} : vector<4x16xbf16>, vector<16x256xbf16>, vector<4x256xf32> -> vector<4x256xf32>
    %cst_238 = arith.constant dense<0.000000e+00> : vector<256xf32>
    %526 = vector.multi_reduction <add>, %525, %cst_238 [0] : vector<4x256xf32> to vector<256xf32>
    %527 = vector.shape_cast %526 : vector<256xf32> to vector<1x256xf32>
    %cst_239 = arith.constant 4.000000e+00 : f32
    %528 = vector.broadcast %cst_239 : f32 to vector<1x256xf32>
    %529 = arith.divf %527, %528 : vector<1x256xf32>
    %530 = arith.truncf %529 : vector<1x256xf32> to vector<1x256xbf16>
    %c0_240 = arith.constant 0 : index
    %c0_241 = arith.constant 0 : index
    %531 = vector.load %arg11[%c0_240, %c0_241] : memref<256x256xbf16, #tpu.memory_space<vmem>>, vector<256x256xbf16>
    %cst_242 = arith.constant dense<0.000000e+00> : vector<1x256xf32>
    %532 = tpu.matmul %530, %531, %cst_242 {dimension_numbers = #tpu.dot_dimension_numbers<[1], [0], [0], [1], [0, 0, 1, 1], [], []>} : vector<1x256xbf16>, vector<256x256xbf16>, vector<1x256xf32> -> vector<1x256xf32>
    %c0_243 = arith.constant 0 : index
    %c0_244 = arith.constant 0 : index
    %533 = vector.load %arg12[%c0_243, %c0_244] : memref<1x256xf32, #tpu.memory_space<vmem>>, vector<1x256xf32>
    %534 = arith.addf %532, %533 : vector<1x256xf32>
    %cst_245 = arith.constant 0.000000e+00 : f32
    %535 = vector.broadcast %cst_245 : f32 to vector<1x256xf32>
    %536 = arith.maximumf %534, %535 : vector<1x256xf32>
    %537 = arith.truncf %536 : vector<1x256xf32> to vector<1x256xbf16>
    %c0_246 = arith.constant 0 : index
    %c0_247 = arith.constant 0 : index
    %538 = vector.load %arg13[%c0_246, %c0_247] : memref<256x256xbf16, #tpu.memory_space<vmem>>, vector<256x256xbf16>
    %cst_248 = arith.constant dense<0.000000e+00> : vector<1x256xf32>
    %539 = tpu.matmul %537, %538, %cst_248 {dimension_numbers = #tpu.dot_dimension_numbers<[1], [0], [0], [1], [0, 0, 1, 1], [], []>} : vector<1x256xbf16>, vector<256x256xbf16>, vector<1x256xf32> -> vector<1x256xf32>
    %c0_249 = arith.constant 0 : index
    %c0_250 = arith.constant 0 : index
    %540 = vector.load %arg14[%c0_249, %c0_250] : memref<1x256xf32, #tpu.memory_space<vmem>>, vector<1x256xf32>
    %541 = arith.addf %539, %540 : vector<1x256xf32>
    %cst_251 = arith.constant 0.000000e+00 : f32
    %542 = vector.broadcast %cst_251 : f32 to vector<1x256xf32>
    %543 = arith.maximumf %541, %542 : vector<1x256xf32>
    %544 = arith.truncf %543 : vector<1x256xf32> to vector<1x256xbf16>
    %c0_252 = arith.constant 0 : index
    %c0_253 = arith.constant 0 : index
    %545 = vector.load %arg15[%c0_252, %c0_253] : memref<256x10xbf16, #tpu.memory_space<vmem>>, vector<256x10xbf16>
    %cst_254 = arith.constant dense<0.000000e+00> : vector<1x10xf32>
    %546 = tpu.matmul %544, %545, %cst_254 {dimension_numbers = #tpu.dot_dimension_numbers<[1], [0], [0], [1], [0, 0, 1, 1], [], []>} : vector<1x256xbf16>, vector<256x10xbf16>, vector<1x10xf32> -> vector<1x10xf32>
    %c0_255 = arith.constant 0 : index
    %c0_256 = arith.constant 0 : index
    %547 = vector.load %arg16[%c0_255, %c0_256] : memref<1x10xf32, #tpu.memory_space<vmem>>, vector<1x10xf32>
    %548 = arith.addf %546, %547 : vector<1x10xf32>
    %549 = vector.shape_cast %548 : vector<1x10xf32> to vector<1x1x10xf32>
    %c0_257 = arith.constant 0 : index
    %c0_258 = arith.constant 0 : index
    %c0_259 = arith.constant 0 : index
    %550 = vector.load %arg17[%c0_257, %c0_258, %c0_259] : memref<1x1x10xf32, #tpu.memory_space<vmem>>, vector<1x1x10xf32>
    tpu.vector_store %arg17[%c0_257, %c0_258, %c0_259], %549 {strides = array<i32>} : memref<1x1x10xf32, #tpu.memory_space<vmem>>, vector<1x1x10xf32>,
    return
  }
  func.func @transform_0(%arg0: i32) -> (i32, i32, i32) {
    %c0_i32 = arith.constant 0 : i32
    %c0_i32_0 = arith.constant 0 : i32
    %c0_i32_1 = arith.constant 0 : i32
    return %arg0, %c0_i32, %c0_i32_0 : i32, i32, i32
  }
  func.func @transform_1(%arg0: i32) -> (i32, i32) {
    %c0_i32 = arith.constant 0 : i32
    %c0_i32_0 = arith.constant 0 : i32
    %c0_i32_1 = arith.constant 0 : i32
    return %c0_i32, %c0_i32_0 : i32, i32
  }
  func.func @transform_2(%arg0: i32) -> (i32, i32) {
    %c0_i32 = arith.constant 0 : i32
    %c0_i32_0 = arith.constant 0 : i32
    %c0_i32_1 = arith.constant 0 : i32
    return %c0_i32, %c0_i32_0 : i32, i32
  }
  func.func @transform_3(%arg0: i32) -> (i32, i32) {
    %c0_i32 = arith.constant 0 : i32
    %c0_i32_0 = arith.constant 0 : i32
    %c0_i32_1 = arith.constant 0 : i32
    return %c0_i32, %c0_i32_0 : i32, i32
  }
  func.func @transform_4(%arg0: i32) -> (i32, i32, i32) {
    %c0_i32 = arith.constant 0 : i32
    %c0_i32_0 = arith.constant 0 : i32
    %c0_i32_1 = arith.constant 0 : i32
    %c0_i32_2 = arith.constant 0 : i32
    return %c0_i32, %c0_i32_0, %c0_i32_1 : i32, i32, i32
  }
  func.func @transform_5(%arg0: i32) -> (i32, i32) {
    %c0_i32 = arith.constant 0 : i32
    %c0_i32_0 = arith.constant 0 : i32
    %c0_i32_1 = arith.constant 0 : i32
    return %c0_i32, %c0_i32_0 : i32, i32
  }
  func.func @transform_6(%arg0: i32) -> (i32, i32) {
    %c0_i32 = arith.constant 0 : i32
    %c0_i32_0 = arith.constant 0 : i32
    %c0_i32_1 = arith.constant 0 : i32
    return %c0_i32, %c0_i32_0 : i32, i32
  }
  func.func @transform_7(%arg0: i32) -> (i32, i32, i32) {
    %c0_i32 = arith.constant 0 : i32
    %c0_i32_0 = arith.constant 0 : i32
    %c0_i32_1 = arith.constant 0 : i32
    %c0_i32_2 = arith.constant 0 : i32
    return %c0_i32, %c0_i32_0, %c0_i32_1 : i32, i32, i32
  }
  func.func @transform_8(%arg0: i32) -> (i32, i32) {
    %c0_i32 = arith.constant 0 : i32
    %c0_i32_0 = arith.constant 0 : i32
    %c0_i32_1 = arith.constant 0 : i32
    return %c0_i32, %c0_i32_0 : i32, i32
  }
  func.func @transform_9(%arg0: i32) -> (i32, i32) {
    %c0_i32 = arith.constant 0 : i32
    %c0_i32_0 = arith.constant 0 : i32
    %c0_i32_1 = arith.constant 0 : i32
    return %c0_i32, %c0_i32_0 : i32, i32
  }
  func.func @transform_10(%arg0: i32) -> (i32, i32) {
    %c0_i32 = arith.constant 0 : i32
    %c0_i32_0 = arith.constant 0 : i32
    %c0_i32_1 = arith.constant 0 : i32
    return %c0_i32, %c0_i32_0 : i32, i32
  }
  func.func @transform_11(%arg0: i32) -> (i32, i32) {
    %c0_i32 = arith.constant 0 : i32
    %c0_i32_0 = arith.constant 0 : i32
    %c0_i32_1 = arith.constant 0 : i32
    return %c0_i32, %c0_i32_0 : i32, i32
  }
  func.func @transform_12(%arg0: i32) -> (i32, i32) {
    %c0_i32 = arith.constant 0 : i32
    %c0_i32_0 = arith.constant 0 : i32
    %c0_i32_1 = arith.constant 0 : i32
    return %c0_i32, %c0_i32_0 : i32, i32
  }
  func.func @transform_13(%arg0: i32) -> (i32, i32) {
    %c0_i32 = arith.constant 0 : i32
    %c0_i32_0 = arith.constant 0 : i32
    %c0_i32_1 = arith.constant 0 : i32
    return %c0_i32, %c0_i32_0 : i32, i32
  }
  func.func @transform_14(%arg0: i32) -> (i32, i32) {
    %c0_i32 = arith.constant 0 : i32
    %c0_i32_0 = arith.constant 0 : i32
    %c0_i32_1 = arith.constant 0 : i32
    return %c0_i32, %c0_i32_0 : i32, i32
  }
  func.func @transform_15(%arg0: i32) -> (i32, i32) {
    %c0_i32 = arith.constant 0 : i32
    %c0_i32_0 = arith.constant 0 : i32
    %c0_i32_1 = arith.constant 0 : i32
    return %c0_i32, %c0_i32_0 : i32, i32
  }
  func.func @transform_16(%arg0: i32) -> (i32, i32, i32) {
    %c0_i32 = arith.constant 0 : i32
    %c0_i32_0 = arith.constant 0 : i32
    %c0_i32_1 = arith.constant 0 : i32
    return %arg0, %c0_i32, %c0_i32_0 : i32, i32, i32
  }
}

</mosaic_0001>

<llo_original>
// kernel: vgg_light_256_forward.1
$region0: #{vgg_light_256_forward.1}
  #allocation0 [shape = 'u32[]', space=smem, size = 0x4, offset = 0x4, fixed_abs, tag = 'smem constant byte address 0x4 - core index']
  #allocation1 [shape = 'u32[72,128]{1,0:T(1,128)}', space=vmem, size = 0x9000, scoped, tag = 'internal scratch']
  %s0 = inlined_call_operand.vmem [shape: bf16[2,256,32], index: 0, kind: input, shape index: {}]
  %s1 = inlined_call_operand.hbm [shape: bf16[32,128], index: 1, kind: input, shape index: {}]
  %s2 = inlined_call_operand.vmem [shape: f32[1,128], index: 2, kind: input, shape index: {}]
  %s3 = inlined_call_operand.vmem [shape: bf16[64,256], index: 3, kind: input, shape index: {}]
  %s4 = inlined_call_operand.vmem [shape: bf16[9,128,128], index: 4, kind: input, shape index: {}]
  %s5 = inlined_call_operand.hbm [shape: f32[1,128], index: 5, kind: input, shape index: {}]
  %s6 = inlined_call_operand.vmem [shape: bf16[16,64], index: 6, kind: input, shape index: {}]
  %s7 = inlined_call_operand.vmem [shape: bf16[9,128,256], index: 7, kind: input, shape index: {}]
  %s8 = inlined_call_operand.hbm [shape: f32[1,256], index: 8, kind: input, shape index: {}]
  %s9 = inlined_call_operand.hbm [shape: bf16[4,16], index: 9, kind: input, shape index: {}]
  %s10 = inlined_call_operand.vmem [shape: bf16[256,256], index: 10, kind: input, shape index: {}]
  %s11 = inlined_call_operand.hbm [shape: f32[1,256], index: 11, kind: input, shape index: {}]
  %s12 = inlined_call_operand.vmem [shape: bf16[256,256], index: 12, kind: input, shape index: {}]
  %s13 = inlined_call_operand.hbm [shape: f32[1,256], index: 13, kind: input, shape index: {}]
  %s14 = inlined_call_operand.vmem [shape: bf16[256,10], index: 14, kind: input, shape index: {}]
  %s15 = inlined_call_operand.hbm [shape: f32[1,10], index: 15, kind: input, shape index: {}]
  %s16 = inlined_call_operand.hbm [shape: f32[2,1,10], index: 16, kind: output, shape index: {}]
  %s17 = sld [smem:[#allocation0]]
  $region125: #{vgg_light_256_forward.1} parent=0
    _
  %s19 = ssub.s32 1, %s17
  %s20 = scalar_select 0, %s19, %s17
  $region1: #{vgg_light_256_forward.1} parent=0
    #allocation2 [shape = 'u8[8192]{0}', space=vmem, size = 0x2000, scoped, tag = 'input window, operand 1, single buffered']
    #allocation3 [shape = 's32[2]{0}', space=sflag, size = 0x8, scoped, tag = 'scoped memory for vgg_light_256_forward.1']
    #allocation4 [shape = 's32[2]{0}', space=sflag, size = 0x8, scoped, tag = 'scoped memory for vgg_light_256_forward.1']
    #allocation5 [shape = 'u8[512]{0}', space=vmem, size = 0x400, scoped, tag = 'input window, operand 5, single buffered']
    #allocation6 [shape = 's32[1]{0}', space=sflag, size = 0x4, scoped, tag = 'scoped memory for vgg_light_256_forward.1']
    #allocation7 [shape = 'u8[1024]{0}', space=vmem, size = 0x400, scoped, tag = 'input window, operand 8, single buffered']
    #allocation8 [shape = 'u8[1024]{0}', space=vmem, size = 0x400, scoped, tag = 'input window, operand 9, single buffered']
    #allocation9 [shape = 's32[1]{0}', space=sflag, size = 0x4, scoped, tag = 'scoped memory for vgg_light_256_forward.1']
    #allocation10 [shape = 'u8[1024]{0}', space=vmem, size = 0x400, scoped, tag = 'input window, operand 11, single buffered']
    #allocation11 [shape = 'u8[1024]{0}', space=vmem, size = 0x400, scoped, tag = 'input window, operand 13, single buffered']
    #allocation12 [shape = 's32[1]{0}', space=sflag, size = 0x4, scoped, tag = 'scoped memory for vgg_light_256_forward.1']
    #allocation13 [shape = 'u8[512]{0}', space=vmem, size = 0x400, scoped, tag = 'input window, operand 15, single buffered']
    #allocation14 [shape = 'u8[1024]{0}', space=vmem, size = 0x400, scoped, tag = 'output window, operand 0']
    %21 = vsyncpa [#allocation3], 0
    %22 = vsyncpa [#allocation6], 0
    %23 = vsyncpa [#allocation9], 0
    %24 = vsyncpa [#allocation12], 0
    %25 = vsyncpa [#allocation4], 0
    %s26 = scalar_lea.sflag [#allocation4], 1
    %27 = vsyncpa %s26, 0
    loop: start=0, step=1, limit=4
    $region2: #{vgg_light_256_forward.1} parent=1 // loop_pre_header
      _
    $region3: #{vgg_light_256_forward.1} parent=1 // loop_header
      %s29 = sphi 0, %s33
      %p30 = scmp.ge.s32.totalorder %s29, 4
      %s39 = sphi 0, %s41
      %s42 = sphi 0, %s39
      %s43 = sphi 0, %s42
      %s59 = sphi 0, %s43
      %s63 = sphi 0, %s63
      %s65 = sphi 0, %s63
      %s66 = sphi 0, %s65
      %s80 = sphi 0, %s66
      %s84 = sphi 0, %s84
      %s86 = sphi 0, %s84
      %s87 = sphi 0, %s86
      %s101 = sphi 0, %s87
      %s105 = sphi 0, %s105
      %s107 = sphi 0, %s105
      %s108 = sphi 0, %s107
      %s122 = sphi 0, %s108
      %s126 = sphi 0, %s126
      %s128 = sphi 0, %s126
      %s129 = sphi 0, %s128
      %s143 = sphi 0, %s129
      %s147 = sphi 0, %s147
      %s149 = sphi 0, %s147
      %s150 = sphi 0, %s149
      %s164 = sphi 0, %s150
      %s168 = sphi 0, %s168
      %s170 = sphi 0, %s168
      %s171 = sphi 0, %s170
      %s185 = sphi 0, %s171
      %s189 = sphi 0, %s189
      %s191 = sphi 0, %s189
      %s192 = sphi 0, %s191
      %s206 = sphi 0, %s192
      %s210 = sphi 0, %s210
      %s212 = sphi 0, %s210
      %s213 = sphi 0, %s212
      %s227 = sphi 0, %s213
      %s231 = sphi 0, %s231
      %s233 = sphi 0, %s231
      %s234 = sphi 0, %s233
      %s248 = sphi 0, %s234
      %s252 = sphi 0, %s252
      %s254 = sphi 0, %s252
      %s255 = sphi 0, %s254
      %s269 = sphi 0, %s255
      %s273 = sphi 0, %s273
      %s275 = sphi 0, %s273
      %s276 = sphi 0, %s275
      %s290 = sphi 0, %s276
      %s294 = sphi 0, %s294
      %s296 = sphi 0, %s294
      %s297 = sphi 0, %s296
      %s311 = sphi 0, %s297
      %s315 = sphi 0, %s315
      %s317 = sphi 0, %s315
      %s318 = sphi 0, %s317
      %s332 = sphi 0, %s318
      %s336 = sphi 0, %s336
      %s338 = sphi 0, %s336
      %s339 = sphi 0, %s338
      %s353 = sphi 0, %s339
      %s357 = sphi 0, %s357
      %s359 = sphi 0, %s357
      %s360 = sphi 0, %s359
      %s374 = sphi 0, %s360
      %s380 = sphi 0, %s382
      %s383 = sphi 0, %s380
      %s384 = sphi 0, %s383
      %s400 = sphi 0, %s384
    $region4: #{vgg_light_256_forward.1} parent=1 // loop_header_branch
      %32 = sbr.rel (%p30) target = $region8
    $region5: #{vgg_light_256_forward.1} parent=1 // loop_body
      %s34 = ssub.s32 %s29, 1
      %s35 = ssub.s32 %s29, 2
      %s36 = sadd.s32 %s29, 1
      %s37 = ssub.s32 %s29, %s36
      %p38 = scmp.eq.s32.totalorder %s37, 0
      %s40 = sadd.s32 %s39, 1
      %s41 = scalar_select %p38, %s39, %s40
      %p44 = pneg %p38
      %p45 = scmp.eq.s32.totalorder %s29, 1
      %p46 = por %p44, %p45
      %p47 = scmp.ne.s32.totalorder %s39, %s42
      %p48 = scmp.eq.s32.totalorder %s29, 0
      %p49 = por %p47, %p48
      %p50 = scmp.ne.s32.totalorder %s39, %s42
      %p51 = scmp.eq.s32.totalorder %s34, 1
      %p52 = por %p50, %p51
      %p53 = scmp.ne.s32.totalorder %s42, %s43
      %p54 = scmp.eq.s32.totalorder %s34, 0
      %p55 = por %p53, %p54
      %p56 = scmp.ne.s32.totalorder %s42, %s43
      %p57 = scmp.eq.s32.totalorder %s35, 1
      %p58 = por %p56, %p57
      %p60 = scmp.ne.s32.totalorder %s43, %s59
      %p61 = scmp.eq.s32.totalorder %s35, 0
      %p62 = por %p60, %p61
      %s64 = sadd.s32 %s63, 1
      %p67 = scmp.eq.s32.totalorder %s29, 1
      %p68 = scmp.ne.s32.totalorder %s63, %s65
      %p69 = scmp.eq.s32.totalorder %s29, 0
      %p70 = por %p68, %p69
      %p71 = scmp.ne.s32.totalorder %s63, %s65
      %p72 = scmp.eq.s32.totalorder %s34, 1
      %p73 = por %p71, %p72
      %p74 = scmp.ne.s32.totalorder %s65, %s66
      %p75 = scmp.eq.s32.totalorder %s34, 0
      %p76 = por %p74, %p75
      %p77 = scmp.ne.s32.totalorder %s65, %s66
      %p78 = scmp.eq.s32.totalorder %s35, 1
      %p79 = por %p77, %p78
      %p81 = scmp.ne.s32.totalorder %s66, %s80
      %p82 = scmp.eq.s32.totalorder %s35, 0
      %p83 = por %p81, %p82
      %s85 = sadd.s32 %s84, 1
      %p88 = scmp.eq.s32.totalorder %s29, 1
      %p89 = scmp.ne.s32.totalorder %s84, %s86
      %p90 = scmp.eq.s32.totalorder %s29, 0
      %p91 = por %p89, %p90
      %p92 = scmp.ne.s32.totalorder %s84, %s86
      %p93 = scmp.eq.s32.totalorder %s34, 1
      %p94 = por %p92, %p93
      %p95 = scmp.ne.s32.totalorder %s86, %s87
      %p96 = scmp.eq.s32.totalorder %s34, 0
      %p97 = por %p95, %p96
      %p98 = scmp.ne.s32.totalorder %s86, %s87
      %p99 = scmp.eq.s32.totalorder %s35, 1
      %p100 = por %p98, %p99
      %p102 = scmp.ne.s32.totalorder %s87, %s101
      %p103 = scmp.eq.s32.totalorder %s35, 0
      %p104 = por %p102, %p103
      %s106 = sadd.s32 %s105, 1
      %p109 = scmp.eq.s32.totalorder %s29, 1
      %p110 = scmp.ne.s32.totalorder %s105, %s107
      %p111 = scmp.eq.s32.totalorder %s29, 0
      %p112 = por %p110, %p111
      %p113 = scmp.ne.s32.totalorder %s105, %s107
      %p114 = scmp.eq.s32.totalorder %s34, 1
      %p115 = por %p113, %p114
      %p116 = scmp.ne.s32.totalorder %s107, %s108
      %p117 = scmp.eq.s32.totalorder %s34, 0
      %p118 = por %p116, %p117
      %p119 = scmp.ne.s32.totalorder %s107, %s108
      %p120 = scmp.eq.s32.totalorder %s35, 1
      %p121 = por %p119, %p120
      %p123 = scmp.ne.s32.totalorder %s108, %s122
      %p124 = scmp.eq.s32.totalorder %s35, 0
      %p125 = por %p123, %p124
      %s127 = sadd.s32 %s126, 1
      %p130 = scmp.eq.s32.totalorder %s29, 1
      %p131 = scmp.ne.s32.totalorder %s126, %s128
      %p132 = scmp.eq.s32.totalorder %s29, 0
      %p133 = por %p131, %p132
      %p134 = scmp.ne.s32.totalorder %s126, %s128
      %p135 = scmp.eq.s32.totalorder %s34, 1
      %p136 = por %p134, %p135
      %p137 = scmp.ne.s32.totalorder %s128, %s129
      %p138 = scmp.eq.s32.totalorder %s34, 0
      %p139 = por %p137, %p138
      %p140 = scmp.ne.s32.totalorder %s128, %s129
      %p141 = scmp.eq.s32.totalorder %s35, 1
      %p142 = por %p140, %p141
      %p144 = scmp.ne.s32.totalorder %s129, %s143
      %p145 = scmp.eq.s32.totalorder %s35, 0
      %p146 = por %p144, %p145
      %s148 = sadd.s32 %s147, 1
      %p151 = scmp.eq.s32.totalorder %s29, 1
      %p152 = scmp.ne.s32.totalorder %s147, %s149
      %p153 = scmp.eq.s32.totalorder %s29, 0
      %p154 = por %p152, %p153
      %p155 = scmp.ne.s32.totalorder %s147, %s149
      %p156 = scmp.eq.s32.totalorder %s34, 1
      %p157 = por %p155, %p156
      %p158 = scmp.ne.s32.totalorder %s149, %s150
      %p159 = scmp.eq.s32.totalorder %s34, 0
      %p160 = por %p158, %p159
      %p161 = scmp.ne.s32.totalorder %s149, %s150
      %p162 = scmp.eq.s32.totalorder %s35, 1
      %p163 = por %p161, %p162
      %p165 = scmp.ne.s32.totalorder %s150, %s164
      %p166 = scmp.eq.s32.totalorder %s35, 0
      %p167 = por %p165, %p166
      %s169 = sadd.s32 %s168, 1
      %p172 = scmp.eq.s32.totalorder %s29, 1
      %p173 = scmp.ne.s32.totalorder %s168, %s170
      %p174 = scmp.eq.s32.totalorder %s29, 0
      %p175 = por %p173, %p174
      %p176 = scmp.ne.s32.totalorder %s168, %s170
      %p177 = scmp.eq.s32.totalorder %s34, 1
      %p178 = por %p176, %p177
      %p179 = scmp.ne.s32.totalorder %s170, %s171
      %p180 = scmp.eq.s32.totalorder %s34, 0
      %p181 = por %p179, %p180
      %p182 = scmp.ne.s32.totalorder %s170, %s171
      %p183 = scmp.eq.s32.totalorder %s35, 1
      %p184 = por %p182, %p183
      %p186 = scmp.ne.s32.totalorder %s171, %s185
      %p187 = scmp.eq.s32.totalorder %s35, 0
      %p188 = por %p186, %p187
      %s190 = sadd.s32 %s189, 1
      %p193 = scmp.eq.s32.totalorder %s29, 1
      %p194 = scmp.ne.s32.totalorder %s189, %s191
      %p195 = scmp.eq.s32.totalorder %s29, 0
      %p196 = por %p194, %p195
      %p197 = scmp.ne.s32.totalorder %s189, %s191
      %p198 = scmp.eq.s32.totalorder %s34, 1
      %p199 = por %p197, %p198
      %p200 = scmp.ne.s32.totalorder %s191, %s192
      %p201 = scmp.eq.s32.totalorder %s34, 0
      %p202 = por %p200, %p201
      %p203 = scmp.ne.s32.totalorder %s191, %s192
      %p204 = scmp.eq.s32.totalorder %s35, 1
      %p205 = por %p203, %p204
      %p207 = scmp.ne.s32.totalorder %s192, %s206
      %p208 = scmp.eq.s32.totalorder %s35, 0
      %p209 = por %p207, %p208
      %s211 = sadd.s32 %s210, 1
      %p214 = scmp.eq.s32.totalorder %s29, 1
      %p215 = scmp.ne.s32.totalorder %s210, %s212
      %p216 = scmp.eq.s32.totalorder %s29, 0
      %p217 = por %p215, %p216
      %p218 = scmp.ne.s32.totalorder %s210, %s212
      %p219 = scmp.eq.s32.totalorder %s34, 1
      %p220 = por %p218, %p219
      %p221 = scmp.ne.s32.totalorder %s212, %s213
      %p222 = scmp.eq.s32.totalorder %s34, 0
      %p223 = por %p221, %p222
      %p224 = scmp.ne.s32.totalorder %s212, %s213
      %p225 = scmp.eq.s32.totalorder %s35, 1
      %p226 = por %p224, %p225
      %p228 = scmp.ne.s32.totalorder %s213, %s227
      %p229 = scmp.eq.s32.totalorder %s35, 0
      %p230 = por %p228, %p229
      %s232 = sadd.s32 %s231, 1
      %p235 = scmp.eq.s32.totalorder %s29, 1
      %p236 = scmp.ne.s32.totalorder %s231, %s233
      %p237 = scmp.eq.s32.totalorder %s29, 0
      %p238 = por %p236, %p237
      %p239 = scmp.ne.s32.totalorder %s231, %s233
      %p240 = scmp.eq.s32.totalorder %s34, 1
      %p241 = por %p239, %p240
      %p242 = scmp.ne.s32.totalorder %s233, %s234
      %p243 = scmp.eq.s32.totalorder %s34, 0
      %p244 = por %p242, %p243
      %p245 = scmp.ne.s32.totalorder %s233, %s234
      %p246 = scmp.eq.s32.totalorder %s35, 1
      %p247 = por %p245, %p246
      %p249 = scmp.ne.s32.totalorder %s234, %s248
      %p250 = scmp.eq.s32.totalorder %s35, 0
      %p251 = por %p249, %p250
      %s253 = sadd.s32 %s252, 1
      %p256 = scmp.eq.s32.totalorder %s29, 1
      %p257 = scmp.ne.s32.totalorder %s252, %s254
      %p258 = scmp.eq.s32.totalorder %s29, 0
      %p259 = por %p257, %p258
      %p260 = scmp.ne.s32.totalorder %s252, %s254
      %p261 = scmp.eq.s32.totalorder %s34, 1
      %p262 = por %p260, %p261
      %p263 = scmp.ne.s32.totalorder %s254, %s255
      %p264 = scmp.eq.s32.totalorder %s34, 0
      %p265 = por %p263, %p264
      %p266 = scmp.ne.s32.totalorder %s254, %s255
      %p267 = scmp.eq.s32.totalorder %s35, 1
      %p268 = por %p266, %p267
      %p270 = scmp.ne.s32.totalorder %s255, %s269
      %p271 = scmp.eq.s32.totalorder %s35, 0
      %p272 = por %p270, %p271
      %s274 = sadd.s32 %s273, 1
      %p277 = scmp.eq.s32.totalorder %s29, 1
      %p278 = scmp.ne.s32.totalorder %s273, %s275
      %p279 = scmp.eq.s32.totalorder %s29, 0
      %p280 = por %p278, %p279
      %p281 = scmp.ne.s32.totalorder %s273, %s275
      %p282 = scmp.eq.s32.totalorder %s34, 1
      %p283 = por %p281, %p282
      %p284 = scmp.ne.s32.totalorder %s275, %s276
      %p285 = scmp.eq.s32.totalorder %s34, 0
      %p286 = por %p284, %p285
      %p287 = scmp.ne.s32.totalorder %s275, %s276
      %p288 = scmp.eq.s32.totalorder %s35, 1
      %p289 = por %p287, %p288
      %p291 = scmp.ne.s32.totalorder %s276, %s290
      %p292 = scmp.eq.s32.totalorder %s35, 0
      %p293 = por %p291, %p292
      %s295 = sadd.s32 %s294, 1
      %p298 = scmp.eq.s32.totalorder %s29, 1
      %p299 = scmp.ne.s32.totalorder %s294, %s296
      %p300 = scmp.eq.s32.totalorder %s29, 0
      %p301 = por %p299, %p300
      %p302 = scmp.ne.s32.totalorder %s294, %s296
      %p303 = scmp.eq.s32.totalorder %s34, 1
      %p304 = por %p302, %p303
      %p305 = scmp.ne.s32.totalorder %s296, %s297
      %p306 = scmp.eq.s32.totalorder %s34, 0
      %p307 = por %p305, %p306
      %p308 = scmp.ne.s32.totalorder %s296, %s297
      %p309 = scmp.eq.s32.totalorder %s35, 1
      %p310 = por %p308, %p309
      %p312 = scmp.ne.s32.totalorder %s297, %s311
      %p313 = scmp.eq.s32.totalorder %s35, 0
      %p314 = por %p312, %p313
      %s316 = sadd.s32 %s315, 1
      %p319 = scmp.eq.s32.totalorder %s29, 1
      %p320 = scmp.ne.s32.totalorder %s315, %s317
      %p321 = scmp.eq.s32.totalorder %s29, 0
      %p322 = por %p320, %p321
      %p323 = scmp.ne.s32.totalorder %s315, %s317
      %p324 = scmp.eq.s32.totalorder %s34, 1
      %p325 = por %p323, %p324
      %p326 = scmp.ne.s32.totalorder %s317, %s318
      %p327 = scmp.eq.s32.totalorder %s34, 0
      %p328 = por %p326, %p327
      %p329 = scmp.ne.s32.totalorder %s317, %s318
      %p330 = scmp.eq.s32.totalorder %s35, 1
      %p331 = por %p329, %p330
      %p333 = scmp.ne.s32.totalorder %s318, %s332
      %p334 = scmp.eq.s32.totalorder %s35, 0
      %p335 = por %p333, %p334
      %s337 = sadd.s32 %s336, 1
      %p340 = scmp.eq.s32.totalorder %s29, 1
      %p341 = scmp.ne.s32.totalorder %s336, %s338
      %p342 = scmp.eq.s32.totalorder %s29, 0
      %p343 = por %p341, %p342
      %p344 = scmp.ne.s32.totalorder %s336, %s338
      %p345 = scmp.eq.s32.totalorder %s34, 1
      %p346 = por %p344, %p345
      %p347 = scmp.ne.s32.totalorder %s338, %s339
      %p348 = scmp.eq.s32.totalorder %s34, 0
      %p349 = por %p347, %p348
      %p350 = scmp.ne.s32.totalorder %s338, %s339
      %p351 = scmp.eq.s32.totalorder %s35, 1
      %p352 = por %p350, %p351
      %p354 = scmp.ne.s32.totalorder %s339, %s353
      %p355 = scmp.eq.s32.totalorder %s35, 0
      %p356 = por %p354, %p355
      %s358 = sadd.s32 %s357, 1
      %p361 = scmp.eq.s32.totalorder %s29, 1
      %p362 = scmp.ne.s32.totalorder %s357, %s359
      %p363 = scmp.eq.s32.totalorder %s29, 0
      %p364 = por %p362, %p363
      %p365 = scmp.ne.s32.totalorder %s357, %s359
      %p366 = scmp.eq.s32.totalorder %s34, 1
      %p367 = por %p365, %p366
      %p368 = scmp.ne.s32.totalorder %s359, %s360
      %p369 = scmp.eq.s32.totalorder %s34, 0
      %p370 = por %p368, %p369
      %p371 = scmp.ne.s32.totalorder %s359, %s360
      %p372 = scmp.eq.s32.totalorder %s35, 1
      %p373 = por %p371, %p372
      %p375 = scmp.ne.s32.totalorder %s360, %s374
      %p376 = scmp.eq.s32.totalorder %s35, 0
      %p377 = por %p375, %p376
      %s378 = ssub.s32 %s29, %s36
      %p379 = scmp.eq.s32.totalorder %s378, 0
      %s381 = sadd.s32 %s380, 1
      %s382 = scalar_select %p379, %s380, %s381
      %p385 = pneg %p379
      %p386 = scmp.eq.s32.totalorder %s29, 1
      %p387 = por %p385, %p386
      %p388 = scmp.ne.s32.totalorder %s380, %s383
      %p389 = scmp.eq.s32.totalorder %s29, 0
      %p390 = por %p388, %p389
      %p391 = scmp.ne.s32.totalorder %s380, %s383
      %p392 = scmp.eq.s32.totalorder %s34, 1
      %p393 = por %p391, %p392
      %p394 = scmp.ne.s32.totalorder %s383, %s384
      %p395 = scmp.eq.s32.totalorder %s34, 0
      %p396 = por %p394, %p395
      %p397 = scmp.ne.s32.totalorder %s383, %s384
      %p398 = scmp.eq.s32.totalorder %s35, 1
      %p399 = por %p397, %p398
      %p401 = scmp.ne.s32.totalorder %s384, %s400
      %p402 = scmp.eq.s32.totalorder %s35, 0
      %p403 = por %p401, %p402
      %p404 = scmp.le.s32.totalorder 1, %s29
      %p405 = scmp.lt.s32.totalorder %s29, 3
      %p406 = pnand %p404, %p405
      %p407 = pneg %p406
      // Predicated region
      $region9: #{vgg_light_256_forward.1} parent=5 // pred_check
        _
      $region10: #{vgg_light_256_forward.1} parent=5 // pred_check_branch
        %409 = sbr.rel (%p406) target = $region12
      $region11: #{vgg_light_256_forward.1} parent=5 // pred_region
        %s410 = ssub.s32 %s29, 1
        // Predicated region
        $region13: #{vgg_light_256_forward.1} parent=11 // pred_check
          %p411 = pneg %p76
        $region14: #{vgg_light_256_forward.1} parent=11 // pred_check_branch
          %413 = sbr.rel (%p411) target = $region16
        $region15: #{vgg_light_256_forward.1} parent=11 // pred_region
          %415 = vsyncadd [#allocation3], 0
          %s416 = sshll.u32 %s1, 4
          %s417 = int_to_ptr.hbm [resolvable:$true] %s416
          %s418 = sshll.u32 [#allocation2], 4
          %s419 = int_to_ptr.vmem [resolvable:$true] %s418
          %424 = dma.hbm_to_vmem [thread:$0]  %s417, 256, %s419, [#allocation3], 64, 64, 4
        $region16: #{vgg_light_256_forward.1} parent=11 // pred_fallthru
          _
        // Predicated region
        $region17: #{vgg_light_256_forward.1} parent=11 // pred_check
          %p425 = pneg %p97
        $region18: #{vgg_light_256_forward.1} parent=11 // pred_check_branch
          %427 = sbr.rel (%p425) target = $region20
        $region19: #{vgg_light_256_forward.1} parent=11 // pred_region
          _
        $region20: #{vgg_light_256_forward.1} parent=11 // pred_fallthru
          _
        // Predicated region
        $region21: #{vgg_light_256_forward.1} parent=11 // pred_check
          %p428 = pneg %p118
        $region22: #{vgg_light_256_forward.1} parent=11 // pred_check_branch
          %430 = sbr.rel (%p428) target = $region24
        $region23: #{vgg_light_256_forward.1} parent=11 // pred_region
          _
        $region24: #{vgg_light_256_forward.1} parent=11 // pred_fallthru
          _
        // Predicated region
        $region25: #{vgg_light_256_forward.1} parent=11 // pred_check
          %p431 = pneg %p139
        $region26: #{vgg_light_256_forward.1} parent=11 // pred_check_branch
          %433 = sbr.rel (%p431) target = $region28
        $region27: #{vgg_light_256_forward.1} parent=11 // pred_region
          _
        $region28: #{vgg_light_256_forward.1} parent=11 // pred_fallthru
          _
        // Predicated region
        $region29: #{vgg_light_256_forward.1} parent=11 // pred_check
          %p434 = pneg %p160
        $region30: #{vgg_light_256_forward.1} parent=11 // pred_check_branch
          %436 = sbr.rel (%p434) target = $region32
        $region31: #{vgg_light_256_forward.1} parent=11 // pred_region
          %438 = vsyncadd [#allocation6], 0
          %s440 = sshll.u32 %s5, 4
          %s441 = int_to_ptr.hbm [resolvable:$true] %s440
          %s442 = sshll.u32 [#allocation5], 4
          %s443 = int_to_ptr.vmem [resolvable:$true] %s442
          %445 = dma.hbm_to_vmem [thread:$0]  %s441, 16, %s443, [#allocation6]
        $region32: #{vgg_light_256_forward.1} parent=11 // pred_fallthru
          _
        // Predicated region
        $region33: #{vgg_light_256_forward.1} parent=11 // pred_check
          %p446 = pneg %p181
        $region34: #{vgg_light_256_forward.1} parent=11 // pred_check_branch
          %448 = sbr.rel (%p446) target = $region36
        $region35: #{vgg_light_256_forward.1} parent=11 // pred_region
          _
        $region36: #{vgg_light_256_forward.1} parent=11 // pred_fallthru
          _
        // Predicated region
        $region37: #{vgg_light_256_forward.1} parent=11 // pred_check
          %p449 = pneg %p202
        $region38: #{vgg_light_256_forward.1} parent=11 // pred_check_branch
          %451 = sbr.rel (%p449) target = $region40
        $region39: #{vgg_light_256_forward.1} parent=11 // pred_region
          _
        $region40: #{vgg_light_256_forward.1} parent=11 // pred_fallthru
          _
        // Predicated region
        $region41: #{vgg_light_256_forward.1} parent=11 // pred_check
          %p452 = pneg %p223
        $region42: #{vgg_light_256_forward.1} parent=11 // pred_check_branch
          %454 = sbr.rel (%p452) target = $region44
        $region43: #{vgg_light_256_forward.1} parent=11 // pred_region
          %456 = vsyncadd [#allocation6], 0
          %s458 = sshll.u32 %s8, 4
          %s459 = int_to_ptr.hbm [resolvable:$true] %s458
          %s460 = sshll.u32 [#allocation7], 4
          %s461 = int_to_ptr.vmem [resolvable:$true] %s460
          %463 = dma.hbm_to_vmem [thread:$0]  %s459, 32, %s461, [#allocation6]
        $region44: #{vgg_light_256_forward.1} parent=11 // pred_fallthru
          _
        // Predicated region
        $region45: #{vgg_light_256_forward.1} parent=11 // pred_check
          %p464 = pneg %p244
        $region46: #{vgg_light_256_forward.1} parent=11 // pred_check_branch
          %466 = sbr.rel (%p464) target = $region48
        $region47: #{vgg_light_256_forward.1} parent=11 // pred_region
          %468 = vsyncadd [#allocation9], 0
          %s470 = sshll.u32 %s9, 4
          %s471 = int_to_ptr.hbm [resolvable:$true] %s470
          %s472 = sshll.u32 [#allocation8], 4
          %s473 = int_to_ptr.vmem [resolvable:$true] %s472
          %475 = dma.hbm_to_vmem [thread:$0]  %s471, 32, %s473, [#allocation9]
        $region48: #{vgg_light_256_forward.1} parent=11 // pred_fallthru
          _
        // Predicated region
        $region49: #{vgg_light_256_forward.1} parent=11 // pred_check
          %p476 = pneg %p265
        $region50: #{vgg_light_256_forward.1} parent=11 // pred_check_branch
          %478 = sbr.rel (%p476) target = $region52
        $region51: #{vgg_light_256_forward.1} parent=11 // pred_region
          _
        $region52: #{vgg_light_256_forward.1} parent=11 // pred_fallthru
          _
        // Predicated region
        $region53: #{vgg_light_256_forward.1} parent=11 // pred_check
          %p479 = pneg %p286
        $region54: #{vgg_light_256_forward.1} parent=11 // pred_check_branch
          %481 = sbr.rel (%p479) target = $region56
        $region55: #{vgg_light_256_forward.1} parent=11 // pred_region
          %483 = vsyncadd [#allocation9], 0
          %s485 = sshll.u32 %s11, 4
          %s486 = int_to_ptr.hbm [resolvable:$true] %s485
          %s487 = sshll.u32 [#allocation10], 4
          %s488 = int_to_ptr.vmem [resolvable:$true] %s487
          %490 = dma.hbm_to_vmem [thread:$0]  %s486, 32, %s488, [#allocation9]
        $region56: #{vgg_light_256_forward.1} parent=11 // pred_fallthru
          _
        // Predicated region
        $region57: #{vgg_light_256_forward.1} parent=11 // pred_check
          %p491 = pneg %p307
        $region58: #{vgg_light_256_forward.1} parent=11 // pred_check_branch
          %493 = sbr.rel (%p491) target = $region60
        $region59: #{vgg_light_256_forward.1} parent=11 // pred_region
          _
        $region60: #{vgg_light_256_forward.1} parent=11 // pred_fallthru
          _
        // Predicated region
        $region61: #{vgg_light_256_forward.1} parent=11 // pred_check
          %p494 = pneg %p328
        $region62: #{vgg_light_256_forward.1} parent=11 // pred_check_branch
          %496 = sbr.rel (%p494) target = $region64
        $region63: #{vgg_light_256_forward.1} parent=11 // pred_region
          %498 = vsyncadd [#allocation12], 0
          %s500 = sshll.u32 %s13, 4
          %s501 = int_to_ptr.hbm [resolvable:$true] %s500
          %s502 = sshll.u32 [#allocation11], 4
          %s503 = int_to_ptr.vmem [resolvable:$true] %s502
          %505 = dma.hbm_to_vmem [thread:$0]  %s501, 32, %s503, [#allocation12]
        $region64: #{vgg_light_256_forward.1} parent=11 // pred_fallthru
          _
        // Predicated region
        $region65: #{vgg_light_256_forward.1} parent=11 // pred_check
          %p506 = pneg %p349
        $region66: #{vgg_light_256_forward.1} parent=11 // pred_check_branch
          %508 = sbr.rel (%p506) target = $region68
        $region67: #{vgg_light_256_forward.1} parent=11 // pred_region
          _
        $region68: #{vgg_light_256_forward.1} parent=11 // pred_fallthru
          _
        // Predicated region
        $region69: #{vgg_light_256_forward.1} parent=11 // pred_check
          %p509 = pneg %p370
        $region70: #{vgg_light_256_forward.1} parent=11 // pred_check_branch
          %511 = sbr.rel (%p509) target = $region72
        $region71: #{vgg_light_256_forward.1} parent=11 // pred_region
          %513 = vsyncadd [#allocation12], 0
          %s515 = sshll.u32 %s15, 4
          %s516 = int_to_ptr.hbm [resolvable:$true] %s515
          %s517 = sshll.u32 [#allocation13], 4
          %s518 = int_to_ptr.vmem [resolvable:$true] %s517
          %520 = dma.hbm_to_vmem [thread:$0]  %s516, 16, %s518, [#allocation12]
        $region72: #{vgg_light_256_forward.1} parent=11 // pred_fallthru
          _
      $region12: #{vgg_light_256_forward.1} parent=5 // pred_fallthru
        _
      %p521 = scmp.lt.s32.totalorder %s29, 2
      // Predicated region
      $region73: #{vgg_light_256_forward.1} parent=5 // pred_check
        %p522 = pneg %p521
      $region74: #{vgg_light_256_forward.1} parent=5 // pred_check_branch
        %524 = sbr.rel (%p522) target = $region76
      $region75: #{vgg_light_256_forward.1} parent=5 // pred_region
        // Predicated region
        $region77: #{vgg_light_256_forward.1} parent=75 // pred_check
          %p525 = pneg %p49
        $region78: #{vgg_light_256_forward.1} parent=75 // pred_check_branch
          %527 = sbr.rel (%p525) target = $region80
        $region79: #{vgg_light_256_forward.1} parent=75 // pred_region
          %p528 = scmp.lt.s32.totalorder %s29, 1
          %s529 = scalar_select %p528, %s29, 1
          %s530 = smul.addr %s529, 32
          %s531 = smul.addr %s530, 4
          %s532 = scalar_lea.vmem %s0, %s531
        $region80: #{vgg_light_256_forward.1} parent=75 // pred_fallthru
          _
      $region76: #{vgg_light_256_forward.1} parent=5 // pred_fallthru
        _
      %p533 = scmp.le.s32.totalorder 1, %s29
      %p534 = scmp.lt.s32.totalorder %s29, 3
      %p535 = pnand %p533, %p534
      %p536 = pneg %p535
      // Predicated region
      $region81: #{vgg_light_256_forward.1} parent=5 // pred_check
        _
      $region82: #{vgg_light_256_forward.1} parent=5 // pred_check_branch
        %538 = sbr.rel (%p535) target = $region84
      $region83: #{vgg_light_256_forward.1} parent=5 // pred_region
        %s539 = ssub.s32 %s29, 1
        // Predicated region
        $region85: #{vgg_light_256_forward.1} parent=83 // pred_check
          %p540 = pneg %p76
        $region86: #{vgg_light_256_forward.1} parent=83 // pred_check_branch
          %542 = sbr.rel (%p540) target = $region88
        $region87: #{vgg_light_256_forward.1} parent=83 // pred_region
          %544 = dma.done [#allocation3], 256
        $region88: #{vgg_light_256_forward.1} parent=83 // pred_fallthru
          _
        // Predicated region
        $region89: #{vgg_light_256_forward.1} parent=83 // pred_check
          %p545 = pneg %p160
        $region90: #{vgg_light_256_forward.1} parent=83 // pred_check_branch
          %547 = sbr.rel (%p545) target = $region92
        $region91: #{vgg_light_256_forward.1} parent=83 // pred_region
          %549 = dma.done [#allocation6], 16
        $region92: #{vgg_light_256_forward.1} parent=83 // pred_fallthru
          _
        // Predicated region
        $region93: #{vgg_light_256_forward.1} parent=83 // pred_check
          %p550 = pneg %p223
        $region94: #{vgg_light_256_forward.1} parent=83 // pred_check_branch
          %552 = sbr.rel (%p550) target = $region96
        $region95: #{vgg_light_256_forward.1} parent=83 // pred_region
          %554 = dma.done [#allocation6], 32
        $region96: #{vgg_light_256_forward.1} parent=83 // pred_fallthru
          _
        // Predicated region
        $region97: #{vgg_light_256_forward.1} parent=83 // pred_check
          %p555 = pneg %p244
        $region98: #{vgg_light_256_forward.1} parent=83 // pred_check_branch
          %557 = sbr.rel (%p555) target = $region100
        $region99: #{vgg_light_256_forward.1} parent=83 // pred_region
          %559 = dma.done [#allocation9], 32
        $region100: #{vgg_light_256_forward.1} parent=83 // pred_fallthru
          _
        // Predicated region
        $region101: #{vgg_light_256_forward.1} parent=83 // pred_check
          %p560 = pneg %p286
        $region102: #{vgg_light_256_forward.1} parent=83 // pred_check_branch
          %562 = sbr.rel (%p560) target = $region104
        $region103: #{vgg_light_256_forward.1} parent=83 // pred_region
          %564 = dma.done [#allocation9], 32
        $region104: #{vgg_light_256_forward.1} parent=83 // pred_fallthru
          _
        // Predicated region
        $region105: #{vgg_light_256_forward.1} parent=83 // pred_check
          %p565 = pneg %p328
        $region106: #{vgg_light_256_forward.1} parent=83 // pred_check_branch
          %567 = sbr.rel (%p565) target = $region108
        $region107: #{vgg_light_256_forward.1} parent=83 // pred_region
          %569 = dma.done [#allocation12], 32
        $region108: #{vgg_light_256_forward.1} parent=83 // pred_fallthru
          _
        // Predicated region
        $region109: #{vgg_light_256_forward.1} parent=83 // pred_check
          %p570 = pneg %p370
        $region110: #{vgg_light_256_forward.1} parent=83 // pred_check_branch
          %572 = sbr.rel (%p570) target = $region112
        $region111: #{vgg_light_256_forward.1} parent=83 // pred_region
          %574 = dma.done [#allocation12], 16
        $region112: #{vgg_light_256_forward.1} parent=83 // pred_fallthru
          _
        %p575 = scmp.lt.s32.totalorder %s34, 1
        %s576 = scalar_select %p575, %s34, 1
        %s577 = smul.addr %s576, 32
        %s578 = smul.addr %s577, 4
        %s579 = scalar_lea.vmem %s0, %s578
        %p580 = pneg %p55
        %p581 = pneg %p52
        %p582 = pneg %p76
        %p583 = pneg %p73
        %p584 = pneg %p97
        %p585 = pneg %p94
        %p586 = pneg %p118
        %p587 = pneg %p115
        %p588 = pneg %p139
        %p589 = pneg %p136
        %p590 = pneg %p160
        %p591 = pneg %p157
        %p592 = pneg %p181
        %p593 = pneg %p178
        %p594 = pneg %p202
        %p595 = pneg %p199
        %p596 = pneg %p223
        %p597 = pneg %p220
        %p598 = pneg %p244
        %p599 = pneg %p241
        %p600 = pneg %p265
        %p601 = pneg %p262
        %p602 = pneg %p286
        %p603 = pneg %p283
        %p604 = pneg %p307
        %p605 = pneg %p304
        %p606 = pneg %p328
        %p607 = pneg %p325
        %p608 = pneg %p349
        %p609 = pneg %p346
        %p610 = pneg %p370
        %p611 = pneg %p367
        %p612 = pneg %p396
        %p613 = pneg %p393
        %s614 = sand.u32 %s383, 1
        %s615 = scalar_lea.sflag [#allocation4], %s614
        %s616 = sand.u32 %s383, 1
        %s617 = scalar_lea.vmem [#allocation14], %s616
        %p618 = scmp.lt.s32.totalorder %s34, 1
        %s619 = scalar_select %p618, %s34, 1
        %s620 = smul.addr %s619, 32
        %s621 = smul.addr %s620, 4
        %s622 = scalar_lea.vmem %s0, %s621
        %v624 = vld [vmem:[%s622] sm:$0xf]
        %v625 = vld [vmem:[%s622 + $0x4] sm:$0xf]
        %v626 = vld [vmem:[%s622 + $0x8] sm:$0xf]
        %v627 = vld [vmem:[%s622 + $0xc] sm:$0xf]
        %v628 = vld [vmem:[%s622 + $0x10] sm:$0xf]
        %v629 = vld [vmem:[%s622 + $0x14] sm:$0xf]
        %v630 = vld [vmem:[%s622 + $0x18] sm:$0xf]
        %v631 = vld [vmem:[%s622 + $0x1c] sm:$0xf]
        %v632 = vld [vmem:[%s622 + $0x20] sm:$0xf]
        %v633 = vld [vmem:[%s622 + $0x24] sm:$0xf]
        %v634 = vld [vmem:[%s622 + $0x28] sm:$0xf]
        %v635 = vld [vmem:[%s622 + $0x2c] sm:$0xf]
        %v636 = vld [vmem:[%s622 + $0x30] sm:$0xf]
        %v637 = vld [vmem:[%s622 + $0x34] sm:$0xf]
        %v638 = vld [vmem:[%s622 + $0x38] sm:$0xf]
        %v639 = vld [vmem:[%s622 + $0x3c] sm:$0xf]
        %v640 = vld [vmem:[%s622 + $0x40] sm:$0xf]
        %v641 = vld [vmem:[%s622 + $0x44] sm:$0xf]
        %v642 = vld [vmem:[%s622 + $0x48] sm:$0xf]
        %v643 = vld [vmem:[%s622 + $0x4c] sm:$0xf]
        %v644 = vld [vmem:[%s622 + $0x50] sm:$0xf]
        %v645 = vld [vmem:[%s622 + $0x54] sm:$0xf]
        %v646 = vld [vmem:[%s622 + $0x58] sm:$0xf]
        %v647 = vld [vmem:[%s622 + $0x5c] sm:$0xf]
        %v648 = vld [vmem:[%s622 + $0x60] sm:$0xf]
        %v649 = vld [vmem:[%s622 + $0x64] sm:$0xf]
        %v650 = vld [vmem:[%s622 + $0x68] sm:$0xf]
        %v651 = vld [vmem:[%s622 + $0x6c] sm:$0xf]
        %v652 = vld [vmem:[%s622 + $0x70] sm:$0xf]
        %v653 = vld [vmem:[%s622 + $0x74] sm:$0xf]
        %v654 = vld [vmem:[%s622 + $0x78] sm:$0xf]
        %v655 = vld [vmem:[%s622 + $0x7c] sm:$0xf]
        %v656 = vld [vmem:[#allocation2] sm:$0xf]
        %v657 = vld [vmem:[#allocation2 + $0x4] sm:$0xf]
        %v658 = vld [vmem:[#allocation2 + $0x8] sm:$0xf]
        %v659 = vld [vmem:[#allocation2 + $0xc] sm:$0xf]
        %v660 = vld [vmem:[%s2] sm:$0x1]
        %v662 = vperm.slane %v660, 0
        %v696 = vunpack.c.l.b16 %v624
        %v697 = vunpack.c.l.b16 %v625
        %v698 = vunpack.c.l.b16 %v626
        %v699 = vunpack.c.l.b16 %v627
        %v700 = vunpack.c.l.b16 %v628
        %v701 = vunpack.c.l.b16 %v629
        %v702 = vunpack.c.l.b16 %v630
        %v703 = vunpack.c.l.b16 %v631
        %v704 = vunpack.c.l.b16 %v632
        %v705 = vunpack.c.l.b16 %v633
        %v706 = vunpack.c.l.b16 %v634
        %v707 = vunpack.c.l.b16 %v635
        %v708 = vunpack.c.l.b16 %v636
        %v709 = vunpack.c.l.b16 %v637
        %v710 = vunpack.c.l.b16 %v638
        %v711 = vunpack.c.l.b16 %v639
        %v712 = vunpack.c.l.b16 %v640
        %v713 = vunpack.c.l.b16 %v641
        %v714 = vunpack.c.l.b16 %v642
        %v715 = vunpack.c.l.b16 %v643
        %v716 = vunpack.c.l.b16 %v644
        %v717 = vunpack.c.l.b16 %v645
        %v718 = vunpack.c.l.b16 %v646
        %v719 = vunpack.c.l.b16 %v647
        %v720 = vunpack.c.l.b16 %v648
        %v721 = vunpack.c.l.b16 %v649
        %v722 = vunpack.c.l.b16 %v650
        %v723 = vunpack.c.l.b16 %v651
        %v724 = vunpack.c.l.b16 %v652
        %v725 = vunpack.c.l.b16 %v653
        %v726 = vunpack.c.l.b16 %v654
        %v727 = vunpack.c.l.b16 %v655
        %v728 = vpack.c.b16 %v697, %v696
        %v729 = vpack.c.b16 %v699, %v698
        %v730 = vpack.c.b16 %v701, %v700
        %v731 = vpack.c.b16 %v703, %v702
        %v732 = vpack.c.b16 %v705, %v704
        %v733 = vpack.c.b16 %v707, %v706
        %v734 = vpack.c.b16 %v709, %v708
        %v735 = vpack.c.b16 %v711, %v710
        %v736 = vpack.c.b16 %v713, %v712
        %v737 = vpack.c.b16 %v715, %v714
        %v738 = vpack.c.b16 %v717, %v716
        %v739 = vpack.c.b16 %v719, %v718
        %v740 = vpack.c.b16 %v721, %v720
        %v741 = vpack.c.b16 %v723, %v722
        %v742 = vpack.c.b16 %v725, %v724
        %v743 = vpack.c.b16 %v727, %v726
        %v748 = vunpack.c.l.b16 %v656
        %v749 = vunpack.c.l.b16 %v657
        %v750 = vunpack.c.l.b16 %v658
        %v751 = vunpack.c.l.b16 %v659
        %v752 = vpack.c.b16 %v749, %v748
        %v753 = vpack.c.b16 %v751, %v750
        %vm756 = vcmask 261120
        %v758 = vsel %vm756, %v728, 0
        %v761 = vsel %vm756, %v729, 0
        %v764 = vsel %vm756, %v730, 0
        %v767 = vsel %vm756, %v731, 0
        %v770 = vsel %vm756, %v732, 0
        %v773 = vsel %vm756, %v733, 0
        %v776 = vsel %vm756, %v734, 0
        %v779 = vsel %vm756, %v735, 0
        %v782 = vsel %vm756, %v736, 0
        %v785 = vsel %vm756, %v737, 0
        %v788 = vsel %vm756, %v738, 0
        %v791 = vsel %vm756, %v739, 0
        %v794 = vsel %vm756, %v740, 0
        %v797 = vsel %vm756, %v741, 0
        %v800 = vsel %vm756, %v742, 0
        %v803 = vsel %vm756, %v743, 0
        %805 = vmatpush.bf16.msra.mxu0 0
        %806 = vmatpush.bf16.msra.mxu0 0
        %807 = vmatpush.bf16.msra.mxu0 0
        %808 = vmatpush.bf16.msra.mxu0 0
        %809 = vmatpush.bf16.msra.mxu0 0
        %810 = vmatpush.bf16.msra.mxu0 0
        %811 = vmatpush.bf16.msra.mxu0 %v753
        %812 = vmatpush.bf16.msra.mxu0 %v752
        %813 = vmatmul.bf16.gmra.mxu0 %v758
        %v814 = vpop.f32.mrf.mxu0
        %v815 = vadd.f32 %v662, %v814
        %v816 = vpop.f32.mrf.mxu0
        %v817 = vadd.f32 %v662, %v816
        %818 = vmatmul.bf16.gmra.mxu0 %v761
        %v819 = vpop.f32.mrf.mxu0
        %v820 = vadd.f32 %v662, %v819
        %v821 = vpop.f32.mrf.mxu0
        %v822 = vadd.f32 %v662, %v821
        %823 = vmatmul.bf16.gmra.mxu0 %v764
        %v824 = vpop.f32.mrf.mxu0
        %v825 = vadd.f32 %v662, %v824
        %v826 = vpop.f32.mrf.mxu0
        %v827 = vadd.f32 %v662, %v826
        %828 = vmatmul.bf16.gmra.mxu0 %v767
        %v829 = vpop.f32.mrf.mxu0
        %v830 = vadd.f32 %v662, %v829
        %v831 = vpop.f32.mrf.mxu0
        %v832 = vadd.f32 %v662, %v831
        %833 = vmatmul.bf16.gmra.mxu0 %v770
        %v834 = vpop.f32.mrf.mxu0
        %v835 = vadd.f32 %v662, %v834
        %v836 = vpop.f32.mrf.mxu0
        %v837 = vadd.f32 %v662, %v836
        %838 = vmatmul.bf16.gmra.mxu0 %v773
        %v839 = vpop.f32.mrf.mxu0
        %v840 = vadd.f32 %v662, %v839
        %v841 = vpop.f32.mrf.mxu0
        %v842 = vadd.f32 %v662, %v841
        %843 = vmatmul.bf16.gmra.mxu0 %v776
        %v844 = vpop.f32.mrf.mxu0
        %v845 = vadd.f32 %v662, %v844
        %v846 = vpop.f32.mrf.mxu0
        %v847 = vadd.f32 %v662, %v846
        %848 = vmatmul.bf16.gmra.mxu0 %v779
        %v849 = vpop.f32.mrf.mxu0
        %v850 = vadd.f32 %v662, %v849
        %v851 = vpop.f32.mrf.mxu0
        %v852 = vadd.f32 %v662, %v851
        %853 = vmatmul.bf16.gmra.mxu0 %v782
        %v854 = vpop.f32.mrf.mxu0
        %v855 = vadd.f32 %v662, %v854
        %v856 = vpop.f32.mrf.mxu0
        %v857 = vadd.f32 %v662, %v856
        %858 = vmatmul.bf16.gmra.mxu0 %v785
        %v859 = vpop.f32.mrf.mxu0
        %v860 = vadd.f32 %v662, %v859
        %v861 = vpop.f32.mrf.mxu0
        %v862 = vadd.f32 %v662, %v861
        %863 = vmatmul.bf16.gmra.mxu0 %v788
        %v864 = vpop.f32.mrf.mxu0
        %v865 = vadd.f32 %v662, %v864
        %v866 = vpop.f32.mrf.mxu0
        %v867 = vadd.f32 %v662, %v866
        %868 = vmatmul.bf16.gmra.mxu0 %v791
        %v869 = vpop.f32.mrf.mxu0
        %v870 = vadd.f32 %v662, %v869
        %v871 = vpop.f32.mrf.mxu0
        %v872 = vadd.f32 %v662, %v871
        %873 = vmatmul.bf16.gmra.mxu0 %v794
        %v874 = vpop.f32.mrf.mxu0
        %v875 = vadd.f32 %v662, %v874
        %v876 = vpop.f32.mrf.mxu0
        %v877 = vadd.f32 %v662, %v876
        %878 = vmatmul.bf16.gmra.mxu0 %v797
        %v879 = vpop.f32.mrf.mxu0
        %v880 = vadd.f32 %v662, %v879
        %v881 = vpop.f32.mrf.mxu0
        %v882 = vadd.f32 %v662, %v881
        %883 = vmatmul.bf16.gmra.mxu0 %v800
        %v884 = vpop.f32.mrf.mxu0
        %v885 = vadd.f32 %v662, %v884
        %v886 = vpop.f32.mrf.mxu0
        %v887 = vadd.f32 %v662, %v886
        %888 = vmatmul.bf16.gmra.mxu0 %v803
        %v889 = vpop.f32.mrf.mxu0
        %v890 = vadd.f32 %v662, %v889
        %v891 = vpop.f32.mrf.mxu0
        %v892 = vadd.f32 %v662, %v891
        %893 = vdwg.mxu0
        %v894 = vmax.f32 %v815, 0.0
        %v895 = vmax.f32 %v817, 0.0
        %v896 = vmax.f32 %v820, 0.0
        %v897 = vmax.f32 %v822, 0.0
        %v898 = vmax.f32 %v825, 0.0
        %v899 = vmax.f32 %v827, 0.0
        %v900 = vmax.f32 %v830, 0.0
        %v901 = vmax.f32 %v832, 0.0
        %v902 = vmax.f32 %v835, 0.0
        %v903 = vmax.f32 %v837, 0.0
        %v904 = vmax.f32 %v840, 0.0
        %v905 = vmax.f32 %v842, 0.0
        %v906 = vmax.f32 %v845, 0.0
        %v907 = vmax.f32 %v847, 0.0
        %v908 = vmax.f32 %v850, 0.0
        %v909 = vmax.f32 %v852, 0.0
        %v910 = vmax.f32 %v855, 0.0
        %v911 = vmax.f32 %v857, 0.0
        %v912 = vmax.f32 %v860, 0.0
        %v913 = vmax.f32 %v862, 0.0
        %v914 = vmax.f32 %v865, 0.0
        %v915 = vmax.f32 %v867, 0.0
        %v916 = vmax.f32 %v870, 0.0
        %v917 = vmax.f32 %v872, 0.0
        %v918 = vmax.f32 %v875, 0.0
        %v919 = vmax.f32 %v877, 0.0
        %v920 = vmax.f32 %v880, 0.0
        %v921 = vmax.f32 %v882, 0.0
        %v922 = vmax.f32 %v885, 0.0
        %v923 = vmax.f32 %v887, 0.0
        %v924 = vmax.f32 %v890, 0.0
        %v925 = vmax.f32 %v892, 0.0
        %v926 = vld [vmem:[%s3] sm:$0xff]
        %v927 = vld [vmem:[%s3 + $0x8] sm:$0xff]
        %v928 = vld [vmem:[%s3 + $0x10] sm:$0xff]
        %v929 = vld [vmem:[%s3 + $0x18] sm:$0xff]
        %v930 = vld [vmem:[%s3 + $0x20] sm:$0xff]
        %v931 = vld [vmem:[%s3 + $0x28] sm:$0xff]
        %v932 = vld [vmem:[%s3 + $0x30] sm:$0xff]
        %v933 = vld [vmem:[%s3 + $0x38] sm:$0xff]
        %v934 = vrot.slane %v894, 1
        %v935 = vrot.slane %v895, 1
        %v936 = vrot.slane %v896, 1
        %v937 = vrot.slane %v897, 1
        %v938 = vrot.slane %v898, 1
        %v939 = vrot.slane %v899, 1
        %v940 = vrot.slane %v900, 1
        %v941 = vrot.slane %v901, 1
        %v942 = vrot.slane %v902, 1
        %v943 = vrot.slane %v903, 1
        %v944 = vrot.slane %v904, 1
        %v945 = vrot.slane %v905, 1
        %v946 = vrot.slane %v906, 1
        %v947 = vrot.slane %v907, 1
        %v948 = vrot.slane %v908, 1
        %v949 = vrot.slane %v909, 1
        %v950 = vrot.slane %v910, 1
        %v951 = vrot.slane %v911, 1
        %v952 = vrot.slane %v912, 1
        %v953 = vrot.slane %v913, 1
        %v954 = vrot.slane %v914, 1
        %v955 = vrot.slane %v915, 1
        %v956 = vrot.slane %v916, 1
        %v957 = vrot.slane %v917, 1
        %v958 = vrot.slane %v918, 1
        %v959 = vrot.slane %v919, 1
        %v960 = vrot.slane %v920, 1
        %v961 = vrot.slane %v921, 1
        %v962 = vrot.slane %v922, 1
        %v963 = vrot.slane %v923, 1
        %v964 = vrot.slane %v924, 1
        %v965 = vrot.slane %v925, 1
        %v966 = vlaneseq
        %v967 = vshrl.u32 %v966, 7
        %vm968 = vcmp.lt.s32.totalorder %v967, 7
        %v969 = vsel %vm968, %v964, %v965
        %v970 = vsel %vm968, %v963, %v964
        %v971 = vsel %vm968, %v962, %v963
        %v972 = vsel %vm968, %v961, %v962
        %v973 = vsel %vm968, %v960, %v961
        %v974 = vsel %vm968, %v959, %v960
        %v975 = vsel %vm968, %v958, %v959
        %v976 = vsel %vm968, %v957, %v958
        %v977 = vsel %vm968, %v956, %v957
        %v978 = vsel %vm968, %v955, %v956
        %v979 = vsel %vm968, %v954, %v955
        %v980 = vsel %vm968, %v953, %v954
        %v981 = vsel %vm968, %v952, %v953
        %v982 = vsel %vm968, %v951, %v952
        %v983 = vsel %vm968, %v950, %v951
        %v984 = vsel %vm968, %v949, %v950
        %v985 = vsel %vm968, %v948, %v949
        %v986 = vsel %vm968, %v947, %v948
        %v987 = vsel %vm968, %v946, %v947
        %v988 = vsel %vm968, %v945, %v946
        %v989 = vsel %vm968, %v944, %v945
        %v990 = vsel %vm968, %v943, %v944
        %v991 = vsel %vm968, %v942, %v943
        %v992 = vsel %vm968, %v941, %v942
        %v993 = vsel %vm968, %v940, %v941
        %v994 = vsel %vm968, %v939, %v940
        %v995 = vsel %vm968, %v938, %v939
        %v996 = vsel %vm968, %v937, %v938
        %v997 = vsel %vm968, %v936, %v937
        %v998 = vsel %vm968, %v935, %v936
        %v999 = vsel %vm968, %v934, %v935
        %v1000 = vsel %vm968, %v965, %v934
        %v1001 = vmax.f32 %v894, %v999
        %v1002 = vmax.f32 %v895, %v998
        %v1003 = vmax.f32 %v896, %v997
        %v1004 = vmax.f32 %v897, %v996
        %v1005 = vmax.f32 %v898, %v995
        %v1006 = vmax.f32 %v899, %v994
        %v1007 = vmax.f32 %v900, %v993
        %v1008 = vmax.f32 %v901, %v992
        %v1009 = vmax.f32 %v902, %v991
        %v1010 = vmax.f32 %v903, %v990
        %v1011 = vmax.f32 %v904, %v989
        %v1012 = vmax.f32 %v905, %v988
        %v1013 = vmax.f32 %v906, %v987
        %v1014 = vmax.f32 %v907, %v986
        %v1015 = vmax.f32 %v908, %v985
        %v1016 = vmax.f32 %v909, %v984
        %v1017 = vmax.f32 %v910, %v983
        %v1018 = vmax.f32 %v911, %v982
        %v1019 = vmax.f32 %v912, %v981
        %v1020 = vmax.f32 %v913, %v980
        %v1021 = vmax.f32 %v914, %v979
        %v1022 = vmax.f32 %v915, %v978
        %v1023 = vmax.f32 %v916, %v977
        %v1024 = vmax.f32 %v917, %v976
        %v1025 = vmax.f32 %v918, %v975
        %v1026 = vmax.f32 %v919, %v974
        %v1027 = vmax.f32 %v920, %v973
        %v1028 = vmax.f32 %v921, %v972
        %v1029 = vmax.f32 %v922, %v971
        %v1030 = vmax.f32 %v923, %v970
        %v1031 = vmax.f32 %v924, %v969
        %v1032 = vmax.f32 %v925, %v1000
        %v1033 = vmax.f32 %v1001, %v1003
        %v1034 = vmax.f32 %v1002, %v1004
        %v1035 = vmax.f32 %v1003, %v1005
        %v1036 = vmax.f32 %v1004, %v1006
        %v1037 = vmax.f32 %v1005, %v1007
        %v1038 = vmax.f32 %v1006, %v1008
        %v1039 = vmax.f32 %v1007, %v1009
        %v1040 = vmax.f32 %v1008, %v1010
        %v1041 = vmax.f32 %v1009, %v1011
        %v1042 = vmax.f32 %v1010, %v1012
        %v1043 = vmax.f32 %v1011, %v1013
        %v1044 = vmax.f32 %v1012, %v1014
        %v1045 = vmax.f32 %v1013, %v1015
        %v1046 = vmax.f32 %v1014, %v1016
        %v1047 = vmax.f32 %v1015, %v1017
        %v1048 = vmax.f32 %v1016, %v1018
        %v1049 = vmax.f32 %v1017, %v1019
        %v1050 = vmax.f32 %v1018, %v1020
        %v1051 = vmax.f32 %v1019, %v1021
        %v1052 = vmax.f32 %v1020, %v1022
        %v1053 = vmax.f32 %v1021, %v1023
        %v1054 = vmax.f32 %v1022, %v1024
        %v1055 = vmax.f32 %v1023, %v1025
        %v1056 = vmax.f32 %v1024, %v1026
        %v1057 = vmax.f32 %v1025, %v1027
        %v1058 = vmax.f32 %v1026, %v1028
        %v1059 = vmax.f32 %v1027, %v1029
        %v1060 = vmax.f32 %v1028, %v1030
        %v1061 = vmax.f32 %v1029, %v1031
        %v1062 = vmax.f32 %v1030, %v1032
        %v1063 = vmax.f32 %v1031, %v1001
        %v1064 = vmax.f32 %v1032, %v1002
        %v1065 = vpack.c.bf16 %v1034, %v1033
        %v1066 = vpack.c.bf16 %v1036, %v1035
        %v1067 = vpack.c.bf16 %v1038, %v1037
        %v1068 = vpack.c.bf16 %v1040, %v1039
        %v1069 = vpack.c.bf16 %v1042, %v1041
        %v1070 = vpack.c.bf16 %v1044, %v1043
        %v1071 = vpack.c.bf16 %v1046, %v1045
        %v1072 = vpack.c.bf16 %v1048, %v1047
        %v1073 = vpack.c.bf16 %v1050, %v1049
        %v1074 = vpack.c.bf16 %v1052, %v1051
        %v1075 = vpack.c.bf16 %v1054, %v1053
        %v1076 = vpack.c.bf16 %v1056, %v1055
        %v1077 = vpack.c.bf16 %v1058, %v1057
        %v1078 = vpack.c.bf16 %v1060, %v1059
        %v1079 = vpack.c.bf16 %v1062, %v1061
        %v1080 = vpack.c.bf16 %v1064, %v1063
        %v1089 = vunpack.c.l.b16 %v926
        %v1090 = vunpack.c.h.b16 %v926
        %v1091 = vunpack.c.l.b16 %v927
        %v1092 = vunpack.c.h.b16 %v927
        %v1093 = vunpack.c.l.b16 %v928
        %v1094 = vunpack.c.h.b16 %v928
        %v1095 = vunpack.c.l.b16 %v929
        %v1096 = vunpack.c.h.b16 %v929
        %v1097 = vunpack.c.l.b16 %v930
        %v1098 = vunpack.c.h.b16 %v930
        %v1099 = vunpack.c.l.b16 %v931
        %v1100 = vunpack.c.h.b16 %v931
        %v1101 = vunpack.c.l.b16 %v932
        %v1102 = vunpack.c.h.b16 %v932
        %v1103 = vunpack.c.l.b16 %v933
        %v1104 = vunpack.c.h.b16 %v933
        %v1105 = vpack.c.b16 %v1091, %v1089
        %v1106 = vpack.c.b16 %v1092, %v1090
        %v1107 = vpack.c.b16 %v1095, %v1093
        %v1108 = vpack.c.b16 %v1096, %v1094
        %v1109 = vpack.c.b16 %v1099, %v1097
        %v1110 = vpack.c.b16 %v1100, %v1098
        %v1111 = vpack.c.b16 %v1103, %v1101
        %v1112 = vpack.c.b16 %v1104, %v1102
        %1121 = vmatpush.bf16.msra.mxu0 %v1072
        %1122 = vmatpush.bf16.msra.mxu0 %v1071
        %1123 = vmatpush.bf16.msra.mxu0 %v1070
        %1124 = vmatpush.bf16.msra.mxu0 %v1069
        %1125 = vmatpush.bf16.msra.mxu0 %v1068
        %1126 = vmatpush.bf16.msra.mxu0 %v1067
        %1127 = vmatpush.bf16.msra.mxu0 %v1066
        %1128 = vmatpush.bf16.msra.mxu0 %v1065
        %1129 = vmatmul.bf16.gmra.mxu0 %v1105
        %v1130 = vpop.f32.mrf.mxu0
        %v1131 = vadd.f32 0.0, %v1130
        %v1132 = vpop.f32.mrf.mxu0
        %v1133 = vadd.f32 0.0, %v1132
        %1134 = vmatmul.bf16.gmra.mxu0 %v1107
        %v1135 = vpop.f32.mrf.mxu0
        %v1136 = vadd.f32 0.0, %v1135
        %v1137 = vpop.f32.mrf.mxu0
        %v1138 = vadd.f32 0.0, %v1137
        %1139 = vmatmul.bf16.gmra.mxu0 %v1109
        %v1140 = vpop.f32.mrf.mxu0
        %v1141 = vadd.f32 0.0, %v1140
        %v1142 = vpop.f32.mrf.mxu0
        %v1143 = vadd.f32 0.0, %v1142
        %1144 = vmatmul.bf16.gmra.mxu0 %v1111
        %v1145 = vpop.f32.mrf.mxu0
        %v1146 = vadd.f32 0.0, %v1145
        %v1147 = vpop.f32.mrf.mxu0
        %v1148 = vadd.f32 0.0, %v1147
        %1149 = vdwg.mxu0
        %1150 = vmatpush.bf16.msra.mxu0 %v1080
        %1151 = vmatpush.bf16.msra.mxu0 %v1079
        %1152 = vmatpush.bf16.msra.mxu0 %v1078
        %1153 = vmatpush.bf16.msra.mxu0 %v1077
        %1154 = vmatpush.bf16.msra.mxu0 %v1076
        %1155 = vmatpush.bf16.msra.mxu0 %v1075
        %1156 = vmatpush.bf16.msra.mxu0 %v1074
        %1157 = vmatpush.bf16.msra.mxu0 %v1073
        %1158 = vmatmul.bf16.gmra.mxu0 %v1106
        %v1159 = vpop.f32.mrf.mxu0
        %v1160 = vadd.f32 %v1131, %v1159
        %v1161 = vpop.f32.mrf.mxu0
        %v1162 = vadd.f32 %v1133, %v1161
        %1163 = vmatmul.bf16.gmra.mxu0 %v1108
        %v1164 = vpop.f32.mrf.mxu0
        %v1165 = vadd.f32 %v1136, %v1164
        %v1166 = vpop.f32.mrf.mxu0
        %v1167 = vadd.f32 %v1138, %v1166
        %1168 = vmatmul.bf16.gmra.mxu0 %v1110
        %v1169 = vpop.f32.mrf.mxu0
        %v1170 = vadd.f32 %v1141, %v1169
        %v1171 = vpop.f32.mrf.mxu0
        %v1172 = vadd.f32 %v1143, %v1171
        %1173 = vmatmul.bf16.gmra.mxu0 %v1112
        %v1174 = vpop.f32.mrf.mxu0
        %v1175 = vadd.f32 %v1146, %v1174
        %v1176 = vpop.f32.mrf.mxu0
        %v1177 = vadd.f32 %v1148, %v1176
        %1178 = vdwg.mxu0
        %v1179 = vadd.s32 %v967, 8
        %v1180 = vadd.s32 %v967, 16
        %v1181 = vadd.s32 %v967, 24
        %v1182 = vadd.s32 %v967, 32
        %v1183 = vadd.s32 %v967, 40
        %v1184 = vadd.s32 %v967, 48
        %v1185 = vadd.s32 %v967, 56
        %v1186 = vshra.s32 %v967, 3
        %v1187 = vshra.s32 %v1179, 3
        %v1188 = vshra.s32 %v1180, 3
        %v1189 = vshra.s32 %v1181, 3
        %v1190 = vshra.s32 %v1182, 3
        %v1191 = vshra.s32 %v1183, 3
        %v1192 = vshra.s32 %v1184, 3
        %v1193 = vshra.s32 %v1185, 3
        %v1194 = vand.u32 %v967, 7
        %v1195 = vand.u32 %v1179, 7
        %v1196 = vand.u32 %v1180, 7
        %v1197 = vand.u32 %v1181, 7
        %v1198 = vand.u32 %v1182, 7
        %v1199 = vand.u32 %v1183, 7
        %v1200 = vand.u32 %v1184, 7
        %v1201 = vand.u32 %v1185, 7
        %v1202 = vrot.slane %v1160, 7
        %v1203 = vrot.slane %v1162, 7
        %v1204 = vrot.slane %v1165, 7
        %v1205 = vrot.slane %v1167, 7
        %v1206 = vrot.slane %v1170, 7
        %v1207 = vrot.slane %v1172, 7
        %v1208 = vrot.slane %v1175, 7
        %v1209 = vrot.slane %v1177, 7
        %vm1210 = vcmp.lt.s32.totalorder %v967, 1
        %v1211 = vsel %vm1210, %v1208, %v1209
        %v1212 = vsel %vm1210, %v1207, %v1208
        %v1213 = vsel %vm1210, %v1206, %v1207
        %v1214 = vsel %vm1210, %v1205, %v1206
        %v1215 = vsel %vm1210, %v1204, %v1205
        %v1216 = vsel %vm1210, %v1203, %v1204
        %v1217 = vsel %vm1210, %v1202, %v1203
        %v1218 = vsel %vm1210, %v1209, %v1202
        %v1219 = vadd.s32 %v1186, 4294967295
        %v1220 = vadd.s32 %v1187, 4294967295
        %v1221 = vadd.s32 %v1188, 4294967295
        %v1222 = vadd.s32 %v1189, 4294967295
        %v1223 = vadd.s32 %v1190, 4294967295
        %v1224 = vadd.s32 %v1191, 4294967295
        %v1225 = vadd.s32 %v1192, 4294967295
        %v1226 = vadd.s32 %v1193, 4294967295
        %vm1227 = vcmp.ge.s32.totalorder %v1219, 0
        %vm1228 = vcmp.ge.s32.totalorder %v1220, 0
        %vm1229 = vcmp.ge.s32.totalorder %v1221, 0
        %vm1230 = vcmp.ge.s32.totalorder %v1222, 0
        %vm1231 = vcmp.ge.s32.totalorder %v1223, 0
        %vm1232 = vcmp.ge.s32.totalorder %v1224, 0
        %vm1233 = vcmp.ge.s32.totalorder %v1225, 0
        %vm1234 = vcmp.ge.s32.totalorder %v1226, 0
        %vm1235 = vcmp.lt.s32.totalorder %v1219, 8
        %vm1236 = vcmp.lt.s32.totalorder %v1220, 8
        %vm1237 = vcmp.lt.s32.totalorder %v1221, 8
        %vm1238 = vcmp.lt.s32.totalorder %v1222, 8
        %vm1239 = vcmp.lt.s32.totalorder %v1223, 8
        %vm1240 = vcmp.lt.s32.totalorder %v1224, 8
        %vm1241 = vcmp.lt.s32.totalorder %v1225, 8
        %vm1242 = vcmp.lt.s32.totalorder %v1226, 8
        %vm1243 = vmand %vm1227, %vm1235
        %vm1244 = vmand %vm1228, %vm1236
        %vm1245 = vmand %vm1229, %vm1237
        %vm1246 = vmand %vm1230, %vm1238
        %vm1247 = vmand %vm1231, %vm1239
        %vm1248 = vmand %vm1232, %vm1240
        %vm1249 = vmand %vm1233, %vm1241
        %vm1250 = vmand %vm1234, %vm1242
        %v1251 = vadd.s32 %v1194, 4294967295
        %v1252 = vadd.s32 %v1195, 4294967295
        %v1253 = vadd.s32 %v1196, 4294967295
        %v1254 = vadd.s32 %v1197, 4294967295
        %v1255 = vadd.s32 %v1198, 4294967295
        %v1256 = vadd.s32 %v1199, 4294967295
        %v1257 = vadd.s32 %v1200, 4294967295
        %v1258 = vadd.s32 %v1201, 4294967295
        %vm1259 = vcmp.ge.s32.totalorder %v1251, 0
        %vm1260 = vcmp.ge.s32.totalorder %v1252, 0
        %vm1261 = vcmp.ge.s32.totalorder %v1253, 0
        %vm1262 = vcmp.ge.s32.totalorder %v1254, 0
        %vm1263 = vcmp.ge.s32.totalorder %v1255, 0
        %vm1264 = vcmp.ge.s32.totalorder %v1256, 0
        %vm1265 = vcmp.ge.s32.totalorder %v1257, 0
        %vm1266 = vcmp.ge.s32.totalorder %v1258, 0
        %vm1267 = vmand %vm1243, %vm1259
        %vm1268 = vmand %vm1244, %vm1260
        %vm1269 = vmand %vm1245, %vm1261
        %vm1270 = vmand %vm1246, %vm1262
        %vm1271 = vmand %vm1247, %vm1263
        %vm1272 = vmand %vm1248, %vm1264
        %vm1273 = vmand %vm1249, %vm1265
        %vm1274 = vmand %vm1250, %vm1266
        %vm1275 = vcmp.lt.s32.totalorder %v1251, 8
        %vm1276 = vcmp.lt.s32.totalorder %v1252, 8
        %vm1277 = vcmp.lt.s32.totalorder %v1253, 8
        %vm1278 = vcmp.lt.s32.totalorder %v1254, 8
        %vm1279 = vcmp.lt.s32.totalorder %v1255, 8
        %vm1280 = vcmp.lt.s32.totalorder %v1256, 8
        %vm1281 = vcmp.lt.s32.totalorder %v1257, 8
        %vm1282 = vcmp.lt.s32.totalorder %v1258, 8
        %vm1283 = vmand %vm1267, %vm1275
        %vm1284 = vmand %vm1268, %vm1276
        %vm1285 = vmand %vm1269, %vm1277
        %vm1286 = vmand %vm1270, %vm1278
        %vm1287 = vmand %vm1271, %vm1279
        %vm1288 = vmand %vm1272, %vm1280
        %vm1289 = vmand %vm1273, %vm1281
        %vm1290 = vmand %vm1274, %vm1282
        %v1291 = vsel %vm1283, 1, 0
        %v1292 = vsel %vm1284, 1, 0
        %v1293 = vsel %vm1285, 1, 0
        %v1294 = vsel %vm1286, 1, 0
        %v1295 = vsel %vm1287, 1, 0
        %v1296 = vsel %vm1288, 1, 0
        %v1297 = vsel %vm1289, 1, 0
        %v1298 = vsel %vm1290, 1, 0
        %vm1299 = vcmp.eq.s32.totalorder %v1291, 1
        %vm1300 = vcmp.eq.s32.totalorder %v1292, 1
        %vm1301 = vcmp.eq.s32.totalorder %v1293, 1
        %vm1302 = vcmp.eq.s32.totalorder %v1294, 1
        %vm1303 = vcmp.eq.s32.totalorder %v1295, 1
        %vm1304 = vcmp.eq.s32.totalorder %v1296, 1
        %vm1305 = vcmp.eq.s32.totalorder %v1297, 1
        %vm1306 = vcmp.eq.s32.totalorder %v1298, 1
        %v1307 = vsel %vm1299, %v1211, 0.0
        %v1308 = vsel %vm1300, %v1218, 0.0
        %v1309 = vsel %vm1301, %v1217, 0.0
        %v1310 = vsel %vm1302, %v1216, 0.0
        %v1311 = vsel %vm1303, %v1215, 0.0
        %v1312 = vsel %vm1304, %v1214, 0.0
        %v1313 = vsel %vm1305, %v1213, 0.0
        %v1314 = vsel %vm1306, %v1212, 0.0
        %v1315 = vpack.c.bf16 %v1308, %v1307
        %v1316 = vpack.c.bf16 %v1310, %v1309
        %v1317 = vpack.c.bf16 %v1312, %v1311
        %v1318 = vpack.c.bf16 %v1314, %v1313
        %v1319 = vld [vmem:[%s4] sm:$0xf]
        %v1320 = vld [vmem:[%s4 + $0x4] sm:$0xf]
        %v1321 = vld [vmem:[%s4 + $0x8] sm:$0xf]
        %v1322 = vld [vmem:[%s4 + $0xc] sm:$0xf]
        %v1323 = vld [vmem:[%s4 + $0x10] sm:$0xf]
        %v1324 = vld [vmem:[%s4 + $0x14] sm:$0xf]
        %v1325 = vld [vmem:[%s4 + $0x18] sm:$0xf]
        %v1326 = vld [vmem:[%s4 + $0x1c] sm:$0xf]
        %v1327 = vld [vmem:[%s4 + $0x20] sm:$0xf]
        %v1328 = vld [vmem:[%s4 + $0x24] sm:$0xf]
        %v1329 = vld [vmem:[%s4 + $0x28] sm:$0xf]
        %v1330 = vld [vmem:[%s4 + $0x2c] sm:$0xf]
        %v1331 = vld [vmem:[%s4 + $0x30] sm:$0xf]
        %v1332 = vld [vmem:[%s4 + $0x34] sm:$0xf]
        %v1333 = vld [vmem:[%s4 + $0x38] sm:$0xf]
        %v1334 = vld [vmem:[%s4 + $0x3c] sm:$0xf]
        %vm1335 = vcmp.ge.s32.totalorder %v1194, 0
        %vm1336 = vcmp.ge.s32.totalorder %v1195, 0
        %vm1337 = vcmp.ge.s32.totalorder %v1196, 0
        %vm1338 = vcmp.ge.s32.totalorder %v1197, 0
        %vm1339 = vcmp.ge.s32.totalorder %v1198, 0
        %vm1340 = vcmp.ge.s32.totalorder %v1199, 0
        %vm1341 = vcmp.ge.s32.totalorder %v1200, 0
        %vm1342 = vcmp.ge.s32.totalorder %v1201, 0
        %vm1343 = vmand %vm1243, %vm1335
        %vm1344 = vmand %vm1244, %vm1336
        %vm1345 = vmand %vm1245, %vm1337
        %vm1346 = vmand %vm1246, %vm1338
        %vm1347 = vmand %vm1247, %vm1339
        %vm1348 = vmand %vm1248, %vm1340
        %vm1349 = vmand %vm1249, %vm1341
        %vm1350 = vmand %vm1250, %vm1342
        %vm1351 = vcmp.lt.s32.totalorder %v1194, 8
        %vm1352 = vcmp.lt.s32.totalorder %v1195, 8
        %vm1353 = vcmp.lt.s32.totalorder %v1196, 8
        %vm1354 = vcmp.lt.s32.totalorder %v1197, 8
        %vm1355 = vcmp.lt.s32.totalorder %v1198, 8
        %vm1356 = vcmp.lt.s32.totalorder %v1199, 8
        %vm1357 = vcmp.lt.s32.totalorder %v1200, 8
        %vm1358 = vcmp.lt.s32.totalorder %v1201, 8
        %vm1359 = vmand %vm1343, %vm1351
        %vm1360 = vmand %vm1344, %vm1352
        %vm1361 = vmand %vm1345, %vm1353
        %vm1362 = vmand %vm1346, %vm1354
        %vm1363 = vmand %vm1347, %vm1355
        %vm1364 = vmand %vm1348, %vm1356
        %vm1365 = vmand %vm1349, %vm1357
        %vm1366 = vmand %vm1350, %vm1358
        %v1367 = vsel %vm1359, 1, 0
        %v1368 = vsel %vm1360, 1, 0
        %v1369 = vsel %vm1361, 1, 0
        %v1370 = vsel %vm1362, 1, 0
        %v1371 = vsel %vm1363, 1, 0
        %v1372 = vsel %vm1364, 1, 0
        %v1373 = vsel %vm1365, 1, 0
        %v1374 = vsel %vm1366, 1, 0
        %vm1375 = vcmp.eq.s32.totalorder %v1367, 1
        %vm1376 = vcmp.eq.s32.totalorder %v1368, 1
        %vm1377 = vcmp.eq.s32.totalorder %v1369, 1
        %vm1378 = vcmp.eq.s32.totalorder %v1370, 1
        %vm1379 = vcmp.eq.s32.totalorder %v1371, 1
        %vm1380 = vcmp.eq.s32.totalorder %v1372, 1
        %vm1381 = vcmp.eq.s32.totalorder %v1373, 1
        %vm1382 = vcmp.eq.s32.totalorder %v1374, 1
        %v1383 = vsel %vm1375, %v1177, 0.0
        %v1384 = vsel %vm1376, %v1160, 0.0
        %v1385 = vsel %vm1377, %v1162, 0.0
        %v1386 = vsel %vm1378, %v1165, 0.0
        %v1387 = vsel %vm1379, %v1167, 0.0
        %v1388 = vsel %vm1380, %v1170, 0.0
        %v1389 = vsel %vm1381, %v1172, 0.0
        %v1390 = vsel %vm1382, %v1175, 0.0
        %v1391 = vpack.c.bf16 %v1384, %v1383
        %v1392 = vpack.c.bf16 %v1386, %v1385
        %v1393 = vpack.c.bf16 %v1388, %v1387
        %v1394 = vpack.c.bf16 %v1390, %v1389
        %s1395 = scalar_lea.vmem %s4, 64
        %v1396 = vld [vmem:[%s1395] sm:$0xf]
        %v1397 = vld [vmem:[%s1395 + $0x4] sm:$0xf]
        %v1398 = vld [vmem:[%s1395 + $0x8] sm:$0xf]
        %v1399 = vld [vmem:[%s1395 + $0xc] sm:$0xf]
        %v1400 = vld [vmem:[%s1395 + $0x10] sm:$0xf]
        %v1401 = vld [vmem:[%s1395 + $0x14] sm:$0xf]
        %v1402 = vld [vmem:[%s1395 + $0x18] sm:$0xf]
        %v1403 = vld [vmem:[%s1395 + $0x1c] sm:$0xf]
        %v1404 = vld [vmem:[%s1395 + $0x20] sm:$0xf]
        %v1405 = vld [vmem:[%s1395 + $0x24] sm:$0xf]
        %v1406 = vld [vmem:[%s1395 + $0x28] sm:$0xf]
        %v1407 = vld [vmem:[%s1395 + $0x2c] sm:$0xf]
        %v1408 = vld [vmem:[%s1395 + $0x30] sm:$0xf]
        %v1409 = vld [vmem:[%s1395 + $0x34] sm:$0xf]
        %v1410 = vld [vmem:[%s1395 + $0x38] sm:$0xf]
        %v1411 = vld [vmem:[%s1395 + $0x3c] sm:$0xf]
        %v1428 = vunpack.c.l.b16 %v1396
        %v1429 = vunpack.c.l.b16 %v1397
        %v1430 = vunpack.c.l.b16 %v1398
        %v1431 = vunpack.c.l.b16 %v1399
        %v1432 = vunpack.c.l.b16 %v1400
        %v1433 = vunpack.c.l.b16 %v1401
        %v1434 = vunpack.c.l.b16 %v1402
        %v1435 = vunpack.c.l.b16 %v1403
        %v1436 = vunpack.c.l.b16 %v1404
        %v1437 = vunpack.c.l.b16 %v1405
        %v1438 = vunpack.c.l.b16 %v1406
        %v1439 = vunpack.c.l.b16 %v1407
        %v1440 = vunpack.c.l.b16 %v1408
        %v1441 = vunpack.c.l.b16 %v1409
        %v1442 = vunpack.c.l.b16 %v1410
        %v1443 = vunpack.c.l.b16 %v1411
        %v1444 = vpack.c.b16 %v1429, %v1428
        %v1445 = vpack.c.b16 %v1431, %v1430
        %v1446 = vpack.c.b16 %v1433, %v1432
        %v1447 = vpack.c.b16 %v1435, %v1434
        %v1448 = vpack.c.b16 %v1437, %v1436
        %v1449 = vpack.c.b16 %v1439, %v1438
        %v1450 = vpack.c.b16 %v1441, %v1440
        %v1451 = vpack.c.b16 %v1443, %v1442
        %1460 = vmatpush.bf16.msra.mxu0 %v1451
        %1461 = vmatpush.bf16.msra.mxu0 %v1450
        %1462 = vmatpush.bf16.msra.mxu0 %v1449
        %1463 = vmatpush.bf16.msra.mxu0 %v1448
        %1464 = vmatpush.bf16.msra.mxu0 %v1447
        %1465 = vmatpush.bf16.msra.mxu0 %v1446
        %1466 = vmatpush.bf16.msra.mxu0 %v1445
        %1467 = vmatpush.bf16.msra.mxu0 %v1444
        %1468 = vmatmul.bf16.gmra.mxu0 %v1391
        %v1469 = vpop.f32.mrf.mxu0
        %v1470 = vadd.f32 0.0, %v1469
        %v1471 = vpop.f32.mrf.mxu0
        %v1472 = vadd.f32 0.0, %v1471
        %1473 = vmatmul.bf16.gmra.mxu0 %v1392
        %v1474 = vpop.f32.mrf.mxu0
        %v1475 = vadd.f32 0.0, %v1474
        %v1476 = vpop.f32.mrf.mxu0
        %v1477 = vadd.f32 0.0, %v1476
        %1478 = vmatmul.bf16.gmra.mxu0 %v1393
        %v1479 = vpop.f32.mrf.mxu0
        %v1480 = vadd.f32 0.0, %v1479
        %v1481 = vpop.f32.mrf.mxu0
        %v1482 = vadd.f32 0.0, %v1481
        %1483 = vmatmul.bf16.gmra.mxu0 %v1394
        %v1484 = vpop.f32.mrf.mxu0
        %v1485 = vadd.f32 0.0, %v1484
        %v1486 = vpop.f32.mrf.mxu0
        %v1487 = vadd.f32 0.0, %v1486
        %1488 = vdwg.mxu0
        %v1505 = vunpack.c.l.b16 %v1319
        %v1506 = vunpack.c.l.b16 %v1320
        %v1507 = vunpack.c.l.b16 %v1321
        %v1508 = vunpack.c.l.b16 %v1322
        %v1509 = vunpack.c.l.b16 %v1323
        %v1510 = vunpack.c.l.b16 %v1324
        %v1511 = vunpack.c.l.b16 %v1325
        %v1512 = vunpack.c.l.b16 %v1326
        %v1513 = vunpack.c.l.b16 %v1327
        %v1514 = vunpack.c.l.b16 %v1328
        %v1515 = vunpack.c.l.b16 %v1329
        %v1516 = vunpack.c.l.b16 %v1330
        %v1517 = vunpack.c.l.b16 %v1331
        %v1518 = vunpack.c.l.b16 %v1332
        %v1519 = vunpack.c.l.b16 %v1333
        %v1520 = vunpack.c.l.b16 %v1334
        %v1521 = vpack.c.b16 %v1506, %v1505
        %v1522 = vpack.c.b16 %v1508, %v1507
        %v1523 = vpack.c.b16 %v1510, %v1509
        %v1524 = vpack.c.b16 %v1512, %v1511
        %v1525 = vpack.c.b16 %v1514, %v1513
        %v1526 = vpack.c.b16 %v1516, %v1515
        %v1527 = vpack.c.b16 %v1518, %v1517
        %v1528 = vpack.c.b16 %v1520, %v1519
        %1537 = vmatpush.bf16.msra.mxu0 %v1528
        %1538 = vmatpush.bf16.msra.mxu0 %v1527
        %1539 = vmatpush.bf16.msra.mxu0 %v1526
        %1540 = vmatpush.bf16.msra.mxu0 %v1525
        %1541 = vmatpush.bf16.msra.mxu0 %v1524
        %1542 = vmatpush.bf16.msra.mxu0 %v1523
        %1543 = vmatpush.bf16.msra.mxu0 %v1522
        %1544 = vmatpush.bf16.msra.mxu0 %v1521
        %1545 = vmatmul.bf16.gmra.mxu0 %v1315
        %v1546 = vpop.f32.mrf.mxu0
        %v1547 = vadd.f32 %v1470, %v1546
        %v1548 = vpop.f32.mrf.mxu0
        %v1549 = vadd.f32 %v1472, %v1548
        %1550 = vmatmul.bf16.gmra.mxu0 %v1316
        %v1551 = vpop.f32.mrf.mxu0
        %v1552 = vadd.f32 %v1475, %v1551
        %v1553 = vpop.f32.mrf.mxu0
        %v1554 = vadd.f32 %v1477, %v1553
        %1555 = vmatmul.bf16.gmra.mxu0 %v1317
        %v1556 = vpop.f32.mrf.mxu0
        %v1557 = vadd.f32 %v1480, %v1556
        %v1558 = vpop.f32.mrf.mxu0
        %v1559 = vadd.f32 %v1482, %v1558
        %1560 = vmatmul.bf16.gmra.mxu0 %v1318
        %v1561 = vpop.f32.mrf.mxu0
        %v1562 = vadd.f32 %v1485, %v1561
        %v1563 = vpop.f32.mrf.mxu0
        %v1564 = vadd.f32 %v1487, %v1563
        %1565 = vdwg.mxu0
        %v1566 = vrot.slane %v1160, 1
        %v1567 = vrot.slane %v1162, 1
        %v1568 = vrot.slane %v1165, 1
        %v1569 = vrot.slane %v1167, 1
        %v1570 = vrot.slane %v1170, 1
        %v1571 = vrot.slane %v1172, 1
        %v1572 = vrot.slane %v1175, 1
        %v1573 = vrot.slane %v1177, 1
        %v1574 = vsel %vm968, %v1572, %v1573
        %v1575 = vsel %vm968, %v1571, %v1572
        %v1576 = vsel %vm968, %v1570, %v1571
        %v1577 = vsel %vm968, %v1569, %v1570
        %v1578 = vsel %vm968, %v1568, %v1569
        %v1579 = vsel %vm968, %v1567, %v1568
        %v1580 = vsel %vm968, %v1566, %v1567
        %v1581 = vsel %vm968, %v1573, %v1566
        %v1582 = vadd.s32 %v1194, 1
        %v1583 = vadd.s32 %v1195, 1
        %v1584 = vadd.s32 %v1196, 1
        %v1585 = vadd.s32 %v1197, 1
        %v1586 = vadd.s32 %v1198, 1
        %v1587 = vadd.s32 %v1199, 1
        %v1588 = vadd.s32 %v1200, 1
        %v1589 = vadd.s32 %v1201, 1
        %vm1590 = vcmp.ge.s32.totalorder %v1582, 0
        %vm1591 = vcmp.ge.s32.totalorder %v1583, 0
        %vm1592 = vcmp.ge.s32.totalorder %v1584, 0
        %vm1593 = vcmp.ge.s32.totalorder %v1585, 0
        %vm1594 = vcmp.ge.s32.totalorder %v1586, 0
        %vm1595 = vcmp.ge.s32.totalorder %v1587, 0
        %vm1596 = vcmp.ge.s32.totalorder %v1588, 0
        %vm1597 = vcmp.ge.s32.totalorder %v1589, 0
        %vm1598 = vmand %vm1243, %vm1590
        %vm1599 = vmand %vm1244, %vm1591
        %vm1600 = vmand %vm1245, %vm1592
        %vm1601 = vmand %vm1246, %vm1593
        %vm1602 = vmand %vm1247, %vm1594
        %vm1603 = vmand %vm1248, %vm1595
        %vm1604 = vmand %vm1249, %vm1596
        %vm1605 = vmand %vm1250, %vm1597
        %vm1606 = vcmp.lt.s32.totalorder %v1582, 8
        %vm1607 = vcmp.lt.s32.totalorder %v1583, 8
        %vm1608 = vcmp.lt.s32.totalorder %v1584, 8
        %vm1609 = vcmp.lt.s32.totalorder %v1585, 8
        %vm1610 = vcmp.lt.s32.totalorder %v1586, 8
        %vm1611 = vcmp.lt.s32.totalorder %v1587, 8
        %vm1612 = vcmp.lt.s32.totalorder %v1588, 8
        %vm1613 = vcmp.lt.s32.totalorder %v1589, 8
        %vm1614 = vmand %vm1598, %vm1606
        %vm1615 = vmand %vm1599, %vm1607
        %vm1616 = vmand %vm1600, %vm1608
        %vm1617 = vmand %vm1601, %vm1609
        %vm1618 = vmand %vm1602, %vm1610
        %vm1619 = vmand %vm1603, %vm1611
        %vm1620 = vmand %vm1604, %vm1612
        %vm1621 = vmand %vm1605, %vm1613
        %v1622 = vsel %vm1614, 1, 0
        %v1623 = vsel %vm1615, 1, 0
        %v1624 = vsel %vm1616, 1, 0
        %v1625 = vsel %vm1617, 1, 0
        %v1626 = vsel %vm1618, 1, 0
        %v1627 = vsel %vm1619, 1, 0
        %v1628 = vsel %vm1620, 1, 0
        %v1629 = vsel %vm1621, 1, 0
        %vm1630 = vcmp.eq.s32.totalorder %v1622, 1
        %vm1631 = vcmp.eq.s32.totalorder %v1623, 1
        %vm1632 = vcmp.eq.s32.totalorder %v1624, 1
        %vm1633 = vcmp.eq.s32.totalorder %v1625, 1
        %vm1634 = vcmp.eq.s32.totalorder %v1626, 1
        %vm1635 = vcmp.eq.s32.totalorder %v1627, 1
        %vm1636 = vcmp.eq.s32.totalorder %v1628, 1
        %vm1637 = vcmp.eq.s32.totalorder %v1629, 1
        %v1638 = vsel %vm1630, %v1581, 0.0
        %v1639 = vsel %vm1631, %v1580, 0.0
        %v1640 = vsel %vm1632, %v1579, 0.0
        %v1641 = vsel %vm1633, %v1578, 0.0
        %v1642 = vsel %vm1634, %v1577, 0.0
        %v1643 = vsel %vm1635, %v1576, 0.0
        %v1644 = vsel %vm1636, %v1575, 0.0
        %v1645 = vsel %vm1637, %v1574, 0.0
        %v1646 = vpack.c.bf16 %v1639, %v1638
        %v1647 = vpack.c.bf16 %v1641, %v1640
        %v1648 = vpack.c.bf16 %v1643, %v1642
        %v1649 = vpack.c.bf16 %v1645, %v1644
        %s1650 = scalar_lea.vmem %s4, 128
        %v1651 = vld [vmem:[%s1650] sm:$0xf]
        %v1652 = vld [vmem:[%s1650 + $0x4] sm:$0xf]
        %v1653 = vld [vmem:[%s1650 + $0x8] sm:$0xf]
        %v1654 = vld [vmem:[%s1650 + $0xc] sm:$0xf]
        %v1655 = vld [vmem:[%s1650 + $0x10] sm:$0xf]
        %v1656 = vld [vmem:[%s1650 + $0x14] sm:$0xf]
        %v1657 = vld [vmem:[%s1650 + $0x18] sm:$0xf]
        %v1658 = vld [vmem:[%s1650 + $0x1c] sm:$0xf]
        %v1659 = vld [vmem:[%s1650 + $0x20] sm:$0xf]
        %v1660 = vld [vmem:[%s1650 + $0x24] sm:$0xf]
        %v1661 = vld [vmem:[%s1650 + $0x28] sm:$0xf]
        %v1662 = vld [vmem:[%s1650 + $0x2c] sm:$0xf]
        %v1663 = vld [vmem:[%s1650 + $0x30] sm:$0xf]
        %v1664 = vld [vmem:[%s1650 + $0x34] sm:$0xf]
        %v1665 = vld [vmem:[%s1650 + $0x38] sm:$0xf]
        %v1666 = vld [vmem:[%s1650 + $0x3c] sm:$0xf]
        %v1683 = vunpack.c.l.b16 %v1651
        %v1684 = vunpack.c.l.b16 %v1652
        %v1685 = vunpack.c.l.b16 %v1653
        %v1686 = vunpack.c.l.b16 %v1654
        %v1687 = vunpack.c.l.b16 %v1655
        %v1688 = vunpack.c.l.b16 %v1656
        %v1689 = vunpack.c.l.b16 %v1657
        %v1690 = vunpack.c.l.b16 %v1658
        %v1691 = vunpack.c.l.b16 %v1659
        %v1692 = vunpack.c.l.b16 %v1660
        %v1693 = vunpack.c.l.b16 %v1661
        %v1694 = vunpack.c.l.b16 %v1662
        %v1695 = vunpack.c.l.b16 %v1663
        %v1696 = vunpack.c.l.b16 %v1664
        %v1697 = vunpack.c.l.b16 %v1665
        %v1698 = vunpack.c.l.b16 %v1666
        %v1699 = vpack.c.b16 %v1684, %v1683
        %v1700 = vpack.c.b16 %v1686, %v1685
        %v1701 = vpack.c.b16 %v1688, %v1687
        %v1702 = vpack.c.b16 %v1690, %v1689
        %v1703 = vpack.c.b16 %v1692, %v1691
        %v1704 = vpack.c.b16 %v1694, %v1693
        %v1705 = vpack.c.b16 %v1696, %v1695
        %v1706 = vpack.c.b16 %v1698, %v1697
        %1715 = vmatpush.bf16.msra.mxu0 %v1706
        %1716 = vmatpush.bf16.msra.mxu0 %v1705
        %1717 = vmatpush.bf16.msra.mxu0 %v1704
        %1718 = vmatpush.bf16.msra.mxu0 %v1703
        %1719 = vmatpush.bf16.msra.mxu0 %v1702
        %1720 = vmatpush.bf16.msra.mxu0 %v1701
        %1721 = vmatpush.bf16.msra.mxu0 %v1700
        %1722 = vmatpush.bf16.msra.mxu0 %v1699
        %1723 = vmatmul.bf16.gmra.mxu0 %v1646
        %v1724 = vpop.f32.mrf.mxu0
        %v1725 = vadd.f32 0.0, %v1724
        %v1726 = vpop.f32.mrf.mxu0
        %v1727 = vadd.f32 0.0, %v1726
        %1728 = vmatmul.bf16.gmra.mxu0 %v1647
        %v1729 = vpop.f32.mrf.mxu0
        %v1730 = vadd.f32 0.0, %v1729
        %v1731 = vpop.f32.mrf.mxu0
        %v1732 = vadd.f32 0.0, %v1731
        %1733 = vmatmul.bf16.gmra.mxu0 %v1648
        %v1734 = vpop.f32.mrf.mxu0
        %v1735 = vadd.f32 0.0, %v1734
        %v1736 = vpop.f32.mrf.mxu0
        %v1737 = vadd.f32 0.0, %v1736
        %1738 = vmatmul.bf16.gmra.mxu0 %v1649
        %v1739 = vpop.f32.mrf.mxu0
        %v1740 = vadd.f32 0.0, %v1739
        %v1741 = vpop.f32.mrf.mxu0
        %v1742 = vadd.f32 0.0, %v1741
        %1743 = vdwg.mxu0
        %v1744 = vadd.f32 %v1547, %v1725
        %v1745 = vadd.f32 %v1549, %v1727
        %v1746 = vadd.f32 %v1552, %v1730
        %v1747 = vadd.f32 %v1554, %v1732
        %v1748 = vadd.f32 %v1557, %v1735
        %v1749 = vadd.f32 %v1559, %v1737
        %v1750 = vadd.f32 %v1562, %v1740
        %v1751 = vadd.f32 %v1564, %v1742
        %vm1752 = vcmp.ge.s32.totalorder %v1186, 0
        %vm1753 = vcmp.ge.s32.totalorder %v1187, 0
        %vm1754 = vcmp.ge.s32.totalorder %v1188, 0
        %vm1755 = vcmp.ge.s32.totalorder %v1189, 0
        %vm1756 = vcmp.ge.s32.totalorder %v1190, 0
        %vm1757 = vcmp.ge.s32.totalorder %v1191, 0
        %vm1758 = vcmp.ge.s32.totalorder %v1192, 0
        %vm1759 = vcmp.ge.s32.totalorder %v1193, 0
        %vm1760 = vcmp.lt.s32.totalorder %v1186, 8
        %vm1761 = vcmp.lt.s32.totalorder %v1187, 8
        %vm1762 = vcmp.lt.s32.totalorder %v1188, 8
        %vm1763 = vcmp.lt.s32.totalorder %v1189, 8
        %vm1764 = vcmp.lt.s32.totalorder %v1190, 8
        %vm1765 = vcmp.lt.s32.totalorder %v1191, 8
        %vm1766 = vcmp.lt.s32.totalorder %v1192, 8
        %vm1767 = vcmp.lt.s32.totalorder %v1193, 8
        %vm1768 = vmand %vm1752, %vm1760
        %vm1769 = vmand %vm1753, %vm1761
        %vm1770 = vmand %vm1754, %vm1762
        %vm1771 = vmand %vm1755, %vm1763
        %vm1772 = vmand %vm1756, %vm1764
        %vm1773 = vmand %vm1757, %vm1765
        %vm1774 = vmand %vm1758, %vm1766
        %vm1775 = vmand %vm1759, %vm1767
        %vm1776 = vmand %vm1768, %vm1259
        %vm1777 = vmand %vm1769, %vm1260
        %vm1778 = vmand %vm1770, %vm1261
        %vm1779 = vmand %vm1771, %vm1262
        %vm1780 = vmand %vm1772, %vm1263
        %vm1781 = vmand %vm1773, %vm1264
        %vm1782 = vmand %vm1774, %vm1265
        %vm1783 = vmand %vm1775, %vm1266
        %vm1784 = vmand %vm1776, %vm1275
        %vm1785 = vmand %vm1777, %vm1276
        %vm1786 = vmand %vm1778, %vm1277
        %vm1787 = vmand %vm1779, %vm1278
        %vm1788 = vmand %vm1780, %vm1279
        %vm1789 = vmand %vm1781, %vm1280
        %vm1790 = vmand %vm1782, %vm1281
        %vm1791 = vmand %vm1783, %vm1282
        %v1792 = vsel %vm1784, 1, 0
        %v1793 = vsel %vm1785, 1, 0
        %v1794 = vsel %vm1786, 1, 0
        %v1795 = vsel %vm1787, 1, 0
        %v1796 = vsel %vm1788, 1, 0
        %v1797 = vsel %vm1789, 1, 0
        %v1798 = vsel %vm1790, 1, 0
        %v1799 = vsel %vm1791, 1, 0
        %vm1800 = vcmp.eq.s32.totalorder %v1792, 1
        %vm1801 = vcmp.eq.s32.totalorder %v1793, 1
        %vm1802 = vcmp.eq.s32.totalorder %v1794, 1
        %vm1803 = vcmp.eq.s32.totalorder %v1795, 1
        %vm1804 = vcmp.eq.s32.totalorder %v1796, 1
        %vm1805 = vcmp.eq.s32.totalorder %v1797, 1
        %vm1806 = vcmp.eq.s32.totalorder %v1798, 1
        %vm1807 = vcmp.eq.s32.totalorder %v1799, 1
        %v1808 = vsel %vm1800, %v1218, 0.0
        %v1809 = vsel %vm1801, %v1217, 0.0
        %v1810 = vsel %vm1802, %v1216, 0.0
        %v1811 = vsel %vm1803, %v1215, 0.0
        %v1812 = vsel %vm1804, %v1214, 0.0
        %v1813 = vsel %vm1805, %v1213, 0.0
        %v1814 = vsel %vm1806, %v1212, 0.0
        %v1815 = vsel %vm1807, %v1211, 0.0
        %v1816 = vpack.c.bf16 %v1809, %v1808
        %v1817 = vpack.c.bf16 %v1811, %v1810
        %v1818 = vpack.c.bf16 %v1813, %v1812
        %v1819 = vpack.c.bf16 %v1815, %v1814
        %s1820 = scalar_lea.vmem %s4, 192
        %v1821 = vld [vmem:[%s1820] sm:$0xf]
        %v1822 = vld [vmem:[%s1820 + $0x4] sm:$0xf]
        %v1823 = vld [vmem:[%s1820 + $0x8] sm:$0xf]
        %v1824 = vld [vmem:[%s1820 + $0xc] sm:$0xf]
        %v1825 = vld [vmem:[%s1820 + $0x10] sm:$0xf]
        %v1826 = vld [vmem:[%s1820 + $0x14] sm:$0xf]
        %v1827 = vld [vmem:[%s1820 + $0x18] sm:$0xf]
        %v1828 = vld [vmem:[%s1820 + $0x1c] sm:$0xf]
        %v1829 = vld [vmem:[%s1820 + $0x20] sm:$0xf]
        %v1830 = vld [vmem:[%s1820 + $0x24] sm:$0xf]
        %v1831 = vld [vmem:[%s1820 + $0x28] sm:$0xf]
        %v1832 = vld [vmem:[%s1820 + $0x2c] sm:$0xf]
        %v1833 = vld [vmem:[%s1820 + $0x30] sm:$0xf]
        %v1834 = vld [vmem:[%s1820 + $0x34] sm:$0xf]
        %v1835 = vld [vmem:[%s1820 + $0x38] sm:$0xf]
        %v1836 = vld [vmem:[%s1820 + $0x3c] sm:$0xf]
        %v1853 = vunpack.c.l.b16 %v1821
        %v1854 = vunpack.c.l.b16 %v1822
        %v1855 = vunpack.c.l.b16 %v1823
        %v1856 = vunpack.c.l.b16 %v1824
        %v1857 = vunpack.c.l.b16 %v1825
        %v1858 = vunpack.c.l.b16 %v1826
        %v1859 = vunpack.c.l.b16 %v1827
        %v1860 = vunpack.c.l.b16 %v1828
        %v1861 = vunpack.c.l.b16 %v1829
        %v1862 = vunpack.c.l.b16 %v1830
        %v1863 = vunpack.c.l.b16 %v1831
        %v1864 = vunpack.c.l.b16 %v1832
        %v1865 = vunpack.c.l.b16 %v1833
        %v1866 = vunpack.c.l.b16 %v1834
        %v1867 = vunpack.c.l.b16 %v1835
        %v1868 = vunpack.c.l.b16 %v1836
        %v1869 = vpack.c.b16 %v1854, %v1853
        %v1870 = vpack.c.b16 %v1856, %v1855
        %v1871 = vpack.c.b16 %v1858, %v1857
        %v1872 = vpack.c.b16 %v1860, %v1859
        %v1873 = vpack.c.b16 %v1862, %v1861
        %v1874 = vpack.c.b16 %v1864, %v1863
        %v1875 = vpack.c.b16 %v1866, %v1865
        %v1876 = vpack.c.b16 %v1868, %v1867
        %1885 = vmatpush.bf16.msra.mxu0 %v1876
        %1886 = vmatpush.bf16.msra.mxu0 %v1875
        %1887 = vmatpush.bf16.msra.mxu0 %v1874
        %1888 = vmatpush.bf16.msra.mxu0 %v1873
        %1889 = vmatpush.bf16.msra.mxu0 %v1872
        %1890 = vmatpush.bf16.msra.mxu0 %v1871
        %1891 = vmatpush.bf16.msra.mxu0 %v1870
        %1892 = vmatpush.bf16.msra.mxu0 %v1869
        %1893 = vmatmul.bf16.gmra.mxu0 %v1816
        %v1894 = vpop.f32.mrf.mxu0
        %v1895 = vadd.f32 0.0, %v1894
        %v1896 = vpop.f32.mrf.mxu0
        %v1897 = vadd.f32 0.0, %v1896
        %1898 = vmatmul.bf16.gmra.mxu0 %v1817
        %v1899 = vpop.f32.mrf.mxu0
        %v1900 = vadd.f32 0.0, %v1899
        %v1901 = vpop.f32.mrf.mxu0
        %v1902 = vadd.f32 0.0, %v1901
        %1903 = vmatmul.bf16.gmra.mxu0 %v1818
        %v1904 = vpop.f32.mrf.mxu0
        %v1905 = vadd.f32 0.0, %v1904
        %v1906 = vpop.f32.mrf.mxu0
        %v1907 = vadd.f32 0.0, %v1906
        %1908 = vmatmul.bf16.gmra.mxu0 %v1819
        %v1909 = vpop.f32.mrf.mxu0
        %v1910 = vadd.f32 0.0, %v1909
        %v1911 = vpop.f32.mrf.mxu0
        %v1912 = vadd.f32 0.0, %v1911
        %1913 = vdwg.mxu0
        %v1914 = vadd.f32 %v1744, %v1895
        %v1915 = vadd.f32 %v1745, %v1897
        %v1916 = vadd.f32 %v1746, %v1900
        %v1917 = vadd.f32 %v1747, %v1902
        %v1918 = vadd.f32 %v1748, %v1905
        %v1919 = vadd.f32 %v1749, %v1907
        %v1920 = vadd.f32 %v1750, %v1910
        %v1921 = vadd.f32 %v1751, %v1912
        %v1922 = vpack.c.bf16 %v1162, %v1160
        %v1923 = vpack.c.bf16 %v1167, %v1165
        %v1924 = vpack.c.bf16 %v1172, %v1170
        %v1925 = vpack.c.bf16 %v1177, %v1175
        %s1926 = scalar_lea.vmem %s4, 256
        %v1927 = vld [vmem:[%s1926] sm:$0xf]
        %v1928 = vld [vmem:[%s1926 + $0x4] sm:$0xf]
        %v1929 = vld [vmem:[%s1926 + $0x8] sm:$0xf]
        %v1930 = vld [vmem:[%s1926 + $0xc] sm:$0xf]
        %v1931 = vld [vmem:[%s1926 + $0x10] sm:$0xf]
        %v1932 = vld [vmem:[%s1926 + $0x14] sm:$0xf]
        %v1933 = vld [vmem:[%s1926 + $0x18] sm:$0xf]
        %v1934 = vld [vmem:[%s1926 + $0x1c] sm:$0xf]
        %v1935 = vld [vmem:[%s1926 + $0x20] sm:$0xf]
        %v1936 = vld [vmem:[%s1926 + $0x24] sm:$0xf]
        %v1937 = vld [vmem:[%s1926 + $0x28] sm:$0xf]
        %v1938 = vld [vmem:[%s1926 + $0x2c] sm:$0xf]
        %v1939 = vld [vmem:[%s1926 + $0x30] sm:$0xf]
        %v1940 = vld [vmem:[%s1926 + $0x34] sm:$0xf]
        %v1941 = vld [vmem:[%s1926 + $0x38] sm:$0xf]
        %v1942 = vld [vmem:[%s1926 + $0x3c] sm:$0xf]
        %v1959 = vunpack.c.l.b16 %v1927
        %v1960 = vunpack.c.l.b16 %v1928
        %v1961 = vunpack.c.l.b16 %v1929
        %v1962 = vunpack.c.l.b16 %v1930
        %v1963 = vunpack.c.l.b16 %v1931
        %v1964 = vunpack.c.l.b16 %v1932
        %v1965 = vunpack.c.l.b16 %v1933
        %v1966 = vunpack.c.l.b16 %v1934
        %v1967 = vunpack.c.l.b16 %v1935
        %v1968 = vunpack.c.l.b16 %v1936
        %v1969 = vunpack.c.l.b16 %v1937
        %v1970 = vunpack.c.l.b16 %v1938
        %v1971 = vunpack.c.l.b16 %v1939
        %v1972 = vunpack.c.l.b16 %v1940
        %v1973 = vunpack.c.l.b16 %v1941
        %v1974 = vunpack.c.l.b16 %v1942
        %v1975 = vpack.c.b16 %v1960, %v1959
        %v1976 = vpack.c.b16 %v1962, %v1961
        %v1977 = vpack.c.b16 %v1964, %v1963
        %v1978 = vpack.c.b16 %v1966, %v1965
        %v1979 = vpack.c.b16 %v1968, %v1967
        %v1980 = vpack.c.b16 %v1970, %v1969
        %v1981 = vpack.c.b16 %v1972, %v1971
        %v1982 = vpack.c.b16 %v1974, %v1973
        %1991 = vmatpush.bf16.msra.mxu0 %v1982
        %1992 = vmatpush.bf16.msra.mxu0 %v1981
        %1993 = vmatpush.bf16.msra.mxu0 %v1980
        %1994 = vmatpush.bf16.msra.mxu0 %v1979
        %1995 = vmatpush.bf16.msra.mxu0 %v1978
        %1996 = vmatpush.bf16.msra.mxu0 %v1977
        %1997 = vmatpush.bf16.msra.mxu0 %v1976
        %1998 = vmatpush.bf16.msra.mxu0 %v1975
        %1999 = vmatmul.bf16.gmra.mxu0 %v1922
        %v2000 = vpop.f32.mrf.mxu0
        %v2001 = vadd.f32 0.0, %v2000
        %v2002 = vpop.f32.mrf.mxu0
        %v2003 = vadd.f32 0.0, %v2002
        %2004 = vmatmul.bf16.gmra.mxu0 %v1923
        %v2005 = vpop.f32.mrf.mxu0
        %v2006 = vadd.f32 0.0, %v2005
        %v2007 = vpop.f32.mrf.mxu0
        %v2008 = vadd.f32 0.0, %v2007
        %2009 = vmatmul.bf16.gmra.mxu0 %v1924
        %v2010 = vpop.f32.mrf.mxu0
        %v2011 = vadd.f32 0.0, %v2010
        %v2012 = vpop.f32.mrf.mxu0
        %v2013 = vadd.f32 0.0, %v2012
        %2014 = vmatmul.bf16.gmra.mxu0 %v1925
        %v2015 = vpop.f32.mrf.mxu0
        %v2016 = vadd.f32 0.0, %v2015
        %v2017 = vpop.f32.mrf.mxu0
        %v2018 = vadd.f32 0.0, %v2017
        %2019 = vdwg.mxu0
        %v2020 = vadd.f32 %v1914, %v2001
        %v2021 = vadd.f32 %v1915, %v2003
        %v2022 = vadd.f32 %v1916, %v2006
        %v2023 = vadd.f32 %v1917, %v2008
        %v2024 = vadd.f32 %v1918, %v2011
        %v2025 = vadd.f32 %v1919, %v2013
        %v2026 = vadd.f32 %v1920, %v2016
        %v2027 = vadd.f32 %v1921, %v2018
        %vm2028 = vmand %vm1768, %vm1590
        %vm2029 = vmand %vm1769, %vm1591
        %vm2030 = vmand %vm1770, %vm1592
        %vm2031 = vmand %vm1771, %vm1593
        %vm2032 = vmand %vm1772, %vm1594
        %vm2033 = vmand %vm1773, %vm1595
        %vm2034 = vmand %vm1774, %vm1596
        %vm2035 = vmand %vm1775, %vm1597
        %vm2036 = vmand %vm2028, %vm1606
        %vm2037 = vmand %vm2029, %vm1607
        %vm2038 = vmand %vm2030, %vm1608
        %vm2039 = vmand %vm2031, %vm1609
        %vm2040 = vmand %vm2032, %vm1610
        %vm2041 = vmand %vm2033, %vm1611
        %vm2042 = vmand %vm2034, %vm1612
        %vm2043 = vmand %vm2035, %vm1613
        %v2044 = vsel %vm2036, 1, 0
        %v2045 = vsel %vm2037, 1, 0
        %v2046 = vsel %vm2038, 1, 0
        %v2047 = vsel %vm2039, 1, 0
        %v2048 = vsel %vm2040, 1, 0
        %v2049 = vsel %vm2041, 1, 0
        %v2050 = vsel %vm2042, 1, 0
        %v2051 = vsel %vm2043, 1, 0
        %vm2052 = vcmp.eq.s32.totalorder %v2044, 1
        %vm2053 = vcmp.eq.s32.totalorder %v2045, 1
        %vm2054 = vcmp.eq.s32.totalorder %v2046, 1
        %vm2055 = vcmp.eq.s32.totalorder %v2047, 1
        %vm2056 = vcmp.eq.s32.totalorder %v2048, 1
        %vm2057 = vcmp.eq.s32.totalorder %v2049, 1
        %vm2058 = vcmp.eq.s32.totalorder %v2050, 1
        %vm2059 = vcmp.eq.s32.totalorder %v2051, 1
        %v2060 = vsel %vm2052, %v1580, 0.0
        %v2061 = vsel %vm2053, %v1579, 0.0
        %v2062 = vsel %vm2054, %v1578, 0.0
        %v2063 = vsel %vm2055, %v1577, 0.0
        %v2064 = vsel %vm2056, %v1576, 0.0
        %v2065 = vsel %vm2057, %v1575, 0.0
        %v2066 = vsel %vm2058, %v1574, 0.0
        %v2067 = vsel %vm2059, %v1581, 0.0
        %v2068 = vpack.c.bf16 %v2061, %v2060
        %v2069 = vpack.c.bf16 %v2063, %v2062
        %v2070 = vpack.c.bf16 %v2065, %v2064
        %v2071 = vpack.c.bf16 %v2067, %v2066
        %s2072 = scalar_lea.vmem %s4, 320
        %v2073 = vld [vmem:[%s2072] sm:$0xf]
        %v2074 = vld [vmem:[%s2072 + $0x4] sm:$0xf]
        %v2075 = vld [vmem:[%s2072 + $0x8] sm:$0xf]
        %v2076 = vld [vmem:[%s2072 + $0xc] sm:$0xf]
        %v2077 = vld [vmem:[%s2072 + $0x10] sm:$0xf]
        %v2078 = vld [vmem:[%s2072 + $0x14] sm:$0xf]
        %v2079 = vld [vmem:[%s2072 + $0x18] sm:$0xf]
        %v2080 = vld [vmem:[%s2072 + $0x1c] sm:$0xf]
        %v2081 = vld [vmem:[%s2072 + $0x20] sm:$0xf]
        %v2082 = vld [vmem:[%s2072 + $0x24] sm:$0xf]
        %v2083 = vld [vmem:[%s2072 + $0x28] sm:$0xf]
        %v2084 = vld [vmem:[%s2072 + $0x2c] sm:$0xf]
        %v2085 = vld [vmem:[%s2072 + $0x30] sm:$0xf]
        %v2086 = vld [vmem:[%s2072 + $0x34] sm:$0xf]
        %v2087 = vld [vmem:[%s2072 + $0x38] sm:$0xf]
        %v2088 = vld [vmem:[%s2072 + $0x3c] sm:$0xf]
        %v2105 = vunpack.c.l.b16 %v2073
        %v2106 = vunpack.c.l.b16 %v2074
        %v2107 = vunpack.c.l.b16 %v2075
        %v2108 = vunpack.c.l.b16 %v2076
        %v2109 = vunpack.c.l.b16 %v2077
        %v2110 = vunpack.c.l.b16 %v2078
        %v2111 = vunpack.c.l.b16 %v2079
        %v2112 = vunpack.c.l.b16 %v2080
        %v2113 = vunpack.c.l.b16 %v2081
        %v2114 = vunpack.c.l.b16 %v2082
        %v2115 = vunpack.c.l.b16 %v2083
        %v2116 = vunpack.c.l.b16 %v2084
        %v2117 = vunpack.c.l.b16 %v2085
        %v2118 = vunpack.c.l.b16 %v2086
        %v2119 = vunpack.c.l.b16 %v2087
        %v2120 = vunpack.c.l.b16 %v2088
        %v2121 = vpack.c.b16 %v2106, %v2105
        %v2122 = vpack.c.b16 %v2108, %v2107
        %v2123 = vpack.c.b16 %v2110, %v2109
        %v2124 = vpack.c.b16 %v2112, %v2111
        %v2125 = vpack.c.b16 %v2114, %v2113
        %v2126 = vpack.c.b16 %v2116, %v2115
        %v2127 = vpack.c.b16 %v2118, %v2117
        %v2128 = vpack.c.b16 %v2120, %v2119
        %2137 = vmatpush.bf16.msra.mxu0 %v2128
        %2138 = vmatpush.bf16.msra.mxu0 %v2127
        %2139 = vmatpush.bf16.msra.mxu0 %v2126
        %2140 = vmatpush.bf16.msra.mxu0 %v2125
        %2141 = vmatpush.bf16.msra.mxu0 %v2124
        %2142 = vmatpush.bf16.msra.mxu0 %v2123
        %2143 = vmatpush.bf16.msra.mxu0 %v2122
        %2144 = vmatpush.bf16.msra.mxu0 %v2121
        %2145 = vmatmul.bf16.gmra.mxu0 %v2068
        %v2146 = vpop.f32.mrf.mxu0
        %v2147 = vadd.f32 0.0, %v2146
        %v2148 = vpop.f32.mrf.mxu0
        %v2149 = vadd.f32 0.0, %v2148
        %2150 = vmatmul.bf16.gmra.mxu0 %v2069
        %v2151 = vpop.f32.mrf.mxu0
        %v2152 = vadd.f32 0.0, %v2151
        %v2153 = vpop.f32.mrf.mxu0
        %v2154 = vadd.f32 0.0, %v2153
        %2155 = vmatmul.bf16.gmra.mxu0 %v2070
        %v2156 = vpop.f32.mrf.mxu0
        %v2157 = vadd.f32 0.0, %v2156
        %v2158 = vpop.f32.mrf.mxu0
        %v2159 = vadd.f32 0.0, %v2158
        %2160 = vmatmul.bf16.gmra.mxu0 %v2071
        %v2161 = vpop.f32.mrf.mxu0
        %v2162 = vadd.f32 0.0, %v2161
        %v2163 = vpop.f32.mrf.mxu0
        %v2164 = vadd.f32 0.0, %v2163
        %2165 = vdwg.mxu0
        %v2166 = vadd.f32 %v2020, %v2147
        %v2167 = vadd.f32 %v2021, %v2149
        %v2168 = vadd.f32 %v2022, %v2152
        %v2169 = vadd.f32 %v2023, %v2154
        %v2170 = vadd.f32 %v2024, %v2157
        %v2171 = vadd.f32 %v2025, %v2159
        %v2172 = vadd.f32 %v2026, %v2162
        %v2173 = vadd.f32 %v2027, %v2164
        %v2174 = vadd.s32 %v1186, 1
        %v2175 = vadd.s32 %v1187, 1
        %v2176 = vadd.s32 %v1188, 1
        %v2177 = vadd.s32 %v1189, 1
        %v2178 = vadd.s32 %v1190, 1
        %v2179 = vadd.s32 %v1191, 1
        %v2180 = vadd.s32 %v1192, 1
        %v2181 = vadd.s32 %v1193, 1
        %vm2182 = vcmp.ge.s32.totalorder %v2174, 0
        %vm2183 = vcmp.ge.s32.totalorder %v2175, 0
        %vm2184 = vcmp.ge.s32.totalorder %v2176, 0
        %vm2185 = vcmp.ge.s32.totalorder %v2177, 0
        %vm2186 = vcmp.ge.s32.totalorder %v2178, 0
        %vm2187 = vcmp.ge.s32.totalorder %v2179, 0
        %vm2188 = vcmp.ge.s32.totalorder %v2180, 0
        %vm2189 = vcmp.ge.s32.totalorder %v2181, 0
        %vm2190 = vcmp.lt.s32.totalorder %v2174, 8
        %vm2191 = vcmp.lt.s32.totalorder %v2175, 8
        %vm2192 = vcmp.lt.s32.totalorder %v2176, 8
        %vm2193 = vcmp.lt.s32.totalorder %v2177, 8
        %vm2194 = vcmp.lt.s32.totalorder %v2178, 8
        %vm2195 = vcmp.lt.s32.totalorder %v2179, 8
        %vm2196 = vcmp.lt.s32.totalorder %v2180, 8
        %vm2197 = vcmp.lt.s32.totalorder %v2181, 8
        %vm2198 = vmand %vm2182, %vm2190
        %vm2199 = vmand %vm2183, %vm2191
        %vm2200 = vmand %vm2184, %vm2192
        %vm2201 = vmand %vm2185, %vm2193
        %vm2202 = vmand %vm2186, %vm2194
        %vm2203 = vmand %vm2187, %vm2195
        %vm2204 = vmand %vm2188, %vm2196
        %vm2205 = vmand %vm2189, %vm2197
        %vm2206 = vmand %vm2198, %vm1259
        %vm2207 = vmand %vm2199, %vm1260
        %vm2208 = vmand %vm2200, %vm1261
        %vm2209 = vmand %vm2201, %vm1262
        %vm2210 = vmand %vm2202, %vm1263
        %vm2211 = vmand %vm2203, %vm1264
        %vm2212 = vmand %vm2204, %vm1265
        %vm2213 = vmand %vm2205, %vm1266
        %vm2214 = vmand %vm2206, %vm1275
        %vm2215 = vmand %vm2207, %vm1276
        %vm2216 = vmand %vm2208, %vm1277
        %vm2217 = vmand %vm2209, %vm1278
        %vm2218 = vmand %vm2210, %vm1279
        %vm2219 = vmand %vm2211, %vm1280
        %vm2220 = vmand %vm2212, %vm1281
        %vm2221 = vmand %vm2213, %vm1282
        %v2222 = vsel %vm2214, 1, 0
        %v2223 = vsel %vm2215, 1, 0
        %v2224 = vsel %vm2216, 1, 0
        %v2225 = vsel %vm2217, 1, 0
        %v2226 = vsel %vm2218, 1, 0
        %v2227 = vsel %vm2219, 1, 0
        %v2228 = vsel %vm2220, 1, 0
        %v2229 = vsel %vm2221, 1, 0
        %vm2230 = vcmp.eq.s32.totalorder %v2222, 1
        %vm2231 = vcmp.eq.s32.totalorder %v2223, 1
        %vm2232 = vcmp.eq.s32.totalorder %v2224, 1
        %vm2233 = vcmp.eq.s32.totalorder %v2225, 1
        %vm2234 = vcmp.eq.s32.totalorder %v2226, 1
        %vm2235 = vcmp.eq.s32.totalorder %v2227, 1
        %vm2236 = vcmp.eq.s32.totalorder %v2228, 1
        %vm2237 = vcmp.eq.s32.totalorder %v2229, 1
        %v2238 = vsel %vm2230, %v1217, 0.0
        %v2239 = vsel %vm2231, %v1216, 0.0
        %v2240 = vsel %vm2232, %v1215, 0.0
        %v2241 = vsel %vm2233, %v1214, 0.0
        %v2242 = vsel %vm2234, %v1213, 0.0
        %v2243 = vsel %vm2235, %v1212, 0.0
        %v2244 = vsel %vm2236, %v1211, 0.0
        %v2245 = vsel %vm2237, %v1218, 0.0
        %v2246 = vpack.c.bf16 %v2239, %v2238
        %v2247 = vpack.c.bf16 %v2241, %v2240
        %v2248 = vpack.c.bf16 %v2243, %v2242
        %v2249 = vpack.c.bf16 %v2245, %v2244
        %s2250 = scalar_lea.vmem %s4, 384
        %v2251 = vld [vmem:[%s2250] sm:$0xf]
        %v2252 = vld [vmem:[%s2250 + $0x4] sm:$0xf]
        %v2253 = vld [vmem:[%s2250 + $0x8] sm:$0xf]
        %v2254 = vld [vmem:[%s2250 + $0xc] sm:$0xf]
        %v2255 = vld [vmem:[%s2250 + $0x10] sm:$0xf]
        %v2256 = vld [vmem:[%s2250 + $0x14] sm:$0xf]
        %v2257 = vld [vmem:[%s2250 + $0x18] sm:$0xf]
        %v2258 = vld [vmem:[%s2250 + $0x1c] sm:$0xf]
        %v2259 = vld [vmem:[%s2250 + $0x20] sm:$0xf]
        %v2260 = vld [vmem:[%s2250 + $0x24] sm:$0xf]
        %v2261 = vld [vmem:[%s2250 + $0x28] sm:$0xf]
        %v2262 = vld [vmem:[%s2250 + $0x2c] sm:$0xf]
        %v2263 = vld [vmem:[%s2250 + $0x30] sm:$0xf]
        %v2264 = vld [vmem:[%s2250 + $0x34] sm:$0xf]
        %v2265 = vld [vmem:[%s2250 + $0x38] sm:$0xf]
        %v2266 = vld [vmem:[%s2250 + $0x3c] sm:$0xf]
        %v2283 = vunpack.c.l.b16 %v2251
        %v2284 = vunpack.c.l.b16 %v2252
        %v2285 = vunpack.c.l.b16 %v2253
        %v2286 = vunpack.c.l.b16 %v2254
        %v2287 = vunpack.c.l.b16 %v2255
        %v2288 = vunpack.c.l.b16 %v2256
        %v2289 = vunpack.c.l.b16 %v2257
        %v2290 = vunpack.c.l.b16 %v2258
        %v2291 = vunpack.c.l.b16 %v2259
        %v2292 = vunpack.c.l.b16 %v2260
        %v2293 = vunpack.c.l.b16 %v2261
        %v2294 = vunpack.c.l.b16 %v2262
        %v2295 = vunpack.c.l.b16 %v2263
        %v2296 = vunpack.c.l.b16 %v2264
        %v2297 = vunpack.c.l.b16 %v2265
        %v2298 = vunpack.c.l.b16 %v2266
        %v2299 = vpack.c.b16 %v2284, %v2283
        %v2300 = vpack.c.b16 %v2286, %v2285
        %v2301 = vpack.c.b16 %v2288, %v2287
        %v2302 = vpack.c.b16 %v2290, %v2289
        %v2303 = vpack.c.b16 %v2292, %v2291
        %v2304 = vpack.c.b16 %v2294, %v2293
        %v2305 = vpack.c.b16 %v2296, %v2295
        %v2306 = vpack.c.b16 %v2298, %v2297
        %2315 = vmatpush.bf16.msra.mxu0 %v2306
        %2316 = vmatpush.bf16.msra.mxu0 %v2305
        %2317 = vmatpush.bf16.msra.mxu0 %v2304
        %2318 = vmatpush.bf16.msra.mxu0 %v2303
        %2319 = vmatpush.bf16.msra.mxu0 %v2302
        %2320 = vmatpush.bf16.msra.mxu0 %v2301
        %2321 = vmatpush.bf16.msra.mxu0 %v2300
        %2322 = vmatpush.bf16.msra.mxu0 %v2299
        %2323 = vmatmul.bf16.gmra.mxu0 %v2246
        %v2324 = vpop.f32.mrf.mxu0
        %v2325 = vadd.f32 0.0, %v2324
        %v2326 = vpop.f32.mrf.mxu0
        %v2327 = vadd.f32 0.0, %v2326
        %2328 = vmatmul.bf16.gmra.mxu0 %v2247
        %v2329 = vpop.f32.mrf.mxu0
        %v2330 = vadd.f32 0.0, %v2329
        %v2331 = vpop.f32.mrf.mxu0
        %v2332 = vadd.f32 0.0, %v2331
        %2333 = vmatmul.bf16.gmra.mxu0 %v2248
        %v2334 = vpop.f32.mrf.mxu0
        %v2335 = vadd.f32 0.0, %v2334
        %v2336 = vpop.f32.mrf.mxu0
        %v2337 = vadd.f32 0.0, %v2336
        %2338 = vmatmul.bf16.gmra.mxu0 %v2249
        %v2339 = vpop.f32.mrf.mxu0
        %v2340 = vadd.f32 0.0, %v2339
        %v2341 = vpop.f32.mrf.mxu0
        %v2342 = vadd.f32 0.0, %v2341
        %2343 = vdwg.mxu0
        %v2344 = vadd.f32 %v2166, %v2325
        %v2345 = vadd.f32 %v2167, %v2327
        %v2346 = vadd.f32 %v2168, %v2330
        %v2347 = vadd.f32 %v2169, %v2332
        %v2348 = vadd.f32 %v2170, %v2335
        %v2349 = vadd.f32 %v2171, %v2337
        %v2350 = vadd.f32 %v2172, %v2340
        %v2351 = vadd.f32 %v2173, %v2342
        %vm2352 = vmand %vm2198, %vm1335
        %vm2353 = vmand %vm2199, %vm1336
        %vm2354 = vmand %vm2200, %vm1337
        %vm2355 = vmand %vm2201, %vm1338
        %vm2356 = vmand %vm2202, %vm1339
        %vm2357 = vmand %vm2203, %vm1340
        %vm2358 = vmand %vm2204, %vm1341
        %vm2359 = vmand %vm2205, %vm1342
        %vm2360 = vmand %vm2352, %vm1351
        %vm2361 = vmand %vm2353, %vm1352
        %vm2362 = vmand %vm2354, %vm1353
        %vm2363 = vmand %vm2355, %vm1354
        %vm2364 = vmand %vm2356, %vm1355
        %vm2365 = vmand %vm2357, %vm1356
        %vm2366 = vmand %vm2358, %vm1357
        %vm2367 = vmand %vm2359, %vm1358
        %v2368 = vsel %vm2360, 1, 0
        %v2369 = vsel %vm2361, 1, 0
        %v2370 = vsel %vm2362, 1, 0
        %v2371 = vsel %vm2363, 1, 0
        %v2372 = vsel %vm2364, 1, 0
        %v2373 = vsel %vm2365, 1, 0
        %v2374 = vsel %vm2366, 1, 0
        %v2375 = vsel %vm2367, 1, 0
        %vm2376 = vcmp.eq.s32.totalorder %v2368, 1
        %vm2377 = vcmp.eq.s32.totalorder %v2369, 1
        %vm2378 = vcmp.eq.s32.totalorder %v2370, 1
        %vm2379 = vcmp.eq.s32.totalorder %v2371, 1
        %vm2380 = vcmp.eq.s32.totalorder %v2372, 1
        %vm2381 = vcmp.eq.s32.totalorder %v2373, 1
        %vm2382 = vcmp.eq.s32.totalorder %v2374, 1
        %vm2383 = vcmp.eq.s32.totalorder %v2375, 1
        %v2384 = vsel %vm2376, %v1162, 0.0
        %v2385 = vsel %vm2377, %v1165, 0.0
        %v2386 = vsel %vm2378, %v1167, 0.0
        %v2387 = vsel %vm2379, %v1170, 0.0
        %v2388 = vsel %vm2380, %v1172, 0.0
        %v2389 = vsel %vm2381, %v1175, 0.0
        %v2390 = vsel %vm2382, %v1177, 0.0
        %v2391 = vsel %vm2383, %v1160, 0.0
        %v2392 = vpack.c.bf16 %v2385, %v2384
        %v2393 = vpack.c.bf16 %v2387, %v2386
        %v2394 = vpack.c.bf16 %v2389, %v2388
        %v2395 = vpack.c.bf16 %v2391, %v2390
        %s2396 = scalar_lea.vmem %s4, 448
        %v2397 = vld [vmem:[%s2396] sm:$0xf]
        %v2398 = vld [vmem:[%s2396 + $0x4] sm:$0xf]
        %v2399 = vld [vmem:[%s2396 + $0x8] sm:$0xf]
        %v2400 = vld [vmem:[%s2396 + $0xc] sm:$0xf]
        %v2401 = vld [vmem:[%s2396 + $0x10] sm:$0xf]
        %v2402 = vld [vmem:[%s2396 + $0x14] sm:$0xf]
        %v2403 = vld [vmem:[%s2396 + $0x18] sm:$0xf]
        %v2404 = vld [vmem:[%s2396 + $0x1c] sm:$0xf]
        %v2405 = vld [vmem:[%s2396 + $0x20] sm:$0xf]
        %v2406 = vld [vmem:[%s2396 + $0x24] sm:$0xf]
        %v2407 = vld [vmem:[%s2396 + $0x28] sm:$0xf]
        %v2408 = vld [vmem:[%s2396 + $0x2c] sm:$0xf]
        %v2409 = vld [vmem:[%s2396 + $0x30] sm:$0xf]
        %v2410 = vld [vmem:[%s2396 + $0x34] sm:$0xf]
        %v2411 = vld [vmem:[%s2396 + $0x38] sm:$0xf]
        %v2412 = vld [vmem:[%s2396 + $0x3c] sm:$0xf]
        %v2429 = vunpack.c.l.b16 %v2397
        %v2430 = vunpack.c.l.b16 %v2398
        %v2431 = vunpack.c.l.b16 %v2399
        %v2432 = vunpack.c.l.b16 %v2400
        %v2433 = vunpack.c.l.b16 %v2401
        %v2434 = vunpack.c.l.b16 %v2402
        %v2435 = vunpack.c.l.b16 %v2403
        %v2436 = vunpack.c.l.b16 %v2404
        %v2437 = vunpack.c.l.b16 %v2405
        %v2438 = vunpack.c.l.b16 %v2406
        %v2439 = vunpack.c.l.b16 %v2407
        %v2440 = vunpack.c.l.b16 %v2408
        %v2441 = vunpack.c.l.b16 %v2409
        %v2442 = vunpack.c.l.b16 %v2410
        %v2443 = vunpack.c.l.b16 %v2411
        %v2444 = vunpack.c.l.b16 %v2412
        %v2445 = vpack.c.b16 %v2430, %v2429
        %v2446 = vpack.c.b16 %v2432, %v2431
        %v2447 = vpack.c.b16 %v2434, %v2433
        %v2448 = vpack.c.b16 %v2436, %v2435
        %v2449 = vpack.c.b16 %v2438, %v2437
        %v2450 = vpack.c.b16 %v2440, %v2439
        %v2451 = vpack.c.b16 %v2442, %v2441
        %v2452 = vpack.c.b16 %v2444, %v2443
        %2461 = vmatpush.bf16.msra.mxu0 %v2452
        %2462 = vmatpush.bf16.msra.mxu0 %v2451
        %2463 = vmatpush.bf16.msra.mxu0 %v2450
        %2464 = vmatpush.bf16.msra.mxu0 %v2449
        %2465 = vmatpush.bf16.msra.mxu0 %v2448
        %2466 = vmatpush.bf16.msra.mxu0 %v2447
        %2467 = vmatpush.bf16.msra.mxu0 %v2446
        %2468 = vmatpush.bf16.msra.mxu0 %v2445
        %2469 = vmatmul.bf16.gmra.mxu0 %v2392
        %v2470 = vpop.f32.mrf.mxu0
        %v2471 = vadd.f32 0.0, %v2470
        %v2472 = vpop.f32.mrf.mxu0
        %v2473 = vadd.f32 0.0, %v2472
        %2474 = vmatmul.bf16.gmra.mxu0 %v2393
        %v2475 = vpop.f32.mrf.mxu0
        %v2476 = vadd.f32 0.0, %v2475
        %v2477 = vpop.f32.mrf.mxu0
        %v2478 = vadd.f32 0.0, %v2477
        %2479 = vmatmul.bf16.gmra.mxu0 %v2394
        %v2480 = vpop.f32.mrf.mxu0
        %v2481 = vadd.f32 0.0, %v2480
        %v2482 = vpop.f32.mrf.mxu0
        %v2483 = vadd.f32 0.0, %v2482
        %2484 = vmatmul.bf16.gmra.mxu0 %v2395
        %v2485 = vpop.f32.mrf.mxu0
        %v2486 = vadd.f32 0.0, %v2485
        %v2487 = vpop.f32.mrf.mxu0
        %v2488 = vadd.f32 0.0, %v2487
        %2489 = vdwg.mxu0
        %v2490 = vadd.f32 %v2344, %v2471
        %v2491 = vadd.f32 %v2345, %v2473
        %v2492 = vadd.f32 %v2346, %v2476
        %v2493 = vadd.f32 %v2347, %v2478
        %v2494 = vadd.f32 %v2348, %v2481
        %v2495 = vadd.f32 %v2349, %v2483
        %v2496 = vadd.f32 %v2350, %v2486
        %v2497 = vadd.f32 %v2351, %v2488
        %vm2498 = vmand %vm2198, %vm1590
        %vm2499 = vmand %vm2199, %vm1591
        %vm2500 = vmand %vm2200, %vm1592
        %vm2501 = vmand %vm2201, %vm1593
        %vm2502 = vmand %vm2202, %vm1594
        %vm2503 = vmand %vm2203, %vm1595
        %vm2504 = vmand %vm2204, %vm1596
        %vm2505 = vmand %vm2205, %vm1597
        %vm2506 = vmand %vm2498, %vm1606
        %vm2507 = vmand %vm2499, %vm1607
        %vm2508 = vmand %vm2500, %vm1608
        %vm2509 = vmand %vm2501, %vm1609
        %vm2510 = vmand %vm2502, %vm1610
        %vm2511 = vmand %vm2503, %vm1611
        %vm2512 = vmand %vm2504, %vm1612
        %vm2513 = vmand %vm2505, %vm1613
        %v2514 = vsel %vm2506, 1, 0
        %v2515 = vsel %vm2507, 1, 0
        %v2516 = vsel %vm2508, 1, 0
        %v2517 = vsel %vm2509, 1, 0
        %v2518 = vsel %vm2510, 1, 0
        %v2519 = vsel %vm2511, 1, 0
        %v2520 = vsel %vm2512, 1, 0
        %v2521 = vsel %vm2513, 1, 0
        %vm2522 = vcmp.eq.s32.totalorder %v2514, 1
        %vm2523 = vcmp.eq.s32.totalorder %v2515, 1
        %vm2524 = vcmp.eq.s32.totalorder %v2516, 1
        %vm2525 = vcmp.eq.s32.totalorder %v2517, 1
        %vm2526 = vcmp.eq.s32.totalorder %v2518, 1
        %vm2527 = vcmp.eq.s32.totalorder %v2519, 1
        %vm2528 = vcmp.eq.s32.totalorder %v2520, 1
        %vm2529 = vcmp.eq.s32.totalorder %v2521, 1
        %v2530 = vsel %vm2522, %v1579, 0.0
        %v2531 = vsel %vm2523, %v1578, 0.0
        %v2532 = vsel %vm2524, %v1577, 0.0
        %v2533 = vsel %vm2525, %v1576, 0.0
        %v2534 = vsel %vm2526, %v1575, 0.0
        %v2535 = vsel %vm2527, %v1574, 0.0
        %v2536 = vsel %vm2528, %v1581, 0.0
        %v2537 = vsel %vm2529, %v1580, 0.0
        %v2538 = vpack.c.bf16 %v2531, %v2530
        %v2539 = vpack.c.bf16 %v2533, %v2532
        %v2540 = vpack.c.bf16 %v2535, %v2534
        %v2541 = vpack.c.bf16 %v2537, %v2536
        %s2542 = scalar_lea.vmem %s4, 512
        %v2543 = vld [vmem:[%s2542] sm:$0xf]
        %v2544 = vld [vmem:[%s2542 + $0x4] sm:$0xf]
        %v2545 = vld [vmem:[%s2542 + $0x8] sm:$0xf]
        %v2546 = vld [vmem:[%s2542 + $0xc] sm:$0xf]
        %v2547 = vld [vmem:[%s2542 + $0x10] sm:$0xf]
        %v2548 = vld [vmem:[%s2542 + $0x14] sm:$0xf]
        %v2549 = vld [vmem:[%s2542 + $0x18] sm:$0xf]
        %v2550 = vld [vmem:[%s2542 + $0x1c] sm:$0xf]
        %v2551 = vld [vmem:[%s2542 + $0x20] sm:$0xf]
        %v2552 = vld [vmem:[%s2542 + $0x24] sm:$0xf]
        %v2553 = vld [vmem:[%s2542 + $0x28] sm:$0xf]
        %v2554 = vld [vmem:[%s2542 + $0x2c] sm:$0xf]
        %v2555 = vld [vmem:[%s2542 + $0x30] sm:$0xf]
        %v2556 = vld [vmem:[%s2542 + $0x34] sm:$0xf]
        %v2557 = vld [vmem:[%s2542 + $0x38] sm:$0xf]
        %v2558 = vld [vmem:[%s2542 + $0x3c] sm:$0xf]
        %v2575 = vunpack.c.l.b16 %v2543
        %v2576 = vunpack.c.l.b16 %v2544
        %v2577 = vunpack.c.l.b16 %v2545
        %v2578 = vunpack.c.l.b16 %v2546
        %v2579 = vunpack.c.l.b16 %v2547
        %v2580 = vunpack.c.l.b16 %v2548
        %v2581 = vunpack.c.l.b16 %v2549
        %v2582 = vunpack.c.l.b16 %v2550
        %v2583 = vunpack.c.l.b16 %v2551
        %v2584 = vunpack.c.l.b16 %v2552
        %v2585 = vunpack.c.l.b16 %v2553
        %v2586 = vunpack.c.l.b16 %v2554
        %v2587 = vunpack.c.l.b16 %v2555
        %v2588 = vunpack.c.l.b16 %v2556
        %v2589 = vunpack.c.l.b16 %v2557
        %v2590 = vunpack.c.l.b16 %v2558
        %v2591 = vpack.c.b16 %v2576, %v2575
        %v2592 = vpack.c.b16 %v2578, %v2577
        %v2593 = vpack.c.b16 %v2580, %v2579
        %v2594 = vpack.c.b16 %v2582, %v2581
        %v2595 = vpack.c.b16 %v2584, %v2583
        %v2596 = vpack.c.b16 %v2586, %v2585
        %v2597 = vpack.c.b16 %v2588, %v2587
        %v2598 = vpack.c.b16 %v2590, %v2589
        %2607 = vmatpush.bf16.msra.mxu0 %v2598
        %2608 = vmatpush.bf16.msra.mxu0 %v2597
        %2609 = vmatpush.bf16.msra.mxu0 %v2596
        %2610 = vmatpush.bf16.msra.mxu0 %v2595
        %2611 = vmatpush.bf16.msra.mxu0 %v2594
        %2612 = vmatpush.bf16.msra.mxu0 %v2593
        %2613 = vmatpush.bf16.msra.mxu0 %v2592
        %2614 = vmatpush.bf16.msra.mxu0 %v2591
        %2615 = vmatmul.bf16.gmra.mxu0 %v2538
        %v2616 = vpop.f32.mrf.mxu0
        %v2617 = vadd.f32 0.0, %v2616
        %v2618 = vpop.f32.mrf.mxu0
        %v2619 = vadd.f32 0.0, %v2618
        %2620 = vmatmul.bf16.gmra.mxu0 %v2539
        %v2621 = vpop.f32.mrf.mxu0
        %v2622 = vadd.f32 0.0, %v2621
        %v2623 = vpop.f32.mrf.mxu0
        %v2624 = vadd.f32 0.0, %v2623
        %2625 = vmatmul.bf16.gmra.mxu0 %v2540
        %v2626 = vpop.f32.mrf.mxu0
        %v2627 = vadd.f32 0.0, %v2626
        %v2628 = vpop.f32.mrf.mxu0
        %v2629 = vadd.f32 0.0, %v2628
        %2630 = vmatmul.bf16.gmra.mxu0 %v2541
        %v2631 = vpop.f32.mrf.mxu0
        %v2632 = vadd.f32 0.0, %v2631
        %v2633 = vpop.f32.mrf.mxu0
        %v2634 = vadd.f32 0.0, %v2633
        %2635 = vdwg.mxu0
        %v2636 = vadd.f32 %v2490, %v2617
        %v2637 = vadd.f32 %v2491, %v2619
        %v2638 = vadd.f32 %v2492, %v2622
        %v2639 = vadd.f32 %v2493, %v2624
        %v2640 = vadd.f32 %v2494, %v2627
        %v2641 = vadd.f32 %v2495, %v2629
        %v2642 = vadd.f32 %v2496, %v2632
        %v2643 = vadd.f32 %v2497, %v2634
        %v2644 = vld [vmem:[#allocation5] sm:$0x1]
        %v2646 = vperm.slane %v2644, 0
        %v2648 = vadd.f32 %v2636, %v2646
        %v2649 = vadd.f32 %v2637, %v2646
        %v2650 = vadd.f32 %v2638, %v2646
        %v2651 = vadd.f32 %v2639, %v2646
        %v2652 = vadd.f32 %v2640, %v2646
        %v2653 = vadd.f32 %v2641, %v2646
        %v2654 = vadd.f32 %v2642, %v2646
        %v2655 = vadd.f32 %v2643, %v2646
        %v2656 = vmax.f32 %v2648, 0.0
        %v2657 = vmax.f32 %v2649, 0.0
        %v2658 = vmax.f32 %v2650, 0.0
        %v2659 = vmax.f32 %v2651, 0.0
        %v2660 = vmax.f32 %v2652, 0.0
        %v2661 = vmax.f32 %v2653, 0.0
        %v2662 = vmax.f32 %v2654, 0.0
        %v2663 = vmax.f32 %v2655, 0.0
        %v2664 = vld [vmem:[%s6] sm:$0xf]
        %v2665 = vld [vmem:[%s6 + $0x4] sm:$0xf]
        %v2666 = vrot.slane %v2656, 1
        %v2667 = vrot.slane %v2657, 1
        %v2668 = vrot.slane %v2658, 1
        %v2669 = vrot.slane %v2659, 1
        %v2670 = vrot.slane %v2660, 1
        %v2671 = vrot.slane %v2661, 1
        %v2672 = vrot.slane %v2662, 1
        %v2673 = vrot.slane %v2663, 1
        %v2674 = vsel %vm968, %v2672, %v2673
        %v2675 = vsel %vm968, %v2671, %v2672
        %v2676 = vsel %vm968, %v2670, %v2671
        %v2677 = vsel %vm968, %v2669, %v2670
        %v2678 = vsel %vm968, %v2668, %v2669
        %v2679 = vsel %vm968, %v2667, %v2668
        %v2680 = vsel %vm968, %v2666, %v2667
        %v2681 = vsel %vm968, %v2673, %v2666
        %v2682 = vmax.f32 %v2656, %v2680
        %v2683 = vmax.f32 %v2657, %v2679
        %v2684 = vmax.f32 %v2658, %v2678
        %v2685 = vmax.f32 %v2659, %v2677
        %v2686 = vmax.f32 %v2660, %v2676
        %v2687 = vmax.f32 %v2661, %v2675
        %v2688 = vmax.f32 %v2662, %v2674
        %v2689 = vmax.f32 %v2663, %v2681
        %v2690 = vmax.f32 %v2682, %v2683
        %v2691 = vmax.f32 %v2683, %v2684
        %v2692 = vmax.f32 %v2684, %v2685
        %v2693 = vmax.f32 %v2685, %v2686
        %v2694 = vmax.f32 %v2686, %v2687
        %v2695 = vmax.f32 %v2687, %v2688
        %v2696 = vmax.f32 %v2688, %v2689
        %v2697 = vmax.f32 %v2689, %v2682
        %v2698 = vpack.c.bf16 %v2691, %v2690
        %v2699 = vpack.c.bf16 %v2693, %v2692
        %v2700 = vpack.c.bf16 %v2695, %v2694
        %v2701 = vpack.c.bf16 %v2697, %v2696
        %v2704 = vunpack.c.l.b16 %v2664
        %v2705 = vunpack.c.l.b16 %v2665
        %v2706 = vpack.c.b16 %v2705, %v2704
        %vm2707 = vcmask 523264
        %v2709 = vsel %vm2707, %v2706, 0
        %2711 = vmatpush.bf16.msra.mxu0 0
        %2712 = vmatpush.bf16.msra.mxu0 0
        %2713 = vmatpush.bf16.msra.mxu0 0
        %2714 = vmatpush.bf16.msra.mxu0 0
        %2715 = vmatpush.bf16.msra.mxu0 %v2701
        %2716 = vmatpush.bf16.msra.mxu0 %v2700
        %2717 = vmatpush.bf16.msra.mxu0 %v2699
        %2718 = vmatpush.bf16.msra.mxu0 %v2698
        %2719 = vmatmul.bf16.gmra.mxu0 %v2709
        %v2720 = vpop.f32.mrf.mxu0
        %v2721 = vadd.f32 0.0, %v2720
        %v2722 = vpop.f32.mrf.mxu0
        %v2723 = vadd.f32 0.0, %v2722
        %2724 = vdwg.mxu0
        %v2725 = vshra.s32 %v967, 2
        %v2726 = vshra.s32 %v1179, 2
        %v2727 = vand.u32 %v967, 3
        %v2728 = vand.u32 %v1179, 3
        %v2729 = vrot.slane %v2721, 3
        %v2730 = vrot.slane %v2723, 3
        %vm2731 = vcmp.lt.s32.totalorder %v967, 5
        %v2732 = vsel %vm2731, %v2729, %v2730
        %v2733 = vsel %vm2731, %v2730, %v2729
        %v2734 = vadd.s32 %v2725, 4294967295
        %v2735 = vadd.s32 %v2726, 4294967295
        %vm2736 = vcmp.ge.s32.totalorder %v2734, 0
        %vm2737 = vcmp.ge.s32.totalorder %v2735, 0
        %vm2738 = vcmp.lt.s32.totalorder %v2734, 4
        %vm2739 = vcmp.lt.s32.totalorder %v2735, 4
        %vm2740 = vmand %vm2736, %vm2738
        %vm2741 = vmand %vm2737, %vm2739
        %v2742 = vadd.s32 %v2727, 4294967295
        %v2743 = vadd.s32 %v2728, 4294967295
        %vm2744 = vcmp.ge.s32.totalorder %v2742, 0
        %vm2745 = vcmp.ge.s32.totalorder %v2743, 0
        %vm2746 = vmand %vm2740, %vm2744
        %vm2747 = vmand %vm2741, %vm2745
        %vm2748 = vcmp.lt.s32.totalorder %v2742, 4
        %vm2749 = vcmp.lt.s32.totalorder %v2743, 4
        %vm2750 = vmand %vm2746, %vm2748
        %vm2751 = vmand %vm2747, %vm2749
        %v2752 = vsel %vm2750, 1, 0
        %v2753 = vsel %vm2751, 1, 0
        %vm2754 = vcmp.eq.s32.totalorder %v2752, 1
        %vm2755 = vcmp.eq.s32.totalorder %v2753, 1
        %v2756 = vsel %vm2754, %v2733, 0.0
        %v2757 = vsel %vm2755, %v2732, 0.0
        %v2758 = vpack.c.bf16 %v2757, %v2756
        %v2759 = vld [vmem:[%s7] sm:$0xff]
        %v2760 = vld [vmem:[%s7 + $0x8] sm:$0xff]
        %v2761 = vld [vmem:[%s7 + $0x10] sm:$0xff]
        %v2762 = vld [vmem:[%s7 + $0x18] sm:$0xff]
        %v2763 = vld [vmem:[%s7 + $0x20] sm:$0xff]
        %v2764 = vld [vmem:[%s7 + $0x28] sm:$0xff]
        %v2765 = vld [vmem:[%s7 + $0x30] sm:$0xff]
        %v2766 = vld [vmem:[%s7 + $0x38] sm:$0xff]
        %v2767 = vld [vmem:[%s7 + $0x40] sm:$0xff]
        %v2768 = vld [vmem:[%s7 + $0x48] sm:$0xff]
        %v2769 = vld [vmem:[%s7 + $0x50] sm:$0xff]
        %v2770 = vld [vmem:[%s7 + $0x58] sm:$0xff]
        %v2771 = vld [vmem:[%s7 + $0x60] sm:$0xff]
        %v2772 = vld [vmem:[%s7 + $0x68] sm:$0xff]
        %v2773 = vld [vmem:[%s7 + $0x70] sm:$0xff]
        %v2774 = vld [vmem:[%s7 + $0x78] sm:$0xff]
        %v2775 = vrot.slane %v2721, 4
        %v2776 = vrot.slane %v2723, 4
        %vm2777 = vcmp.lt.s32.totalorder %v967, 4
        %v2778 = vsel %vm2777, %v2775, %v2776
        %v2779 = vsel %vm2777, %v2776, %v2775
        %vm2780 = vcmp.ge.s32.totalorder %v2727, 0
        %vm2781 = vcmp.ge.s32.totalorder %v2728, 0
        %vm2782 = vmand %vm2740, %vm2780
        %vm2783 = vmand %vm2741, %vm2781
        %vm2784 = vcmp.lt.s32.totalorder %v2727, 4
        %vm2785 = vcmp.lt.s32.totalorder %v2728, 4
        %vm2786 = vmand %vm2782, %vm2784
        %vm2787 = vmand %vm2783, %vm2785
        %v2788 = vsel %vm2786, 1, 0
        %v2789 = vsel %vm2787, 1, 0
        %vm2790 = vcmp.eq.s32.totalorder %v2788, 1
        %vm2791 = vcmp.eq.s32.totalorder %v2789, 1
        %v2792 = vsel %vm2790, %v2779, 0.0
        %v2793 = vsel %vm2791, %v2778, 0.0
        %v2794 = vpack.c.bf16 %v2793, %v2792
        %s2795 = scalar_lea.vmem %s7, 128
        %v2796 = vld [vmem:[%s2795] sm:$0xff]
        %v2797 = vld [vmem:[%s2795 + $0x8] sm:$0xff]
        %v2798 = vld [vmem:[%s2795 + $0x10] sm:$0xff]
        %v2799 = vld [vmem:[%s2795 + $0x18] sm:$0xff]
        %v2800 = vld [vmem:[%s2795 + $0x20] sm:$0xff]
        %v2801 = vld [vmem:[%s2795 + $0x28] sm:$0xff]
        %v2802 = vld [vmem:[%s2795 + $0x30] sm:$0xff]
        %v2803 = vld [vmem:[%s2795 + $0x38] sm:$0xff]
        %v2804 = vld [vmem:[%s2795 + $0x40] sm:$0xff]
        %v2805 = vld [vmem:[%s2795 + $0x48] sm:$0xff]
        %v2806 = vld [vmem:[%s2795 + $0x50] sm:$0xff]
        %v2807 = vld [vmem:[%s2795 + $0x58] sm:$0xff]
        %v2808 = vld [vmem:[%s2795 + $0x60] sm:$0xff]
        %v2809 = vld [vmem:[%s2795 + $0x68] sm:$0xff]
        %v2810 = vld [vmem:[%s2795 + $0x70] sm:$0xff]
        %v2811 = vld [vmem:[%s2795 + $0x78] sm:$0xff]
        %v2828 = vunpack.c.l.b16 %v2796
        %v2829 = vunpack.c.h.b16 %v2796
        %v2830 = vunpack.c.l.b16 %v2797
        %v2831 = vunpack.c.h.b16 %v2797
        %v2832 = vunpack.c.l.b16 %v2798
        %v2833 = vunpack.c.h.b16 %v2798
        %v2834 = vunpack.c.l.b16 %v2799
        %v2835 = vunpack.c.h.b16 %v2799
        %v2836 = vunpack.c.l.b16 %v2800
        %v2837 = vunpack.c.h.b16 %v2800
        %v2838 = vunpack.c.l.b16 %v2801
        %v2839 = vunpack.c.h.b16 %v2801
        %v2840 = vunpack.c.l.b16 %v2802
        %v2841 = vunpack.c.h.b16 %v2802
        %v2842 = vunpack.c.l.b16 %v2803
        %v2843 = vunpack.c.h.b16 %v2803
        %v2844 = vunpack.c.l.b16 %v2804
        %v2845 = vunpack.c.h.b16 %v2804
        %v2846 = vunpack.c.l.b16 %v2805
        %v2847 = vunpack.c.h.b16 %v2805
        %v2848 = vunpack.c.l.b16 %v2806
        %v2849 = vunpack.c.h.b16 %v2806
        %v2850 = vunpack.c.l.b16 %v2807
        %v2851 = vunpack.c.h.b16 %v2807
        %v2852 = vunpack.c.l.b16 %v2808
        %v2853 = vunpack.c.h.b16 %v2808
        %v2854 = vunpack.c.l.b16 %v2809
        %v2855 = vunpack.c.h.b16 %v2809
        %v2856 = vunpack.c.l.b16 %v2810
        %v2857 = vunpack.c.h.b16 %v2810
        %v2858 = vunpack.c.l.b16 %v2811
        %v2859 = vunpack.c.h.b16 %v2811
        %v2860 = vpack.c.b16 %v2830, %v2828
        %v2861 = vpack.c.b16 %v2831, %v2829
        %v2862 = vpack.c.b16 %v2834, %v2832
        %v2863 = vpack.c.b16 %v2835, %v2833
        %v2864 = vpack.c.b16 %v2838, %v2836
        %v2865 = vpack.c.b16 %v2839, %v2837
        %v2866 = vpack.c.b16 %v2842, %v2840
        %v2867 = vpack.c.b16 %v2843, %v2841
        %v2868 = vpack.c.b16 %v2846, %v2844
        %v2869 = vpack.c.b16 %v2847, %v2845
        %v2870 = vpack.c.b16 %v2850, %v2848
        %v2871 = vpack.c.b16 %v2851, %v2849
        %v2872 = vpack.c.b16 %v2854, %v2852
        %v2873 = vpack.c.b16 %v2855, %v2853
        %v2874 = vpack.c.b16 %v2858, %v2856
        %v2875 = vpack.c.b16 %v2859, %v2857
        %2892 = vmatpush.bf16.msra.mxu0 %v2874
        %2893 = vmatpush.bf16.msra.mxu0 %v2872
        %2894 = vmatpush.bf16.msra.mxu0 %v2870
        %2895 = vmatpush.bf16.msra.mxu0 %v2868
        %2896 = vmatpush.bf16.msra.mxu0 %v2866
        %2897 = vmatpush.bf16.msra.mxu0 %v2864
        %2898 = vmatpush.bf16.msra.mxu0 %v2862
        %2899 = vmatpush.bf16.msra.mxu0 %v2860
        %2900 = vmatmul.bf16.gmra.mxu0 %v2794
        %v2901 = vpop.f32.mrf.mxu0
        %v2902 = vadd.f32 0.0, %v2901
        %v2903 = vpop.f32.mrf.mxu0
        %v2904 = vadd.f32 0.0, %v2903
        %2905 = vdwg.mxu0
        %2906 = vmatpush.bf16.msra.mxu0 %v2875
        %2907 = vmatpush.bf16.msra.mxu0 %v2873
        %2908 = vmatpush.bf16.msra.mxu0 %v2871
        %2909 = vmatpush.bf16.msra.mxu0 %v2869
        %2910 = vmatpush.bf16.msra.mxu0 %v2867
        %2911 = vmatpush.bf16.msra.mxu0 %v2865
        %2912 = vmatpush.bf16.msra.mxu0 %v2863
        %2913 = vmatpush.bf16.msra.mxu0 %v2861
        %2914 = vmatmul.bf16.gmra.mxu0 %v2794
        %v2915 = vpop.f32.mrf.mxu0
        %v2916 = vadd.f32 0.0, %v2915
        %v2917 = vpop.f32.mrf.mxu0
        %v2918 = vadd.f32 0.0, %v2917
        %2919 = vdwg.mxu0
        %v2936 = vunpack.c.l.b16 %v2759
        %v2937 = vunpack.c.h.b16 %v2759
        %v2938 = vunpack.c.l.b16 %v2760
        %v2939 = vunpack.c.h.b16 %v2760
        %v2940 = vunpack.c.l.b16 %v2761
        %v2941 = vunpack.c.h.b16 %v2761
        %v2942 = vunpack.c.l.b16 %v2762
        %v2943 = vunpack.c.h.b16 %v2762
        %v2944 = vunpack.c.l.b16 %v2763
        %v2945 = vunpack.c.h.b16 %v2763
        %v2946 = vunpack.c.l.b16 %v2764
        %v2947 = vunpack.c.h.b16 %v2764
        %v2948 = vunpack.c.l.b16 %v2765
        %v2949 = vunpack.c.h.b16 %v2765
        %v2950 = vunpack.c.l.b16 %v2766
        %v2951 = vunpack.c.h.b16 %v2766
        %v2952 = vunpack.c.l.b16 %v2767
        %v2953 = vunpack.c.h.b16 %v2767
        %v2954 = vunpack.c.l.b16 %v2768
        %v2955 = vunpack.c.h.b16 %v2768
        %v2956 = vunpack.c.l.b16 %v2769
        %v2957 = vunpack.c.h.b16 %v2769
        %v2958 = vunpack.c.l.b16 %v2770
        %v2959 = vunpack.c.h.b16 %v2770
        %v2960 = vunpack.c.l.b16 %v2771
        %v2961 = vunpack.c.h.b16 %v2771
        %v2962 = vunpack.c.l.b16 %v2772
        %v2963 = vunpack.c.h.b16 %v2772
        %v2964 = vunpack.c.l.b16 %v2773
        %v2965 = vunpack.c.h.b16 %v2773
        %v2966 = vunpack.c.l.b16 %v2774
        %v2967 = vunpack.c.h.b16 %v2774
        %v2968 = vpack.c.b16 %v2938, %v2936
        %v2969 = vpack.c.b16 %v2939, %v2937
        %v2970 = vpack.c.b16 %v2942, %v2940
        %v2971 = vpack.c.b16 %v2943, %v2941
        %v2972 = vpack.c.b16 %v2946, %v2944
        %v2973 = vpack.c.b16 %v2947, %v2945
        %v2974 = vpack.c.b16 %v2950, %v2948
        %v2975 = vpack.c.b16 %v2951, %v2949
        %v2976 = vpack.c.b16 %v2954, %v2952
        %v2977 = vpack.c.b16 %v2955, %v2953
        %v2978 = vpack.c.b16 %v2958, %v2956
        %v2979 = vpack.c.b16 %v2959, %v2957
        %v2980 = vpack.c.b16 %v2962, %v2960
        %v2981 = vpack.c.b16 %v2963, %v2961
        %v2982 = vpack.c.b16 %v2966, %v2964
        %v2983 = vpack.c.b16 %v2967, %v2965
        %3000 = vmatpush.bf16.msra.mxu0 %v2982
        %3001 = vmatpush.bf16.msra.mxu0 %v2980
        %3002 = vmatpush.bf16.msra.mxu0 %v2978
        %3003 = vmatpush.bf16.msra.mxu0 %v2976
        %3004 = vmatpush.bf16.msra.mxu0 %v2974
        %3005 = vmatpush.bf16.msra.mxu0 %v2972
        %3006 = vmatpush.bf16.msra.mxu0 %v2970
        %3007 = vmatpush.bf16.msra.mxu0 %v2968
        %3008 = vmatmul.bf16.gmra.mxu0 %v2758
        %v3009 = vpop.f32.mrf.mxu0
        %v3010 = vadd.f32 %v2902, %v3009
        %v3011 = vpop.f32.mrf.mxu0
        %v3012 = vadd.f32 %v2904, %v3011
        %3013 = vdwg.mxu0
        %3014 = vmatpush.bf16.msra.mxu0 %v2983
        %3015 = vmatpush.bf16.msra.mxu0 %v2981
        %3016 = vmatpush.bf16.msra.mxu0 %v2979
        %3017 = vmatpush.bf16.msra.mxu0 %v2977
        %3018 = vmatpush.bf16.msra.mxu0 %v2975
        %3019 = vmatpush.bf16.msra.mxu0 %v2973
        %3020 = vmatpush.bf16.msra.mxu0 %v2971
        %3021 = vmatpush.bf16.msra.mxu0 %v2969
        %3022 = vmatmul.bf16.gmra.mxu0 %v2758
        %v3023 = vpop.f32.mrf.mxu0
        %v3024 = vadd.f32 %v2916, %v3023
        %v3025 = vpop.f32.mrf.mxu0
        %v3026 = vadd.f32 %v2918, %v3025
        %3027 = vdwg.mxu0
        %v3028 = vrot.slane %v2721, 5
        %v3029 = vrot.slane %v2723, 5
        %vm3030 = vcmp.lt.s32.totalorder %v967, 3
        %v3031 = vsel %vm3030, %v3028, %v3029
        %v3032 = vsel %vm3030, %v3029, %v3028
        %v3033 = vadd.s32 %v2727, 1
        %v3034 = vadd.s32 %v2728, 1
        %vm3035 = vcmp.ge.s32.totalorder %v3033, 0
        %vm3036 = vcmp.ge.s32.totalorder %v3034, 0
        %vm3037 = vmand %vm2740, %vm3035
        %vm3038 = vmand %vm2741, %vm3036
        %vm3039 = vcmp.lt.s32.totalorder %v3033, 4
        %vm3040 = vcmp.lt.s32.totalorder %v3034, 4
        %vm3041 = vmand %vm3037, %vm3039
        %vm3042 = vmand %vm3038, %vm3040
        %v3043 = vsel %vm3041, 1, 0
        %v3044 = vsel %vm3042, 1, 0
        %vm3045 = vcmp.eq.s32.totalorder %v3043, 1
        %vm3046 = vcmp.eq.s32.totalorder %v3044, 1
        %v3047 = vsel %vm3045, %v3032, 0.0
        %v3048 = vsel %vm3046, %v3031, 0.0
        %v3049 = vpack.c.bf16 %v3048, %v3047
        %s3050 = scalar_lea.vmem %s7, 256
        %v3051 = vld [vmem:[%s3050] sm:$0xff]
        %v3052 = vld [vmem:[%s3050 + $0x8] sm:$0xff]
        %v3053 = vld [vmem:[%s3050 + $0x10] sm:$0xff]
        %v3054 = vld [vmem:[%s3050 + $0x18] sm:$0xff]
        %v3055 = vld [vmem:[%s3050 + $0x20] sm:$0xff]
        %v3056 = vld [vmem:[%s3050 + $0x28] sm:$0xff]
        %v3057 = vld [vmem:[%s3050 + $0x30] sm:$0xff]
        %v3058 = vld [vmem:[%s3050 + $0x38] sm:$0xff]
        %v3059 = vld [vmem:[%s3050 + $0x40] sm:$0xff]
        %v3060 = vld [vmem:[%s3050 + $0x48] sm:$0xff]
        %v3061 = vld [vmem:[%s3050 + $0x50] sm:$0xff]
        %v3062 = vld [vmem:[%s3050 + $0x58] sm:$0xff]
        %v3063 = vld [vmem:[%s3050 + $0x60] sm:$0xff]
        %v3064 = vld [vmem:[%s3050 + $0x68] sm:$0xff]
        %v3065 = vld [vmem:[%s3050 + $0x70] sm:$0xff]
        %v3066 = vld [vmem:[%s3050 + $0x78] sm:$0xff]
        %v3083 = vunpack.c.l.b16 %v3051
        %v3084 = vunpack.c.h.b16 %v3051
        %v3085 = vunpack.c.l.b16 %v3052
        %v3086 = vunpack.c.h.b16 %v3052
        %v3087 = vunpack.c.l.b16 %v3053
        %v3088 = vunpack.c.h.b16 %v3053
        %v3089 = vunpack.c.l.b16 %v3054
        %v3090 = vunpack.c.h.b16 %v3054
        %v3091 = vunpack.c.l.b16 %v3055
        %v3092 = vunpack.c.h.b16 %v3055
        %v3093 = vunpack.c.l.b16 %v3056
        %v3094 = vunpack.c.h.b16 %v3056
        %v3095 = vunpack.c.l.b16 %v3057
        %v3096 = vunpack.c.h.b16 %v3057
        %v3097 = vunpack.c.l.b16 %v3058
        %v3098 = vunpack.c.h.b16 %v3058
        %v3099 = vunpack.c.l.b16 %v3059
        %v3100 = vunpack.c.h.b16 %v3059
        %v3101 = vunpack.c.l.b16 %v3060
        %v3102 = vunpack.c.h.b16 %v3060
        %v3103 = vunpack.c.l.b16 %v3061
        %v3104 = vunpack.c.h.b16 %v3061
        %v3105 = vunpack.c.l.b16 %v3062
        %v3106 = vunpack.c.h.b16 %v3062
        %v3107 = vunpack.c.l.b16 %v3063
        %v3108 = vunpack.c.h.b16 %v3063
        %v3109 = vunpack.c.l.b16 %v3064
        %v3110 = vunpack.c.h.b16 %v3064
        %v3111 = vunpack.c.l.b16 %v3065
        %v3112 = vunpack.c.h.b16 %v3065
        %v3113 = vunpack.c.l.b16 %v3066
        %v3114 = vunpack.c.h.b16 %v3066
        %v3115 = vpack.c.b16 %v3085, %v3083
        %v3116 = vpack.c.b16 %v3086, %v3084
        %v3117 = vpack.c.b16 %v3089, %v3087
        %v3118 = vpack.c.b16 %v3090, %v3088
        %v3119 = vpack.c.b16 %v3093, %v3091
        %v3120 = vpack.c.b16 %v3094, %v3092
        %v3121 = vpack.c.b16 %v3097, %v3095
        %v3122 = vpack.c.b16 %v3098, %v3096
        %v3123 = vpack.c.b16 %v3101, %v3099
        %v3124 = vpack.c.b16 %v3102, %v3100
        %v3125 = vpack.c.b16 %v3105, %v3103
        %v3126 = vpack.c.b16 %v3106, %v3104
        %v3127 = vpack.c.b16 %v3109, %v3107
        %v3128 = vpack.c.b16 %v3110, %v3108
        %v3129 = vpack.c.b16 %v3113, %v3111
        %v3130 = vpack.c.b16 %v3114, %v3112
        %3147 = vmatpush.bf16.msra.mxu0 %v3129
        %3148 = vmatpush.bf16.msra.mxu0 %v3127
        %3149 = vmatpush.bf16.msra.mxu0 %v3125
        %3150 = vmatpush.bf16.msra.mxu0 %v3123
        %3151 = vmatpush.bf16.msra.mxu0 %v3121
        %3152 = vmatpush.bf16.msra.mxu0 %v3119
        %3153 = vmatpush.bf16.msra.mxu0 %v3117
        %3154 = vmatpush.bf16.msra.mxu0 %v3115
        %3155 = vmatmul.bf16.gmra.mxu0 %v3049
        %v3156 = vpop.f32.mrf.mxu0
        %v3157 = vadd.f32 0.0, %v3156
        %v3158 = vpop.f32.mrf.mxu0
        %v3159 = vadd.f32 0.0, %v3158
        %3160 = vdwg.mxu0
        %3161 = vmatpush.bf16.msra.mxu0 %v3130
        %3162 = vmatpush.bf16.msra.mxu0 %v3128
        %3163 = vmatpush.bf16.msra.mxu0 %v3126
        %3164 = vmatpush.bf16.msra.mxu0 %v3124
        %3165 = vmatpush.bf16.msra.mxu0 %v3122
        %3166 = vmatpush.bf16.msra.mxu0 %v3120
        %3167 = vmatpush.bf16.msra.mxu0 %v3118
        %3168 = vmatpush.bf16.msra.mxu0 %v3116
        %3169 = vmatmul.bf16.gmra.mxu0 %v3049
        %v3170 = vpop.f32.mrf.mxu0
        %v3171 = vadd.f32 0.0, %v3170
        %v3172 = vpop.f32.mrf.mxu0
        %v3173 = vadd.f32 0.0, %v3172
        %3174 = vdwg.mxu0
        %v3175 = vadd.f32 %v3010, %v3157
        %v3176 = vadd.f32 %v3024, %v3171
        %v3177 = vadd.f32 %v3012, %v3159
        %v3178 = vadd.f32 %v3026, %v3173
        %v3179 = vrot.slane %v2721, 7
        %v3180 = vrot.slane %v2723, 7
        %v3181 = vsel %vm1210, %v3179, %v3180
        %v3182 = vsel %vm1210, %v3180, %v3179
        %vm3183 = vcmp.ge.s32.totalorder %v2725, 0
        %vm3184 = vcmp.ge.s32.totalorder %v2726, 0
        %vm3185 = vcmp.lt.s32.totalorder %v2725, 4
        %vm3186 = vcmp.lt.s32.totalorder %v2726, 4
        %vm3187 = vmand %vm3183, %vm3185
        %vm3188 = vmand %vm3184, %vm3186
        %vm3189 = vmand %vm3187, %vm2744
        %vm3190 = vmand %vm3188, %vm2745
        %vm3191 = vmand %vm3189, %vm2748
        %vm3192 = vmand %vm3190, %vm2749
        %v3193 = vsel %vm3191, 1, 0
        %v3194 = vsel %vm3192, 1, 0
        %vm3195 = vcmp.eq.s32.totalorder %v3193, 1
        %vm3196 = vcmp.eq.s32.totalorder %v3194, 1
        %v3197 = vsel %vm3195, %v3182, 0.0
        %v3198 = vsel %vm3196, %v3181, 0.0
        %v3199 = vpack.c.bf16 %v3198, %v3197
        %s3200 = scalar_lea.vmem %s7, 384
        %v3201 = vld [vmem:[%s3200] sm:$0xff]
        %v3202 = vld [vmem:[%s3200 + $0x8] sm:$0xff]
        %v3203 = vld [vmem:[%s3200 + $0x10] sm:$0xff]
        %v3204 = vld [vmem:[%s3200 + $0x18] sm:$0xff]
        %v3205 = vld [vmem:[%s3200 + $0x20] sm:$0xff]
        %v3206 = vld [vmem:[%s3200 + $0x28] sm:$0xff]
        %v3207 = vld [vmem:[%s3200 + $0x30] sm:$0xff]
        %v3208 = vld [vmem:[%s3200 + $0x38] sm:$0xff]
        %v3209 = vld [vmem:[%s3200 + $0x40] sm:$0xff]
        %v3210 = vld [vmem:[%s3200 + $0x48] sm:$0xff]
        %v3211 = vld [vmem:[%s3200 + $0x50] sm:$0xff]
        %v3212 = vld [vmem:[%s3200 + $0x58] sm:$0xff]
        %v3213 = vld [vmem:[%s3200 + $0x60] sm:$0xff]
        %v3214 = vld [vmem:[%s3200 + $0x68] sm:$0xff]
        %v3215 = vld [vmem:[%s3200 + $0x70] sm:$0xff]
        %v3216 = vld [vmem:[%s3200 + $0x78] sm:$0xff]
        %v3233 = vunpack.c.l.b16 %v3201
        %v3234 = vunpack.c.h.b16 %v3201
        %v3235 = vunpack.c.l.b16 %v3202
        %v3236 = vunpack.c.h.b16 %v3202
        %v3237 = vunpack.c.l.b16 %v3203
        %v3238 = vunpack.c.h.b16 %v3203
        %v3239 = vunpack.c.l.b16 %v3204
        %v3240 = vunpack.c.h.b16 %v3204
        %v3241 = vunpack.c.l.b16 %v3205
        %v3242 = vunpack.c.h.b16 %v3205
        %v3243 = vunpack.c.l.b16 %v3206
        %v3244 = vunpack.c.h.b16 %v3206
        %v3245 = vunpack.c.l.b16 %v3207
        %v3246 = vunpack.c.h.b16 %v3207
        %v3247 = vunpack.c.l.b16 %v3208
        %v3248 = vunpack.c.h.b16 %v3208
        %v3249 = vunpack.c.l.b16 %v3209
        %v3250 = vunpack.c.h.b16 %v3209
        %v3251 = vunpack.c.l.b16 %v3210
        %v3252 = vunpack.c.h.b16 %v3210
        %v3253 = vunpack.c.l.b16 %v3211
        %v3254 = vunpack.c.h.b16 %v3211
        %v3255 = vunpack.c.l.b16 %v3212
        %v3256 = vunpack.c.h.b16 %v3212
        %v3257 = vunpack.c.l.b16 %v3213
        %v3258 = vunpack.c.h.b16 %v3213
        %v3259 = vunpack.c.l.b16 %v3214
        %v3260 = vunpack.c.h.b16 %v3214
        %v3261 = vunpack.c.l.b16 %v3215
        %v3262 = vunpack.c.h.b16 %v3215
        %v3263 = vunpack.c.l.b16 %v3216
        %v3264 = vunpack.c.h.b16 %v3216
        %v3265 = vpack.c.b16 %v3235, %v3233
        %v3266 = vpack.c.b16 %v3236, %v3234
        %v3267 = vpack.c.b16 %v3239, %v3237
        %v3268 = vpack.c.b16 %v3240, %v3238
        %v3269 = vpack.c.b16 %v3243, %v3241
        %v3270 = vpack.c.b16 %v3244, %v3242
        %v3271 = vpack.c.b16 %v3247, %v3245
        %v3272 = vpack.c.b16 %v3248, %v3246
        %v3273 = vpack.c.b16 %v3251, %v3249
        %v3274 = vpack.c.b16 %v3252, %v3250
        %v3275 = vpack.c.b16 %v3255, %v3253
        %v3276 = vpack.c.b16 %v3256, %v3254
        %v3277 = vpack.c.b16 %v3259, %v3257
        %v3278 = vpack.c.b16 %v3260, %v3258
        %v3279 = vpack.c.b16 %v3263, %v3261
        %v3280 = vpack.c.b16 %v3264, %v3262
        %3297 = vmatpush.bf16.msra.mxu0 %v3279
        %3298 = vmatpush.bf16.msra.mxu0 %v3277
        %3299 = vmatpush.bf16.msra.mxu0 %v3275
        %3300 = vmatpush.bf16.msra.mxu0 %v3273
        %3301 = vmatpush.bf16.msra.mxu0 %v3271
        %3302 = vmatpush.bf16.msra.mxu0 %v3269
        %3303 = vmatpush.bf16.msra.mxu0 %v3267
        %3304 = vmatpush.bf16.msra.mxu0 %v3265
        %3305 = vmatmul.bf16.gmra.mxu0 %v3199
        %v3306 = vpop.f32.mrf.mxu0
        %v3307 = vadd.f32 0.0, %v3306
        %v3308 = vpop.f32.mrf.mxu0
        %v3309 = vadd.f32 0.0, %v3308
        %3310 = vdwg.mxu0
        %3311 = vmatpush.bf16.msra.mxu0 %v3280
        %3312 = vmatpush.bf16.msra.mxu0 %v3278
        %3313 = vmatpush.bf16.msra.mxu0 %v3276
        %3314 = vmatpush.bf16.msra.mxu0 %v3274
        %3315 = vmatpush.bf16.msra.mxu0 %v3272
        %3316 = vmatpush.bf16.msra.mxu0 %v3270
        %3317 = vmatpush.bf16.msra.mxu0 %v3268
        %3318 = vmatpush.bf16.msra.mxu0 %v3266
        %3319 = vmatmul.bf16.gmra.mxu0 %v3199
        %v3320 = vpop.f32.mrf.mxu0
        %v3321 = vadd.f32 0.0, %v3320
        %v3322 = vpop.f32.mrf.mxu0
        %v3323 = vadd.f32 0.0, %v3322
        %3324 = vdwg.mxu0
        %v3325 = vadd.f32 %v3175, %v3307
        %v3326 = vadd.f32 %v3176, %v3321
        %v3327 = vadd.f32 %v3177, %v3309
        %v3328 = vadd.f32 %v3178, %v3323
        %v3329 = vpack.c.bf16 %v2723, %v2721
        %s3330 = scalar_lea.vmem %s7, 512
        %v3331 = vld [vmem:[%s3330] sm:$0xff]
        %v3332 = vld [vmem:[%s3330 + $0x8] sm:$0xff]
        %v3333 = vld [vmem:[%s3330 + $0x10] sm:$0xff]
        %v3334 = vld [vmem:[%s3330 + $0x18] sm:$0xff]
        %v3335 = vld [vmem:[%s3330 + $0x20] sm:$0xff]
        %v3336 = vld [vmem:[%s3330 + $0x28] sm:$0xff]
        %v3337 = vld [vmem:[%s3330 + $0x30] sm:$0xff]
        %v3338 = vld [vmem:[%s3330 + $0x38] sm:$0xff]
        %v3339 = vld [vmem:[%s3330 + $0x40] sm:$0xff]
        %v3340 = vld [vmem:[%s3330 + $0x48] sm:$0xff]
        %v3341 = vld [vmem:[%s3330 + $0x50] sm:$0xff]
        %v3342 = vld [vmem:[%s3330 + $0x58] sm:$0xff]
        %v3343 = vld [vmem:[%s3330 + $0x60] sm:$0xff]
        %v3344 = vld [vmem:[%s3330 + $0x68] sm:$0xff]
        %v3345 = vld [vmem:[%s3330 + $0x70] sm:$0xff]
        %v3346 = vld [vmem:[%s3330 + $0x78] sm:$0xff]
        %v3363 = vunpack.c.l.b16 %v3331
        %v3364 = vunpack.c.h.b16 %v3331
        %v3365 = vunpack.c.l.b16 %v3332
        %v3366 = vunpack.c.h.b16 %v3332
        %v3367 = vunpack.c.l.b16 %v3333
        %v3368 = vunpack.c.h.b16 %v3333
        %v3369 = vunpack.c.l.b16 %v3334
        %v3370 = vunpack.c.h.b16 %v3334
        %v3371 = vunpack.c.l.b16 %v3335
        %v3372 = vunpack.c.h.b16 %v3335
        %v3373 = vunpack.c.l.b16 %v3336
        %v3374 = vunpack.c.h.b16 %v3336
        %v3375 = vunpack.c.l.b16 %v3337
        %v3376 = vunpack.c.h.b16 %v3337
        %v3377 = vunpack.c.l.b16 %v3338
        %v3378 = vunpack.c.h.b16 %v3338
        %v3379 = vunpack.c.l.b16 %v3339
        %v3380 = vunpack.c.h.b16 %v3339
        %v3381 = vunpack.c.l.b16 %v3340
        %v3382 = vunpack.c.h.b16 %v3340
        %v3383 = vunpack.c.l.b16 %v3341
        %v3384 = vunpack.c.h.b16 %v3341
        %v3385 = vunpack.c.l.b16 %v3342
        %v3386 = vunpack.c.h.b16 %v3342
        %v3387 = vunpack.c.l.b16 %v3343
        %v3388 = vunpack.c.h.b16 %v3343
        %v3389 = vunpack.c.l.b16 %v3344
        %v3390 = vunpack.c.h.b16 %v3344
        %v3391 = vunpack.c.l.b16 %v3345
        %v3392 = vunpack.c.h.b16 %v3345
        %v3393 = vunpack.c.l.b16 %v3346
        %v3394 = vunpack.c.h.b16 %v3346
        %v3395 = vpack.c.b16 %v3365, %v3363
        %v3396 = vpack.c.b16 %v3366, %v3364
        %v3397 = vpack.c.b16 %v3369, %v3367
        %v3398 = vpack.c.b16 %v3370, %v3368
        %v3399 = vpack.c.b16 %v3373, %v3371
        %v3400 = vpack.c.b16 %v3374, %v3372
        %v3401 = vpack.c.b16 %v3377, %v3375
        %v3402 = vpack.c.b16 %v3378, %v3376
        %v3403 = vpack.c.b16 %v3381, %v3379
        %v3404 = vpack.c.b16 %v3382, %v3380
        %v3405 = vpack.c.b16 %v3385, %v3383
        %v3406 = vpack.c.b16 %v3386, %v3384
        %v3407 = vpack.c.b16 %v3389, %v3387
        %v3408 = vpack.c.b16 %v3390, %v3388
        %v3409 = vpack.c.b16 %v3393, %v3391
        %v3410 = vpack.c.b16 %v3394, %v3392
        %3427 = vmatpush.bf16.msra.mxu0 %v3409
        %3428 = vmatpush.bf16.msra.mxu0 %v3407
        %3429 = vmatpush.bf16.msra.mxu0 %v3405
        %3430 = vmatpush.bf16.msra.mxu0 %v3403
        %3431 = vmatpush.bf16.msra.mxu0 %v3401
        %3432 = vmatpush.bf16.msra.mxu0 %v3399
        %3433 = vmatpush.bf16.msra.mxu0 %v3397
        %3434 = vmatpush.bf16.msra.mxu0 %v3395
        %3435 = vmatmul.bf16.gmra.mxu0 %v3329
        %v3436 = vpop.f32.mrf.mxu0
        %v3437 = vadd.f32 0.0, %v3436
        %v3438 = vpop.f32.mrf.mxu0
        %v3439 = vadd.f32 0.0, %v3438
        %3440 = vdwg.mxu0
        %3441 = vmatpush.bf16.msra.mxu0 %v3410
        %3442 = vmatpush.bf16.msra.mxu0 %v3408
        %3443 = vmatpush.bf16.msra.mxu0 %v3406
        %3444 = vmatpush.bf16.msra.mxu0 %v3404
        %3445 = vmatpush.bf16.msra.mxu0 %v3402
        %3446 = vmatpush.bf16.msra.mxu0 %v3400
        %3447 = vmatpush.bf16.msra.mxu0 %v3398
        %3448 = vmatpush.bf16.msra.mxu0 %v3396
        %3449 = vmatmul.bf16.gmra.mxu0 %v3329
        %v3450 = vpop.f32.mrf.mxu0
        %v3451 = vadd.f32 0.0, %v3450
        %v3452 = vpop.f32.mrf.mxu0
        %v3453 = vadd.f32 0.0, %v3452
        %3454 = vdwg.mxu0
        %v3455 = vadd.f32 %v3325, %v3437
        %v3456 = vadd.f32 %v3326, %v3451
        %v3457 = vadd.f32 %v3327, %v3439
        %v3458 = vadd.f32 %v3328, %v3453
        %v3459 = vrot.slane %v2721, 1
        %v3460 = vrot.slane %v2723, 1
        %v3461 = vsel %vm968, %v3459, %v3460
        %v3462 = vsel %vm968, %v3460, %v3459
        %vm3463 = vmand %vm3187, %vm3035
        %vm3464 = vmand %vm3188, %vm3036
        %vm3465 = vmand %vm3463, %vm3039
        %vm3466 = vmand %vm3464, %vm3040
        %v3467 = vsel %vm3465, 1, 0
        %v3468 = vsel %vm3466, 1, 0
        %vm3469 = vcmp.eq.s32.totalorder %v3467, 1
        %vm3470 = vcmp.eq.s32.totalorder %v3468, 1
        %v3471 = vsel %vm3469, %v3461, 0.0
        %v3472 = vsel %vm3470, %v3462, 0.0
        %v3473 = vpack.c.bf16 %v3472, %v3471
        %s3474 = scalar_lea.vmem %s7, 640
        %v3475 = vld [vmem:[%s3474] sm:$0xff]
        %v3476 = vld [vmem:[%s3474 + $0x8] sm:$0xff]
        %v3477 = vld [vmem:[%s3474 + $0x10] sm:$0xff]
        %v3478 = vld [vmem:[%s3474 + $0x18] sm:$0xff]
        %v3479 = vld [vmem:[%s3474 + $0x20] sm:$0xff]
        %v3480 = vld [vmem:[%s3474 + $0x28] sm:$0xff]
        %v3481 = vld [vmem:[%s3474 + $0x30] sm:$0xff]
        %v3482 = vld [vmem:[%s3474 + $0x38] sm:$0xff]
        %v3483 = vld [vmem:[%s3474 + $0x40] sm:$0xff]
        %v3484 = vld [vmem:[%s3474 + $0x48] sm:$0xff]
        %v3485 = vld [vmem:[%s3474 + $0x50] sm:$0xff]
        %v3486 = vld [vmem:[%s3474 + $0x58] sm:$0xff]
        %v3487 = vld [vmem:[%s3474 + $0x60] sm:$0xff]
        %v3488 = vld [vmem:[%s3474 + $0x68] sm:$0xff]
        %v3489 = vld [vmem:[%s3474 + $0x70] sm:$0xff]
        %v3490 = vld [vmem:[%s3474 + $0x78] sm:$0xff]
        %v3507 = vunpack.c.l.b16 %v3475
        %v3508 = vunpack.c.h.b16 %v3475
        %v3509 = vunpack.c.l.b16 %v3476
        %v3510 = vunpack.c.h.b16 %v3476
        %v3511 = vunpack.c.l.b16 %v3477
        %v3512 = vunpack.c.h.b16 %v3477
        %v3513 = vunpack.c.l.b16 %v3478
        %v3514 = vunpack.c.h.b16 %v3478
        %v3515 = vunpack.c.l.b16 %v3479
        %v3516 = vunpack.c.h.b16 %v3479
        %v3517 = vunpack.c.l.b16 %v3480
        %v3518 = vunpack.c.h.b16 %v3480
        %v3519 = vunpack.c.l.b16 %v3481
        %v3520 = vunpack.c.h.b16 %v3481
        %v3521 = vunpack.c.l.b16 %v3482
        %v3522 = vunpack.c.h.b16 %v3482
        %v3523 = vunpack.c.l.b16 %v3483
        %v3524 = vunpack.c.h.b16 %v3483
        %v3525 = vunpack.c.l.b16 %v3484
        %v3526 = vunpack.c.h.b16 %v3484
        %v3527 = vunpack.c.l.b16 %v3485
        %v3528 = vunpack.c.h.b16 %v3485
        %v3529 = vunpack.c.l.b16 %v3486
        %v3530 = vunpack.c.h.b16 %v3486
        %v3531 = vunpack.c.l.b16 %v3487
        %v3532 = vunpack.c.h.b16 %v3487
        %v3533 = vunpack.c.l.b16 %v3488
        %v3534 = vunpack.c.h.b16 %v3488
        %v3535 = vunpack.c.l.b16 %v3489
        %v3536 = vunpack.c.h.b16 %v3489
        %v3537 = vunpack.c.l.b16 %v3490
        %v3538 = vunpack.c.h.b16 %v3490
        %v3539 = vpack.c.b16 %v3509, %v3507
        %v3540 = vpack.c.b16 %v3510, %v3508
        %v3541 = vpack.c.b16 %v3513, %v3511
        %v3542 = vpack.c.b16 %v3514, %v3512
        %v3543 = vpack.c.b16 %v3517, %v3515
        %v3544 = vpack.c.b16 %v3518, %v3516
        %v3545 = vpack.c.b16 %v3521, %v3519
        %v3546 = vpack.c.b16 %v3522, %v3520
        %v3547 = vpack.c.b16 %v3525, %v3523
        %v3548 = vpack.c.b16 %v3526, %v3524
        %v3549 = vpack.c.b16 %v3529, %v3527
        %v3550 = vpack.c.b16 %v3530, %v3528
        %v3551 = vpack.c.b16 %v3533, %v3531
        %v3552 = vpack.c.b16 %v3534, %v3532
        %v3553 = vpack.c.b16 %v3537, %v3535
        %v3554 = vpack.c.b16 %v3538, %v3536
        %3571 = vmatpush.bf16.msra.mxu0 %v3553
        %3572 = vmatpush.bf16.msra.mxu0 %v3551
        %3573 = vmatpush.bf16.msra.mxu0 %v3549
        %3574 = vmatpush.bf16.msra.mxu0 %v3547
        %3575 = vmatpush.bf16.msra.mxu0 %v3545
        %3576 = vmatpush.bf16.msra.mxu0 %v3543
        %3577 = vmatpush.bf16.msra.mxu0 %v3541
        %3578 = vmatpush.bf16.msra.mxu0 %v3539
        %3579 = vmatmul.bf16.gmra.mxu0 %v3473
        %v3580 = vpop.f32.mrf.mxu0
        %v3581 = vadd.f32 0.0, %v3580
        %v3582 = vpop.f32.mrf.mxu0
        %v3583 = vadd.f32 0.0, %v3582
        %3584 = vdwg.mxu0
        %3585 = vmatpush.bf16.msra.mxu0 %v3554
        %3586 = vmatpush.bf16.msra.mxu0 %v3552
        %3587 = vmatpush.bf16.msra.mxu0 %v3550
        %3588 = vmatpush.bf16.msra.mxu0 %v3548
        %3589 = vmatpush.bf16.msra.mxu0 %v3546
        %3590 = vmatpush.bf16.msra.mxu0 %v3544
        %3591 = vmatpush.bf16.msra.mxu0 %v3542
        %3592 = vmatpush.bf16.msra.mxu0 %v3540
        %3593 = vmatmul.bf16.gmra.mxu0 %v3473
        %v3594 = vpop.f32.mrf.mxu0
        %v3595 = vadd.f32 0.0, %v3594
        %v3596 = vpop.f32.mrf.mxu0
        %v3597 = vadd.f32 0.0, %v3596
        %3598 = vdwg.mxu0
        %v3599 = vadd.f32 %v3455, %v3581
        %v3600 = vadd.f32 %v3456, %v3595
        %v3601 = vadd.f32 %v3457, %v3583
        %v3602 = vadd.f32 %v3458, %v3597
        %v3603 = vadd.s32 %v2725, 1
        %v3604 = vadd.s32 %v2726, 1
        %vm3605 = vcmp.ge.s32.totalorder %v3603, 0
        %vm3606 = vcmp.ge.s32.totalorder %v3604, 0
        %vm3607 = vcmp.lt.s32.totalorder %v3603, 4
        %vm3608 = vcmp.lt.s32.totalorder %v3604, 4
        %vm3609 = vmand %vm3605, %vm3607
        %vm3610 = vmand %vm3606, %vm3608
        %vm3611 = vmand %vm3609, %vm2744
        %vm3612 = vmand %vm3610, %vm2745
        %vm3613 = vmand %vm3611, %vm2748
        %vm3614 = vmand %vm3612, %vm2749
        %v3615 = vsel %vm3613, 1, 0
        %v3616 = vsel %vm3614, 1, 0
        %vm3617 = vcmp.eq.s32.totalorder %v3615, 1
        %vm3618 = vcmp.eq.s32.totalorder %v3616, 1
        %v3619 = vsel %vm3617, %v2732, 0.0
        %v3620 = vsel %vm3618, %v2733, 0.0
        %v3621 = vpack.c.bf16 %v3620, %v3619
        %s3622 = scalar_lea.vmem %s7, 768
        %v3623 = vld [vmem:[%s3622] sm:$0xff]
        %v3624 = vld [vmem:[%s3622 + $0x8] sm:$0xff]
        %v3625 = vld [vmem:[%s3622 + $0x10] sm:$0xff]
        %v3626 = vld [vmem:[%s3622 + $0x18] sm:$0xff]
        %v3627 = vld [vmem:[%s3622 + $0x20] sm:$0xff]
        %v3628 = vld [vmem:[%s3622 + $0x28] sm:$0xff]
        %v3629 = vld [vmem:[%s3622 + $0x30] sm:$0xff]
        %v3630 = vld [vmem:[%s3622 + $0x38] sm:$0xff]
        %v3631 = vld [vmem:[%s3622 + $0x40] sm:$0xff]
        %v3632 = vld [vmem:[%s3622 + $0x48] sm:$0xff]
        %v3633 = vld [vmem:[%s3622 + $0x50] sm:$0xff]
        %v3634 = vld [vmem:[%s3622 + $0x58] sm:$0xff]
        %v3635 = vld [vmem:[%s3622 + $0x60] sm:$0xff]
        %v3636 = vld [vmem:[%s3622 + $0x68] sm:$0xff]
        %v3637 = vld [vmem:[%s3622 + $0x70] sm:$0xff]
        %v3638 = vld [vmem:[%s3622 + $0x78] sm:$0xff]
        %v3655 = vunpack.c.l.b16 %v3623
        %v3656 = vunpack.c.h.b16 %v3623
        %v3657 = vunpack.c.l.b16 %v3624
        %v3658 = vunpack.c.h.b16 %v3624
        %v3659 = vunpack.c.l.b16 %v3625
        %v3660 = vunpack.c.h.b16 %v3625
        %v3661 = vunpack.c.l.b16 %v3626
        %v3662 = vunpack.c.h.b16 %v3626
        %v3663 = vunpack.c.l.b16 %v3627
        %v3664 = vunpack.c.h.b16 %v3627
        %v3665 = vunpack.c.l.b16 %v3628
        %v3666 = vunpack.c.h.b16 %v3628
        %v3667 = vunpack.c.l.b16 %v3629
        %v3668 = vunpack.c.h.b16 %v3629
        %v3669 = vunpack.c.l.b16 %v3630
        %v3670 = vunpack.c.h.b16 %v3630
        %v3671 = vunpack.c.l.b16 %v3631
        %v3672 = vunpack.c.h.b16 %v3631
        %v3673 = vunpack.c.l.b16 %v3632
        %v3674 = vunpack.c.h.b16 %v3632
        %v3675 = vunpack.c.l.b16 %v3633
        %v3676 = vunpack.c.h.b16 %v3633
        %v3677 = vunpack.c.l.b16 %v3634
        %v3678 = vunpack.c.h.b16 %v3634
        %v3679 = vunpack.c.l.b16 %v3635
        %v3680 = vunpack.c.h.b16 %v3635
        %v3681 = vunpack.c.l.b16 %v3636
        %v3682 = vunpack.c.h.b16 %v3636
        %v3683 = vunpack.c.l.b16 %v3637
        %v3684 = vunpack.c.h.b16 %v3637
        %v3685 = vunpack.c.l.b16 %v3638
        %v3686 = vunpack.c.h.b16 %v3638
        %v3687 = vpack.c.b16 %v3657, %v3655
        %v3688 = vpack.c.b16 %v3658, %v3656
        %v3689 = vpack.c.b16 %v3661, %v3659
        %v3690 = vpack.c.b16 %v3662, %v3660
        %v3691 = vpack.c.b16 %v3665, %v3663
        %v3692 = vpack.c.b16 %v3666, %v3664
        %v3693 = vpack.c.b16 %v3669, %v3667
        %v3694 = vpack.c.b16 %v3670, %v3668
        %v3695 = vpack.c.b16 %v3673, %v3671
        %v3696 = vpack.c.b16 %v3674, %v3672
        %v3697 = vpack.c.b16 %v3677, %v3675
        %v3698 = vpack.c.b16 %v3678, %v3676
        %v3699 = vpack.c.b16 %v3681, %v3679
        %v3700 = vpack.c.b16 %v3682, %v3680
        %v3701 = vpack.c.b16 %v3685, %v3683
        %v3702 = vpack.c.b16 %v3686, %v3684
        %3719 = vmatpush.bf16.msra.mxu0 %v3701
        %3720 = vmatpush.bf16.msra.mxu0 %v3699
        %3721 = vmatpush.bf16.msra.mxu0 %v3697
        %3722 = vmatpush.bf16.msra.mxu0 %v3695
        %3723 = vmatpush.bf16.msra.mxu0 %v3693
        %3724 = vmatpush.bf16.msra.mxu0 %v3691
        %3725 = vmatpush.bf16.msra.mxu0 %v3689
        %3726 = vmatpush.bf16.msra.mxu0 %v3687
        %3727 = vmatmul.bf16.gmra.mxu0 %v3621
        %v3728 = vpop.f32.mrf.mxu0
        %v3729 = vadd.f32 0.0, %v3728
        %v3730 = vpop.f32.mrf.mxu0
        %v3731 = vadd.f32 0.0, %v3730
        %3732 = vdwg.mxu0
        %3733 = vmatpush.bf16.msra.mxu0 %v3702
        %3734 = vmatpush.bf16.msra.mxu0 %v3700
        %3735 = vmatpush.bf16.msra.mxu0 %v3698
        %3736 = vmatpush.bf16.msra.mxu0 %v3696
        %3737 = vmatpush.bf16.msra.mxu0 %v3694
        %3738 = vmatpush.bf16.msra.mxu0 %v3692
        %3739 = vmatpush.bf16.msra.mxu0 %v3690
        %3740 = vmatpush.bf16.msra.mxu0 %v3688
        %3741 = vmatmul.bf16.gmra.mxu0 %v3621
        %v3742 = vpop.f32.mrf.mxu0
        %v3743 = vadd.f32 0.0, %v3742
        %v3744 = vpop.f32.mrf.mxu0
        %v3745 = vadd.f32 0.0, %v3744
        %3746 = vdwg.mxu0
        %v3747 = vadd.f32 %v3599, %v3729
        %v3748 = vadd.f32 %v3600, %v3743
        %v3749 = vadd.f32 %v3601, %v3731
        %v3750 = vadd.f32 %v3602, %v3745
        %vm3751 = vmand %vm3609, %vm2780
        %vm3752 = vmand %vm3610, %vm2781
        %vm3753 = vmand %vm3751, %vm2784
        %vm3754 = vmand %vm3752, %vm2785
        %v3755 = vsel %vm3753, 1, 0
        %v3756 = vsel %vm3754, 1, 0
        %vm3757 = vcmp.eq.s32.totalorder %v3755, 1
        %vm3758 = vcmp.eq.s32.totalorder %v3756, 1
        %v3759 = vsel %vm3757, %v2778, 0.0
        %v3760 = vsel %vm3758, %v2779, 0.0
        %v3761 = vpack.c.bf16 %v3760, %v3759
        %s3762 = scalar_lea.vmem %s7, 896
        %v3763 = vld [vmem:[%s3762] sm:$0xff]
        %v3764 = vld [vmem:[%s3762 + $0x8] sm:$0xff]
        %v3765 = vld [vmem:[%s3762 + $0x10] sm:$0xff]
        %v3766 = vld [vmem:[%s3762 + $0x18] sm:$0xff]
        %v3767 = vld [vmem:[%s3762 + $0x20] sm:$0xff]
        %v3768 = vld [vmem:[%s3762 + $0x28] sm:$0xff]
        %v3769 = vld [vmem:[%s3762 + $0x30] sm:$0xff]
        %v3770 = vld [vmem:[%s3762 + $0x38] sm:$0xff]
        %v3771 = vld [vmem:[%s3762 + $0x40] sm:$0xff]
        %v3772 = vld [vmem:[%s3762 + $0x48] sm:$0xff]
        %v3773 = vld [vmem:[%s3762 + $0x50] sm:$0xff]
        %v3774 = vld [vmem:[%s3762 + $0x58] sm:$0xff]
        %v3775 = vld [vmem:[%s3762 + $0x60] sm:$0xff]
        %v3776 = vld [vmem:[%s3762 + $0x68] sm:$0xff]
        %v3777 = vld [vmem:[%s3762 + $0x70] sm:$0xff]
        %v3778 = vld [vmem:[%s3762 + $0x78] sm:$0xff]
        %v3795 = vunpack.c.l.b16 %v3763
        %v3796 = vunpack.c.h.b16 %v3763
        %v3797 = vunpack.c.l.b16 %v3764
        %v3798 = vunpack.c.h.b16 %v3764
        %v3799 = vunpack.c.l.b16 %v3765
        %v3800 = vunpack.c.h.b16 %v3765
        %v3801 = vunpack.c.l.b16 %v3766
        %v3802 = vunpack.c.h.b16 %v3766
        %v3803 = vunpack.c.l.b16 %v3767
        %v3804 = vunpack.c.h.b16 %v3767
        %v3805 = vunpack.c.l.b16 %v3768
        %v3806 = vunpack.c.h.b16 %v3768
        %v3807 = vunpack.c.l.b16 %v3769
        %v3808 = vunpack.c.h.b16 %v3769
        %v3809 = vunpack.c.l.b16 %v3770
        %v3810 = vunpack.c.h.b16 %v3770
        %v3811 = vunpack.c.l.b16 %v3771
        %v3812 = vunpack.c.h.b16 %v3771
        %v3813 = vunpack.c.l.b16 %v3772
        %v3814 = vunpack.c.h.b16 %v3772
        %v3815 = vunpack.c.l.b16 %v3773
        %v3816 = vunpack.c.h.b16 %v3773
        %v3817 = vunpack.c.l.b16 %v3774
        %v3818 = vunpack.c.h.b16 %v3774
        %v3819 = vunpack.c.l.b16 %v3775
        %v3820 = vunpack.c.h.b16 %v3775
        %v3821 = vunpack.c.l.b16 %v3776
        %v3822 = vunpack.c.h.b16 %v3776
        %v3823 = vunpack.c.l.b16 %v3777
        %v3824 = vunpack.c.h.b16 %v3777
        %v3825 = vunpack.c.l.b16 %v3778
        %v3826 = vunpack.c.h.b16 %v3778
        %v3827 = vpack.c.b16 %v3797, %v3795
        %v3828 = vpack.c.b16 %v3798, %v3796
        %v3829 = vpack.c.b16 %v3801, %v3799
        %v3830 = vpack.c.b16 %v3802, %v3800
        %v3831 = vpack.c.b16 %v3805, %v3803
        %v3832 = vpack.c.b16 %v3806, %v3804
        %v3833 = vpack.c.b16 %v3809, %v3807
        %v3834 = vpack.c.b16 %v3810, %v3808
        %v3835 = vpack.c.b16 %v3813, %v3811
        %v3836 = vpack.c.b16 %v3814, %v3812
        %v3837 = vpack.c.b16 %v3817, %v3815
        %v3838 = vpack.c.b16 %v3818, %v3816
        %v3839 = vpack.c.b16 %v3821, %v3819
        %v3840 = vpack.c.b16 %v3822, %v3820
        %v3841 = vpack.c.b16 %v3825, %v3823
        %v3842 = vpack.c.b16 %v3826, %v3824
        %3859 = vmatpush.bf16.msra.mxu0 %v3841
        %3860 = vmatpush.bf16.msra.mxu0 %v3839
        %3861 = vmatpush.bf16.msra.mxu0 %v3837
        %3862 = vmatpush.bf16.msra.mxu0 %v3835
        %3863 = vmatpush.bf16.msra.mxu0 %v3833
        %3864 = vmatpush.bf16.msra.mxu0 %v3831
        %3865 = vmatpush.bf16.msra.mxu0 %v3829
        %3866 = vmatpush.bf16.msra.mxu0 %v3827
        %3867 = vmatmul.bf16.gmra.mxu0 %v3761
        %v3868 = vpop.f32.mrf.mxu0
        %v3869 = vadd.f32 0.0, %v3868
        %v3870 = vpop.f32.mrf.mxu0
        %v3871 = vadd.f32 0.0, %v3870
        %3872 = vdwg.mxu0
        %3873 = vmatpush.bf16.msra.mxu0 %v3842
        %3874 = vmatpush.bf16.msra.mxu0 %v3840
        %3875 = vmatpush.bf16.msra.mxu0 %v3838
        %3876 = vmatpush.bf16.msra.mxu0 %v3836
        %3877 = vmatpush.bf16.msra.mxu0 %v3834
        %3878 = vmatpush.bf16.msra.mxu0 %v3832
        %3879 = vmatpush.bf16.msra.mxu0 %v3830
        %3880 = vmatpush.bf16.msra.mxu0 %v3828
        %3881 = vmatmul.bf16.gmra.mxu0 %v3761
        %v3882 = vpop.f32.mrf.mxu0
        %v3883 = vadd.f32 0.0, %v3882
        %v3884 = vpop.f32.mrf.mxu0
        %v3885 = vadd.f32 0.0, %v3884
        %3886 = vdwg.mxu0
        %v3887 = vadd.f32 %v3747, %v3869
        %v3888 = vadd.f32 %v3748, %v3883
        %v3889 = vadd.f32 %v3749, %v3871
        %v3890 = vadd.f32 %v3750, %v3885
        %vm3891 = vmand %vm3609, %vm3035
        %vm3892 = vmand %vm3610, %vm3036
        %vm3893 = vmand %vm3891, %vm3039
        %vm3894 = vmand %vm3892, %vm3040
        %v3895 = vsel %vm3893, 1, 0
        %v3896 = vsel %vm3894, 1, 0
        %vm3897 = vcmp.eq.s32.totalorder %v3895, 1
        %vm3898 = vcmp.eq.s32.totalorder %v3896, 1
        %v3899 = vsel %vm3897, %v3031, 0.0
        %v3900 = vsel %vm3898, %v3032, 0.0
        %v3901 = vpack.c.bf16 %v3900, %v3899
        %s3902 = scalar_lea.vmem %s7, 1024
        %v3903 = vld [vmem:[%s3902] sm:$0xff]
        %v3904 = vld [vmem:[%s3902 + $0x8] sm:$0xff]
        %v3905 = vld [vmem:[%s3902 + $0x10] sm:$0xff]
        %v3906 = vld [vmem:[%s3902 + $0x18] sm:$0xff]
        %v3907 = vld [vmem:[%s3902 + $0x20] sm:$0xff]
        %v3908 = vld [vmem:[%s3902 + $0x28] sm:$0xff]
        %v3909 = vld [vmem:[%s3902 + $0x30] sm:$0xff]
        %v3910 = vld [vmem:[%s3902 + $0x38] sm:$0xff]
        %v3911 = vld [vmem:[%s3902 + $0x40] sm:$0xff]
        %v3912 = vld [vmem:[%s3902 + $0x48] sm:$0xff]
        %v3913 = vld [vmem:[%s3902 + $0x50] sm:$0xff]
        %v3914 = vld [vmem:[%s3902 + $0x58] sm:$0xff]
        %v3915 = vld [vmem:[%s3902 + $0x60] sm:$0xff]
        %v3916 = vld [vmem:[%s3902 + $0x68] sm:$0xff]
        %v3917 = vld [vmem:[%s3902 + $0x70] sm:$0xff]
        %v3918 = vld [vmem:[%s3902 + $0x78] sm:$0xff]
        %v3935 = vunpack.c.l.b16 %v3903
        %v3936 = vunpack.c.h.b16 %v3903
        %v3937 = vunpack.c.l.b16 %v3904
        %v3938 = vunpack.c.h.b16 %v3904
        %v3939 = vunpack.c.l.b16 %v3905
        %v3940 = vunpack.c.h.b16 %v3905
        %v3941 = vunpack.c.l.b16 %v3906
        %v3942 = vunpack.c.h.b16 %v3906
        %v3943 = vunpack.c.l.b16 %v3907
        %v3944 = vunpack.c.h.b16 %v3907
        %v3945 = vunpack.c.l.b16 %v3908
        %v3946 = vunpack.c.h.b16 %v3908
        %v3947 = vunpack.c.l.b16 %v3909
        %v3948 = vunpack.c.h.b16 %v3909
        %v3949 = vunpack.c.l.b16 %v3910
        %v3950 = vunpack.c.h.b16 %v3910
        %v3951 = vunpack.c.l.b16 %v3911
        %v3952 = vunpack.c.h.b16 %v3911
        %v3953 = vunpack.c.l.b16 %v3912
        %v3954 = vunpack.c.h.b16 %v3912
        %v3955 = vunpack.c.l.b16 %v3913
        %v3956 = vunpack.c.h.b16 %v3913
        %v3957 = vunpack.c.l.b16 %v3914
        %v3958 = vunpack.c.h.b16 %v3914
        %v3959 = vunpack.c.l.b16 %v3915
        %v3960 = vunpack.c.h.b16 %v3915
        %v3961 = vunpack.c.l.b16 %v3916
        %v3962 = vunpack.c.h.b16 %v3916
        %v3963 = vunpack.c.l.b16 %v3917
        %v3964 = vunpack.c.h.b16 %v3917
        %v3965 = vunpack.c.l.b16 %v3918
        %v3966 = vunpack.c.h.b16 %v3918
        %v3967 = vpack.c.b16 %v3937, %v3935
        %v3968 = vpack.c.b16 %v3938, %v3936
        %v3969 = vpack.c.b16 %v3941, %v3939
        %v3970 = vpack.c.b16 %v3942, %v3940
        %v3971 = vpack.c.b16 %v3945, %v3943
        %v3972 = vpack.c.b16 %v3946, %v3944
        %v3973 = vpack.c.b16 %v3949, %v3947
        %v3974 = vpack.c.b16 %v3950, %v3948
        %v3975 = vpack.c.b16 %v3953, %v3951
        %v3976 = vpack.c.b16 %v3954, %v3952
        %v3977 = vpack.c.b16 %v3957, %v3955
        %v3978 = vpack.c.b16 %v3958, %v3956
        %v3979 = vpack.c.b16 %v3961, %v3959
        %v3980 = vpack.c.b16 %v3962, %v3960
        %v3981 = vpack.c.b16 %v3965, %v3963
        %v3982 = vpack.c.b16 %v3966, %v3964
        %3999 = vmatpush.bf16.msra.mxu0 %v3981
        %4000 = vmatpush.bf16.msra.mxu0 %v3979
        %4001 = vmatpush.bf16.msra.mxu0 %v3977
        %4002 = vmatpush.bf16.msra.mxu0 %v3975
        %4003 = vmatpush.bf16.msra.mxu0 %v3973
        %4004 = vmatpush.bf16.msra.mxu0 %v3971
        %4005 = vmatpush.bf16.msra.mxu0 %v3969
        %4006 = vmatpush.bf16.msra.mxu0 %v3967
        %4007 = vmatmul.bf16.gmra.mxu0 %v3901
        %v4008 = vpop.f32.mrf.mxu0
        %v4009 = vadd.f32 0.0, %v4008
        %v4010 = vpop.f32.mrf.mxu0
        %v4011 = vadd.f32 0.0, %v4010
        %4012 = vdwg.mxu0
        %4013 = vmatpush.bf16.msra.mxu0 %v3982
        %4014 = vmatpush.bf16.msra.mxu0 %v3980
        %4015 = vmatpush.bf16.msra.mxu0 %v3978
        %4016 = vmatpush.bf16.msra.mxu0 %v3976
        %4017 = vmatpush.bf16.msra.mxu0 %v3974
        %4018 = vmatpush.bf16.msra.mxu0 %v3972
        %4019 = vmatpush.bf16.msra.mxu0 %v3970
        %4020 = vmatpush.bf16.msra.mxu0 %v3968
        %4021 = vmatmul.bf16.gmra.mxu0 %v3901
        %v4022 = vpop.f32.mrf.mxu0
        %v4023 = vadd.f32 0.0, %v4022
        %v4024 = vpop.f32.mrf.mxu0
        %v4025 = vadd.f32 0.0, %v4024
        %4026 = vdwg.mxu0
        %v4027 = vadd.f32 %v3887, %v4009
        %v4028 = vadd.f32 %v3888, %v4023
        %v4029 = vadd.f32 %v3889, %v4011
        %v4030 = vadd.f32 %v3890, %v4025
        %v4031 = vld [vmem:[#allocation7] sm:$0x3]
        %v4033 = vperm.slane %v4031, 0
        %v4034 = vperm.slane %v4031, 1
        %v4037 = vadd.f32 %v4027, %v4033
        %v4038 = vadd.f32 %v4028, %v4034
        %v4039 = vadd.f32 %v4029, %v4033
        %v4040 = vadd.f32 %v4030, %v4034
        %v4041 = vmax.f32 %v4037, 0.0
        %v4042 = vmax.f32 %v4038, 0.0
        %v4043 = vmax.f32 %v4039, 0.0
        %v4044 = vmax.f32 %v4040, 0.0
        %v4045 = vld [vmem:[#allocation8] sm:$0x3]
        %v4046 = vrot.slane %v4041, 1
        %v4047 = vrot.slane %v4042, 1
        %v4048 = vrot.slane %v4043, 1
        %v4049 = vrot.slane %v4044, 1
        %v4050 = vsel %vm968, %v4046, %v4048
        %v4051 = vsel %vm968, %v4047, %v4049
        %v4052 = vsel %vm968, %v4048, %v4046
        %v4053 = vsel %vm968, %v4049, %v4047
        %v4054 = vmax.f32 %v4041, %v4050
        %v4055 = vmax.f32 %v4042, %v4051
        %v4056 = vmax.f32 %v4043, %v4052
        %v4057 = vmax.f32 %v4044, %v4053
        %v4058 = vrot.slane %v4054, 4
        %v4059 = vrot.slane %v4055, 4
        %v4060 = vrot.slane %v4056, 4
        %v4061 = vrot.slane %v4057, 4
        %v4062 = vsel %vm2777, %v4058, %v4060
        %v4063 = vsel %vm2777, %v4059, %v4061
        %v4064 = vsel %vm2777, %v4060, %v4058
        %v4065 = vsel %vm2777, %v4061, %v4059
        %v4066 = vmax.f32 %v4054, %v4062
        %v4067 = vmax.f32 %v4055, %v4063
        %v4068 = vmax.f32 %v4056, %v4064
        %v4069 = vmax.f32 %v4057, %v4065
        %v4070 = vpack.c.bf16 %v4068, %v4066
        %v4071 = vpack.c.bf16 %v4069, %v4067
        %vm4072 = vcmask 130048
        %v4074 = vsel %vm4072, %v4045, 0
        %4076 = vmatpush.bf16.msra.mxu0 0
        %4077 = vmatpush.bf16.msra.mxu0 0
        %4078 = vmatpush.bf16.msra.mxu0 0
        %4079 = vmatpush.bf16.msra.mxu0 0
        %4080 = vmatpush.bf16.msra.mxu0 0
        %4081 = vmatpush.bf16.msra.mxu0 0
        %4082 = vmatpush.bf16.msra.mxu0 0
        %4083 = vmatpush.bf16.msra.mxu0 %v4070
        %4084 = vmatmul.bf16.gmra.mxu0 %v4074
        %v4085 = vpop.f32.mrf.mxu0
        %v4086 = vadd.f32 0.0, %v4085
        %v4087 = vpop.f32.mrf.mxu0
        %4088 = vdwg.mxu0
        %4089 = vmatpush.bf16.msra.mxu0 0
        %4090 = vmatpush.bf16.msra.mxu0 0
        %4091 = vmatpush.bf16.msra.mxu0 0
        %4092 = vmatpush.bf16.msra.mxu0 0
        %4093 = vmatpush.bf16.msra.mxu0 0
        %4094 = vmatpush.bf16.msra.mxu0 0
        %4095 = vmatpush.bf16.msra.mxu0 0
        %4096 = vmatpush.bf16.msra.mxu0 %v4071
        %4097 = vmatmul.bf16.gmra.mxu0 %v4074
        %v4098 = vpop.f32.mrf.mxu0
        %v4099 = vadd.f32 0.0, %v4098
        %v4100 = vpop.f32.mrf.mxu0
        %4101 = vdwg.mxu0
        %vm4102 = vcmask 1043456
        %v4103 = vsel %vm4102, %v4086, 0.0
        %v4104 = vrot.slane %v4103, 4
        %v4105 = vadd.f32 %v4103, %v4104
        %v4106 = vrot.slane %v4105, 2
        %v4107 = vadd.f32 %v4105, %v4106
        %v4108 = vrot.slane %v4107, 1
        %v4109 = vadd.f32 %v4107, %v4108
        %v4110 = vsel %vm4102, %v4099, 0.0
        %v4111 = vrot.slane %v4110, 4
        %v4112 = vadd.f32 %v4110, %v4111
        %v4113 = vrot.slane %v4112, 2
        %v4114 = vadd.f32 %v4112, %v4113
        %v4115 = vrot.slane %v4114, 1
        %v4116 = vadd.f32 %v4114, %v4115
        %v4117 = vrcp.pop 4.0
        %v4118 = vmul.f32 4.0, %v4117
        %v4119 = vsub.f32 1.0, %v4118
        %v4120 = vmul.f32 %v4117, %v4119
        %v4121 = vadd.f32 %v4117, %v4120
        %vm4122 = vweird.f32 %v4117
        %v4123 = vsel %vm4122, %v4117, %v4121
        %v4124 = vmul.f32 %v4109, %v4123
        %v4125 = vmul.f32 %v4116, %v4123
        %v4126 = vpack.c.bf16 %v4124, %v4124
        %v4127 = vpack.c.bf16 %v4125, %v4125
        %v4128 = vld [vmem:[%s10] sm:$0xff]
        %v4129 = vld [vmem:[%s10 + $0x8] sm:$0xff]
        %v4130 = vld [vmem:[%s10 + $0x10] sm:$0xff]
        %v4131 = vld [vmem:[%s10 + $0x18] sm:$0xff]
        %v4132 = vld [vmem:[%s10 + $0x20] sm:$0xff]
        %v4133 = vld [vmem:[%s10 + $0x28] sm:$0xff]
        %v4134 = vld [vmem:[%s10 + $0x30] sm:$0xff]
        %v4135 = vld [vmem:[%s10 + $0x38] sm:$0xff]
        %v4136 = vld [vmem:[%s10 + $0x40] sm:$0xff]
        %v4137 = vld [vmem:[%s10 + $0x48] sm:$0xff]
        %v4138 = vld [vmem:[%s10 + $0x50] sm:$0xff]
        %v4139 = vld [vmem:[%s10 + $0x58] sm:$0xff]
        %v4140 = vld [vmem:[%s10 + $0x60] sm:$0xff]
        %v4141 = vld [vmem:[%s10 + $0x68] sm:$0xff]
        %v4142 = vld [vmem:[%s10 + $0x70] sm:$0xff]
        %v4143 = vld [vmem:[%s10 + $0x78] sm:$0xff]
        %v4144 = vld [vmem:[%s10 + $0x80] sm:$0xff]
        %v4145 = vld [vmem:[%s10 + $0x88] sm:$0xff]
        %v4146 = vld [vmem:[%s10 + $0x90] sm:$0xff]
        %v4147 = vld [vmem:[%s10 + $0x98] sm:$0xff]
        %v4148 = vld [vmem:[%s10 + $0xa0] sm:$0xff]
        %v4149 = vld [vmem:[%s10 + $0xa8] sm:$0xff]
        %v4150 = vld [vmem:[%s10 + $0xb0] sm:$0xff]
        %v4151 = vld [vmem:[%s10 + $0xb8] sm:$0xff]
        %v4152 = vld [vmem:[%s10 + $0xc0] sm:$0xff]
        %v4153 = vld [vmem:[%s10 + $0xc8] sm:$0xff]
        %v4154 = vld [vmem:[%s10 + $0xd0] sm:$0xff]
        %v4155 = vld [vmem:[%s10 + $0xd8] sm:$0xff]
        %v4156 = vld [vmem:[%s10 + $0xe0] sm:$0xff]
        %v4157 = vld [vmem:[%s10 + $0xe8] sm:$0xff]
        %v4158 = vld [vmem:[%s10 + $0xf0] sm:$0xff]
        %v4159 = vld [vmem:[%s10 + $0xf8] sm:$0xff]
        %v4160 = vld [vmem:[#allocation10] sm:$0x3]
        %v4193 = vunpack.c.l.b16 %v4128
        %v4194 = vunpack.c.h.b16 %v4128
        %v4195 = vunpack.c.l.b16 %v4129
        %v4196 = vunpack.c.h.b16 %v4129
        %v4197 = vunpack.c.l.b16 %v4130
        %v4198 = vunpack.c.h.b16 %v4130
        %v4199 = vunpack.c.l.b16 %v4131
        %v4200 = vunpack.c.h.b16 %v4131
        %v4201 = vunpack.c.l.b16 %v4132
        %v4202 = vunpack.c.h.b16 %v4132
        %v4203 = vunpack.c.l.b16 %v4133
        %v4204 = vunpack.c.h.b16 %v4133
        %v4205 = vunpack.c.l.b16 %v4134
        %v4206 = vunpack.c.h.b16 %v4134
        %v4207 = vunpack.c.l.b16 %v4135
        %v4208 = vunpack.c.h.b16 %v4135
        %v4209 = vunpack.c.l.b16 %v4136
        %v4210 = vunpack.c.h.b16 %v4136
        %v4211 = vunpack.c.l.b16 %v4137
        %v4212 = vunpack.c.h.b16 %v4137
        %v4213 = vunpack.c.l.b16 %v4138
        %v4214 = vunpack.c.h.b16 %v4138
        %v4215 = vunpack.c.l.b16 %v4139
        %v4216 = vunpack.c.h.b16 %v4139
        %v4217 = vunpack.c.l.b16 %v4140
        %v4218 = vunpack.c.h.b16 %v4140
        %v4219 = vunpack.c.l.b16 %v4141
        %v4220 = vunpack.c.h.b16 %v4141
        %v4221 = vunpack.c.l.b16 %v4142
        %v4222 = vunpack.c.h.b16 %v4142
        %v4223 = vunpack.c.l.b16 %v4143
        %v4224 = vunpack.c.h.b16 %v4143
        %v4225 = vunpack.c.l.b16 %v4144
        %v4226 = vunpack.c.h.b16 %v4144
        %v4227 = vunpack.c.l.b16 %v4145
        %v4228 = vunpack.c.h.b16 %v4145
        %v4229 = vunpack.c.l.b16 %v4146
        %v4230 = vunpack.c.h.b16 %v4146
        %v4231 = vunpack.c.l.b16 %v4147
        %v4232 = vunpack.c.h.b16 %v4147
        %v4233 = vunpack.c.l.b16 %v4148
        %v4234 = vunpack.c.h.b16 %v4148
        %v4235 = vunpack.c.l.b16 %v4149
        %v4236 = vunpack.c.h.b16 %v4149
        %v4237 = vunpack.c.l.b16 %v4150
        %v4238 = vunpack.c.h.b16 %v4150
        %v4239 = vunpack.c.l.b16 %v4151
        %v4240 = vunpack.c.h.b16 %v4151
        %v4241 = vunpack.c.l.b16 %v4152
        %v4242 = vunpack.c.h.b16 %v4152
        %v4243 = vunpack.c.l.b16 %v4153
        %v4244 = vunpack.c.h.b16 %v4153
        %v4245 = vunpack.c.l.b16 %v4154
        %v4246 = vunpack.c.h.b16 %v4154
        %v4247 = vunpack.c.l.b16 %v4155
        %v4248 = vunpack.c.h.b16 %v4155
        %v4249 = vunpack.c.l.b16 %v4156
        %v4250 = vunpack.c.h.b16 %v4156
        %v4251 = vunpack.c.l.b16 %v4157
        %v4252 = vunpack.c.h.b16 %v4157
        %v4253 = vunpack.c.l.b16 %v4158
        %v4254 = vunpack.c.h.b16 %v4158
        %v4255 = vunpack.c.l.b16 %v4159
        %v4256 = vunpack.c.h.b16 %v4159
        %v4257 = vpack.c.b16 %v4195, %v4193
        %v4258 = vpack.c.b16 %v4196, %v4194
        %v4259 = vpack.c.b16 %v4199, %v4197
        %v4260 = vpack.c.b16 %v4200, %v4198
        %v4261 = vpack.c.b16 %v4203, %v4201
        %v4262 = vpack.c.b16 %v4204, %v4202
        %v4263 = vpack.c.b16 %v4207, %v4205
        %v4264 = vpack.c.b16 %v4208, %v4206
        %v4265 = vpack.c.b16 %v4211, %v4209
        %v4266 = vpack.c.b16 %v4212, %v4210
        %v4267 = vpack.c.b16 %v4215, %v4213
        %v4268 = vpack.c.b16 %v4216, %v4214
        %v4269 = vpack.c.b16 %v4219, %v4217
        %v4270 = vpack.c.b16 %v4220, %v4218
        %v4271 = vpack.c.b16 %v4223, %v4221
        %v4272 = vpack.c.b16 %v4224, %v4222
        %v4273 = vpack.c.b16 %v4227, %v4225
        %v4274 = vpack.c.b16 %v4228, %v4226
        %v4275 = vpack.c.b16 %v4231, %v4229
        %v4276 = vpack.c.b16 %v4232, %v4230
        %v4277 = vpack.c.b16 %v4235, %v4233
        %v4278 = vpack.c.b16 %v4236, %v4234
        %v4279 = vpack.c.b16 %v4239, %v4237
        %v4280 = vpack.c.b16 %v4240, %v4238
        %v4281 = vpack.c.b16 %v4243, %v4241
        %v4282 = vpack.c.b16 %v4244, %v4242
        %v4283 = vpack.c.b16 %v4247, %v4245
        %v4284 = vpack.c.b16 %v4248, %v4246
        %v4285 = vpack.c.b16 %v4251, %v4249
        %v4286 = vpack.c.b16 %v4252, %v4250
        %v4287 = vpack.c.b16 %v4255, %v4253
        %v4288 = vpack.c.b16 %v4256, %v4254
        %v4322 = vperm.slane %v4160, 0
        %v4323 = vperm.slane %v4160, 1
        %4326 = vmatpush.bf16.msra.mxu0 %v4271
        %4327 = vmatpush.bf16.msra.mxu0 %v4269
        %4328 = vmatpush.bf16.msra.mxu0 %v4267
        %4329 = vmatpush.bf16.msra.mxu0 %v4265
        %4330 = vmatpush.bf16.msra.mxu0 %v4263
        %4331 = vmatpush.bf16.msra.mxu0 %v4261
        %4332 = vmatpush.bf16.msra.mxu0 %v4259
        %4333 = vmatpush.bf16.msra.mxu0 %v4257
        %4334 = vmatmul.bf16.gmra.mxu0 %v4126
        %v4335 = vpop.f32.mrf.mxu0
        %v4336 = vadd.f32 %v4322, %v4335
        %v4337 = vpop.f32.mrf.mxu0
        %4338 = vdwg.mxu0
        %4339 = vmatpush.bf16.msra.mxu0 %v4287
        %4340 = vmatpush.bf16.msra.mxu0 %v4285
        %4341 = vmatpush.bf16.msra.mxu0 %v4283
        %4342 = vmatpush.bf16.msra.mxu0 %v4281
        %4343 = vmatpush.bf16.msra.mxu0 %v4279
        %4344 = vmatpush.bf16.msra.mxu0 %v4277
        %4345 = vmatpush.bf16.msra.mxu0 %v4275
        %4346 = vmatpush.bf16.msra.mxu0 %v4273
        %4347 = vmatmul.bf16.gmra.mxu0 %v4127
        %v4348 = vpop.f32.mrf.mxu0
        %v4349 = vadd.f32 %v4336, %v4348
        %v4350 = vpop.f32.mrf.mxu0
        %4351 = vdwg.mxu0
        %4352 = vmatpush.bf16.msra.mxu0 %v4272
        %4353 = vmatpush.bf16.msra.mxu0 %v4270
        %4354 = vmatpush.bf16.msra.mxu0 %v4268
        %4355 = vmatpush.bf16.msra.mxu0 %v4266
        %4356 = vmatpush.bf16.msra.mxu0 %v4264
        %4357 = vmatpush.bf16.msra.mxu0 %v4262
        %4358 = vmatpush.bf16.msra.mxu0 %v4260
        %4359 = vmatpush.bf16.msra.mxu0 %v4258
        %4360 = vmatmul.bf16.gmra.mxu0 %v4126
        %v4361 = vpop.f32.mrf.mxu0
        %v4362 = vadd.f32 %v4323, %v4361
        %v4363 = vpop.f32.mrf.mxu0
        %4364 = vdwg.mxu0
        %4365 = vmatpush.bf16.msra.mxu0 %v4288
        %4366 = vmatpush.bf16.msra.mxu0 %v4286
        %4367 = vmatpush.bf16.msra.mxu0 %v4284
        %4368 = vmatpush.bf16.msra.mxu0 %v4282
        %4369 = vmatpush.bf16.msra.mxu0 %v4280
        %4370 = vmatpush.bf16.msra.mxu0 %v4278
        %4371 = vmatpush.bf16.msra.mxu0 %v4276
        %4372 = vmatpush.bf16.msra.mxu0 %v4274
        %4373 = vmatmul.bf16.gmra.mxu0 %v4127
        %v4374 = vpop.f32.mrf.mxu0
        %v4375 = vadd.f32 %v4362, %v4374
        %v4376 = vpop.f32.mrf.mxu0
        %4377 = vdwg.mxu0
        %v4378 = vmax.f32 %v4349, 0.0
        %v4379 = vmax.f32 %v4375, 0.0
        %v4380 = vpack.c.bf16 %v4378, %v4378
        %v4381 = vpack.c.bf16 %v4379, %v4379
        %v4382 = vld [vmem:[%s12] sm:$0xff]
        %v4383 = vld [vmem:[%s12 + $0x8] sm:$0xff]
        %v4384 = vld [vmem:[%s12 + $0x10] sm:$0xff]
        %v4385 = vld [vmem:[%s12 + $0x18] sm:$0xff]
        %v4386 = vld [vmem:[%s12 + $0x20] sm:$0xff]
        %v4387 = vld [vmem:[%s12 + $0x28] sm:$0xff]
        %v4388 = vld [vmem:[%s12 + $0x30] sm:$0xff]
        %v4389 = vld [vmem:[%s12 + $0x38] sm:$0xff]
        %v4390 = vld [vmem:[%s12 + $0x40] sm:$0xff]
        %v4391 = vld [vmem:[%s12 + $0x48] sm:$0xff]
        %v4392 = vld [vmem:[%s12 + $0x50] sm:$0xff]
        %v4393 = vld [vmem:[%s12 + $0x58] sm:$0xff]
        %v4394 = vld [vmem:[%s12 + $0x60] sm:$0xff]
        %v4395 = vld [vmem:[%s12 + $0x68] sm:$0xff]
        %v4396 = vld [vmem:[%s12 + $0x70] sm:$0xff]
        %v4397 = vld [vmem:[%s12 + $0x78] sm:$0xff]
        %v4398 = vld [vmem:[%s12 + $0x80] sm:$0xff]
        %v4399 = vld [vmem:[%s12 + $0x88] sm:$0xff]
        %v4400 = vld [vmem:[%s12 + $0x90] sm:$0xff]
        %v4401 = vld [vmem:[%s12 + $0x98] sm:$0xff]
        %v4402 = vld [vmem:[%s12 + $0xa0] sm:$0xff]
        %v4403 = vld [vmem:[%s12 + $0xa8] sm:$0xff]
        %v4404 = vld [vmem:[%s12 + $0xb0] sm:$0xff]
        %v4405 = vld [vmem:[%s12 + $0xb8] sm:$0xff]
        %v4406 = vld [vmem:[%s12 + $0xc0] sm:$0xff]
        %v4407 = vld [vmem:[%s12 + $0xc8] sm:$0xff]
        %v4408 = vld [vmem:[%s12 + $0xd0] sm:$0xff]
        %v4409 = vld [vmem:[%s12 + $0xd8] sm:$0xff]
        %v4410 = vld [vmem:[%s12 + $0xe0] sm:$0xff]
        %v4411 = vld [vmem:[%s12 + $0xe8] sm:$0xff]
        %v4412 = vld [vmem:[%s12 + $0xf0] sm:$0xff]
        %v4413 = vld [vmem:[%s12 + $0xf8] sm:$0xff]
        %v4414 = vld [vmem:[#allocation11] sm:$0x3]
        %v4447 = vunpack.c.l.b16 %v4382
        %v4448 = vunpack.c.h.b16 %v4382
        %v4449 = vunpack.c.l.b16 %v4383
        %v4450 = vunpack.c.h.b16 %v4383
        %v4451 = vunpack.c.l.b16 %v4384
        %v4452 = vunpack.c.h.b16 %v4384
        %v4453 = vunpack.c.l.b16 %v4385
        %v4454 = vunpack.c.h.b16 %v4385
        %v4455 = vunpack.c.l.b16 %v4386
        %v4456 = vunpack.c.h.b16 %v4386
        %v4457 = vunpack.c.l.b16 %v4387
        %v4458 = vunpack.c.h.b16 %v4387
        %v4459 = vunpack.c.l.b16 %v4388
        %v4460 = vunpack.c.h.b16 %v4388
        %v4461 = vunpack.c.l.b16 %v4389
        %v4462 = vunpack.c.h.b16 %v4389
        %v4463 = vunpack.c.l.b16 %v4390
        %v4464 = vunpack.c.h.b16 %v4390
        %v4465 = vunpack.c.l.b16 %v4391
        %v4466 = vunpack.c.h.b16 %v4391
        %v4467 = vunpack.c.l.b16 %v4392
        %v4468 = vunpack.c.h.b16 %v4392
        %v4469 = vunpack.c.l.b16 %v4393
        %v4470 = vunpack.c.h.b16 %v4393
        %v4471 = vunpack.c.l.b16 %v4394
        %v4472 = vunpack.c.h.b16 %v4394
        %v4473 = vunpack.c.l.b16 %v4395
        %v4474 = vunpack.c.h.b16 %v4395
        %v4475 = vunpack.c.l.b16 %v4396
        %v4476 = vunpack.c.h.b16 %v4396
        %v4477 = vunpack.c.l.b16 %v4397
        %v4478 = vunpack.c.h.b16 %v4397
        %v4479 = vunpack.c.l.b16 %v4398
        %v4480 = vunpack.c.h.b16 %v4398
        %v4481 = vunpack.c.l.b16 %v4399
        %v4482 = vunpack.c.h.b16 %v4399
        %v4483 = vunpack.c.l.b16 %v4400
        %v4484 = vunpack.c.h.b16 %v4400
        %v4485 = vunpack.c.l.b16 %v4401
        %v4486 = vunpack.c.h.b16 %v4401
        %v4487 = vunpack.c.l.b16 %v4402
        %v4488 = vunpack.c.h.b16 %v4402
        %v4489 = vunpack.c.l.b16 %v4403
        %v4490 = vunpack.c.h.b16 %v4403
        %v4491 = vunpack.c.l.b16 %v4404
        %v4492 = vunpack.c.h.b16 %v4404
        %v4493 = vunpack.c.l.b16 %v4405
        %v4494 = vunpack.c.h.b16 %v4405
        %v4495 = vunpack.c.l.b16 %v4406
        %v4496 = vunpack.c.h.b16 %v4406
        %v4497 = vunpack.c.l.b16 %v4407
        %v4498 = vunpack.c.h.b16 %v4407
        %v4499 = vunpack.c.l.b16 %v4408
        %v4500 = vunpack.c.h.b16 %v4408
        %v4501 = vunpack.c.l.b16 %v4409
        %v4502 = vunpack.c.h.b16 %v4409
        %v4503 = vunpack.c.l.b16 %v4410
        %v4504 = vunpack.c.h.b16 %v4410
        %v4505 = vunpack.c.l.b16 %v4411
        %v4506 = vunpack.c.h.b16 %v4411
        %v4507 = vunpack.c.l.b16 %v4412
        %v4508 = vunpack.c.h.b16 %v4412
        %v4509 = vunpack.c.l.b16 %v4413
        %v4510 = vunpack.c.h.b16 %v4413
        %v4511 = vpack.c.b16 %v4449, %v4447
        %v4512 = vpack.c.b16 %v4450, %v4448
        %v4513 = vpack.c.b16 %v4453, %v4451
        %v4514 = vpack.c.b16 %v4454, %v4452
        %v4515 = vpack.c.b16 %v4457, %v4455
        %v4516 = vpack.c.b16 %v4458, %v4456
        %v4517 = vpack.c.b16 %v4461, %v4459
        %v4518 = vpack.c.b16 %v4462, %v4460
        %v4519 = vpack.c.b16 %v4465, %v4463
        %v4520 = vpack.c.b16 %v4466, %v4464
        %v4521 = vpack.c.b16 %v4469, %v4467
        %v4522 = vpack.c.b16 %v4470, %v4468
        %v4523 = vpack.c.b16 %v4473, %v4471
        %v4524 = vpack.c.b16 %v4474, %v4472
        %v4525 = vpack.c.b16 %v4477, %v4475
        %v4526 = vpack.c.b16 %v4478, %v4476
        %v4527 = vpack.c.b16 %v4481, %v4479
        %v4528 = vpack.c.b16 %v4482, %v4480
        %v4529 = vpack.c.b16 %v4485, %v4483
        %v4530 = vpack.c.b16 %v4486, %v4484
        %v4531 = vpack.c.b16 %v4489, %v4487
        %v4532 = vpack.c.b16 %v4490, %v4488
        %v4533 = vpack.c.b16 %v4493, %v4491
        %v4534 = vpack.c.b16 %v4494, %v4492
        %v4535 = vpack.c.b16 %v4497, %v4495
        %v4536 = vpack.c.b16 %v4498, %v4496
        %v4537 = vpack.c.b16 %v4501, %v4499
        %v4538 = vpack.c.b16 %v4502, %v4500
        %v4539 = vpack.c.b16 %v4505, %v4503
        %v4540 = vpack.c.b16 %v4506, %v4504
        %v4541 = vpack.c.b16 %v4509, %v4507
        %v4542 = vpack.c.b16 %v4510, %v4508
        %v4576 = vperm.slane %v4414, 0
        %v4577 = vperm.slane %v4414, 1
        %4580 = vmatpush.bf16.msra.mxu0 %v4525
        %4581 = vmatpush.bf16.msra.mxu0 %v4523
        %4582 = vmatpush.bf16.msra.mxu0 %v4521
        %4583 = vmatpush.bf16.msra.mxu0 %v4519
        %4584 = vmatpush.bf16.msra.mxu0 %v4517
        %4585 = vmatpush.bf16.msra.mxu0 %v4515
        %4586 = vmatpush.bf16.msra.mxu0 %v4513
        %4587 = vmatpush.bf16.msra.mxu0 %v4511
        %4588 = vmatmul.bf16.gmra.mxu0 %v4380
        %v4589 = vpop.f32.mrf.mxu0
        %v4590 = vadd.f32 %v4576, %v4589
        %v4591 = vpop.f32.mrf.mxu0
        %4592 = vdwg.mxu0
        %4593 = vmatpush.bf16.msra.mxu0 %v4541
        %4594 = vmatpush.bf16.msra.mxu0 %v4539
        %4595 = vmatpush.bf16.msra.mxu0 %v4537
        %4596 = vmatpush.bf16.msra.mxu0 %v4535
        %4597 = vmatpush.bf16.msra.mxu0 %v4533
        %4598 = vmatpush.bf16.msra.mxu0 %v4531
        %4599 = vmatpush.bf16.msra.mxu0 %v4529
        %4600 = vmatpush.bf16.msra.mxu0 %v4527
        %4601 = vmatmul.bf16.gmra.mxu0 %v4381
        %v4602 = vpop.f32.mrf.mxu0
        %v4603 = vadd.f32 %v4590, %v4602
        %v4604 = vpop.f32.mrf.mxu0
        %4605 = vdwg.mxu0
        %4606 = vmatpush.bf16.msra.mxu0 %v4526
        %4607 = vmatpush.bf16.msra.mxu0 %v4524
        %4608 = vmatpush.bf16.msra.mxu0 %v4522
        %4609 = vmatpush.bf16.msra.mxu0 %v4520
        %4610 = vmatpush.bf16.msra.mxu0 %v4518
        %4611 = vmatpush.bf16.msra.mxu0 %v4516
        %4612 = vmatpush.bf16.msra.mxu0 %v4514
        %4613 = vmatpush.bf16.msra.mxu0 %v4512
        %4614 = vmatmul.bf16.gmra.mxu0 %v4380
        %v4615 = vpop.f32.mrf.mxu0
        %v4616 = vadd.f32 %v4577, %v4615
        %v4617 = vpop.f32.mrf.mxu0
        %4618 = vdwg.mxu0
        %4619 = vmatpush.bf16.msra.mxu0 %v4542
        %4620 = vmatpush.bf16.msra.mxu0 %v4540
        %4621 = vmatpush.bf16.msra.mxu0 %v4538
        %4622 = vmatpush.bf16.msra.mxu0 %v4536
        %4623 = vmatpush.bf16.msra.mxu0 %v4534
        %4624 = vmatpush.bf16.msra.mxu0 %v4532
        %4625 = vmatpush.bf16.msra.mxu0 %v4530
        %4626 = vmatpush.bf16.msra.mxu0 %v4528
        %4627 = vmatmul.bf16.gmra.mxu0 %v4381
        %v4628 = vpop.f32.mrf.mxu0
        %v4629 = vadd.f32 %v4616, %v4628
        %v4630 = vpop.f32.mrf.mxu0
        %4631 = vdwg.mxu0
        %v4632 = vmax.f32 %v4603, 0.0
        %v4633 = vmax.f32 %v4629, 0.0
        %v4634 = vpack.c.bf16 %v4632, %v4632
        %v4635 = vpack.c.bf16 %v4633, %v4633
        %v4636 = vld [vmem:[%s14] sm:$0xf]
        %v4637 = vld [vmem:[%s14 + $0x4] sm:$0xf]
        %v4638 = vld [vmem:[%s14 + $0x8] sm:$0xf]
        %v4639 = vld [vmem:[%s14 + $0xc] sm:$0xf]
        %v4640 = vld [vmem:[%s14 + $0x10] sm:$0xf]
        %v4641 = vld [vmem:[%s14 + $0x14] sm:$0xf]
        %v4642 = vld [vmem:[%s14 + $0x18] sm:$0xf]
        %v4643 = vld [vmem:[%s14 + $0x1c] sm:$0xf]
        %v4644 = vld [vmem:[%s14 + $0x20] sm:$0xf]
        %v4645 = vld [vmem:[%s14 + $0x24] sm:$0xf]
        %v4646 = vld [vmem:[%s14 + $0x28] sm:$0xf]
        %v4647 = vld [vmem:[%s14 + $0x2c] sm:$0xf]
        %v4648 = vld [vmem:[%s14 + $0x30] sm:$0xf]
        %v4649 = vld [vmem:[%s14 + $0x34] sm:$0xf]
        %v4650 = vld [vmem:[%s14 + $0x38] sm:$0xf]
        %v4651 = vld [vmem:[%s14 + $0x3c] sm:$0xf]
        %v4652 = vld [vmem:[%s14 + $0x40] sm:$0xf]
        %v4653 = vld [vmem:[%s14 + $0x44] sm:$0xf]
        %v4654 = vld [vmem:[%s14 + $0x48] sm:$0xf]
        %v4655 = vld [vmem:[%s14 + $0x4c] sm:$0xf]
        %v4656 = vld [vmem:[%s14 + $0x50] sm:$0xf]
        %v4657 = vld [vmem:[%s14 + $0x54] sm:$0xf]
        %v4658 = vld [vmem:[%s14 + $0x58] sm:$0xf]
        %v4659 = vld [vmem:[%s14 + $0x5c] sm:$0xf]
        %v4660 = vld [vmem:[%s14 + $0x60] sm:$0xf]
        %v4661 = vld [vmem:[%s14 + $0x64] sm:$0xf]
        %v4662 = vld [vmem:[%s14 + $0x68] sm:$0xf]
        %v4663 = vld [vmem:[%s14 + $0x6c] sm:$0xf]
        %v4664 = vld [vmem:[%s14 + $0x70] sm:$0xf]
        %v4665 = vld [vmem:[%s14 + $0x74] sm:$0xf]
        %v4666 = vld [vmem:[%s14 + $0x78] sm:$0xf]
        %v4667 = vld [vmem:[%s14 + $0x7c] sm:$0xf]
        %v4668 = vld [vmem:[#allocation13] sm:$0x1]
        %v4701 = vunpack.c.l.b16 %v4636
        %v4702 = vunpack.c.l.b16 %v4637
        %v4703 = vunpack.c.l.b16 %v4638
        %v4704 = vunpack.c.l.b16 %v4639
        %v4705 = vunpack.c.l.b16 %v4640
        %v4706 = vunpack.c.l.b16 %v4641
        %v4707 = vunpack.c.l.b16 %v4642
        %v4708 = vunpack.c.l.b16 %v4643
        %v4709 = vunpack.c.l.b16 %v4644
        %v4710 = vunpack.c.l.b16 %v4645
        %v4711 = vunpack.c.l.b16 %v4646
        %v4712 = vunpack.c.l.b16 %v4647
        %v4713 = vunpack.c.l.b16 %v4648
        %v4714 = vunpack.c.l.b16 %v4649
        %v4715 = vunpack.c.l.b16 %v4650
        %v4716 = vunpack.c.l.b16 %v4651
        %v4717 = vunpack.c.l.b16 %v4652
        %v4718 = vunpack.c.l.b16 %v4653
        %v4719 = vunpack.c.l.b16 %v4654
        %v4720 = vunpack.c.l.b16 %v4655
        %v4721 = vunpack.c.l.b16 %v4656
        %v4722 = vunpack.c.l.b16 %v4657
        %v4723 = vunpack.c.l.b16 %v4658
        %v4724 = vunpack.c.l.b16 %v4659
        %v4725 = vunpack.c.l.b16 %v4660
        %v4726 = vunpack.c.l.b16 %v4661
        %v4727 = vunpack.c.l.b16 %v4662
        %v4728 = vunpack.c.l.b16 %v4663
        %v4729 = vunpack.c.l.b16 %v4664
        %v4730 = vunpack.c.l.b16 %v4665
        %v4731 = vunpack.c.l.b16 %v4666
        %v4732 = vunpack.c.l.b16 %v4667
        %v4733 = vpack.c.b16 %v4702, %v4701
        %v4734 = vpack.c.b16 %v4704, %v4703
        %v4735 = vpack.c.b16 %v4706, %v4705
        %v4736 = vpack.c.b16 %v4708, %v4707
        %v4737 = vpack.c.b16 %v4710, %v4709
        %v4738 = vpack.c.b16 %v4712, %v4711
        %v4739 = vpack.c.b16 %v4714, %v4713
        %v4740 = vpack.c.b16 %v4716, %v4715
        %v4741 = vpack.c.b16 %v4718, %v4717
        %v4742 = vpack.c.b16 %v4720, %v4719
        %v4743 = vpack.c.b16 %v4722, %v4721
        %v4744 = vpack.c.b16 %v4724, %v4723
        %v4745 = vpack.c.b16 %v4726, %v4725
        %v4746 = vpack.c.b16 %v4728, %v4727
        %v4747 = vpack.c.b16 %v4730, %v4729
        %v4748 = vpack.c.b16 %v4732, %v4731
        %4765 = vmatpush.bf16.msra.mxu0 %v4740
        %4766 = vmatpush.bf16.msra.mxu0 %v4739
        %4767 = vmatpush.bf16.msra.mxu0 %v4738
        %4768 = vmatpush.bf16.msra.mxu0 %v4737
        %4769 = vmatpush.bf16.msra.mxu0 %v4736
        %4770 = vmatpush.bf16.msra.mxu0 %v4735
        %4771 = vmatpush.bf16.msra.mxu0 %v4734
        %4772 = vmatpush.bf16.msra.mxu0 %v4733
        %4773 = vmatmul.bf16.gmra.mxu0 %v4634
        %v4774 = vpop.f32.mrf.mxu0
        %v4775 = vadd.f32 %v4668, %v4774
        %v4776 = vpop.f32.mrf.mxu0
        %4777 = vdwg.mxu0
        %4778 = vmatpush.bf16.msra.mxu0 %v4748
        %4779 = vmatpush.bf16.msra.mxu0 %v4747
        %4780 = vmatpush.bf16.msra.mxu0 %v4746
        %4781 = vmatpush.bf16.msra.mxu0 %v4745
        %4782 = vmatpush.bf16.msra.mxu0 %v4744
        %4783 = vmatpush.bf16.msra.mxu0 %v4743
        %4784 = vmatpush.bf16.msra.mxu0 %v4742
        %4785 = vmatpush.bf16.msra.mxu0 %v4741
        %4786 = vmatmul.bf16.gmra.mxu0 %v4635
        %v4787 = vpop.f32.mrf.mxu0
        %v4788 = vadd.f32 %v4775, %v4787
        %v4789 = vpop.f32.mrf.mxu0
        %4790 = vdwg.mxu0
        %vm4791 = vcmask 73728
        %4792 = vst.msk [vmem:[%s617] sm:$0x1] %vm4791, %v4788
        %s4793 = sand.u32 %s383, 1
        %s4794 = scalar_lea.sflag [#allocation4], %s4793
        %s4795 = sand.u32 %s383, 1
        %s4796 = scalar_lea.vmem [#allocation14], %s4795
        // Predicated region
        $region113: #{vgg_light_256_forward.1} parent=83 // pred_check
          %p4797 = pneg %p393
        $region114: #{vgg_light_256_forward.1} parent=83 // pred_check_branch
          %4799 = sbr.rel (%p4797) target = $region116
        $region115: #{vgg_light_256_forward.1} parent=83 // pred_region
          %4801 = vsyncadd %s4794, 0
          %s4802 = scalar_lea.hbm %s16, %s34
          %s4804 = sshll.u32 %s4796, 4
          %s4805 = int_to_ptr.vmem [resolvable:$true] %s4804
          %s4806 = sshll.u32 %s4802, 4
          %s4807 = int_to_ptr.hbm [resolvable:$true] %s4806
          %4809 = dma.vmem_to_hbm [thread:$0]  %s4805, 16, %s4807, %s4794
        $region116: #{vgg_light_256_forward.1} parent=83 // pred_fallthru
          _
      $region84: #{vgg_light_256_forward.1} parent=5 // pred_fallthru
        _
      %p4810 = scmp.le.s32.totalorder 2, %s29
      // Predicated region
      $region117: #{vgg_light_256_forward.1} parent=5 // pred_check
        %p4811 = pneg %p4810
      $region118: #{vgg_light_256_forward.1} parent=5 // pred_check_branch
        %4813 = sbr.rel (%p4811) target = $region120
      $region119: #{vgg_light_256_forward.1} parent=5 // pred_region
        %s4814 = ssub.s32 %s29, 2
        // Predicated region
        $region121: #{vgg_light_256_forward.1} parent=119 // pred_check
          %p4815 = pneg %p399
        $region122: #{vgg_light_256_forward.1} parent=119 // pred_check_branch
          %4817 = sbr.rel (%p4815) target = $region124
        $region123: #{vgg_light_256_forward.1} parent=119 // pred_region
          %s4818 = sand.u32 %s384, 1
          %s4819 = scalar_lea.sflag [#allocation4], %s4818
          %s4820 = sand.u32 %s384, 1
          %s4821 = scalar_lea.vmem [#allocation14], %s4820
          %4823 = dma.done %s4819, 16
        $region124: #{vgg_light_256_forward.1} parent=119 // pred_fallthru
          _
      $region120: #{vgg_light_256_forward.1} parent=5 // pred_fallthru
        _
    $region6: #{vgg_light_256_forward.1} parent=1 // loop_footer
      %s33 = sadd.s32 1, %s29
    $region7: #{vgg_light_256_forward.1} parent=1 // loop_footer_branch
      %28 = sbr.rel target = $region3
    $region8: #{vgg_light_256_forward.1} parent=1 // loop_exit
      _
    %4824 = vsyncpa [#allocation3], 1
    %s4825 = scalar_lea.sflag [#allocation3], 1
    %4826 = vsyncpa %s4825, 1
    %4827 = vsyncpa [#allocation6], 1
    %4828 = vsyncpa [#allocation9], 1
    %4829 = vsyncpa [#allocation12], 1
    %4830 = vsyncpa [#allocation4], 1
    %s4831 = scalar_lea.sflag [#allocation4], 1
    %4832 = vsyncpa %s4831, 1

</llo_original>
